<compile_context>
chip_gen: v7x
topology: tpu7x:2x2x1
jax: 0.10.0
libtpu: 0.0.40
codegen_flags: <defaults>
</compile_context>

<pallas_src>
import functools

import jax
import jax.numpy as jnp
from jax.experimental import pallas as pl
from jax.experimental.pallas import tpu as pltpu

LANE = 128  # every hidden / class output dim is zero-padded to one 128-lane slab


# ---------------------------------------------------------------------------
# The single fused kernel (processes G graphs per grid step).
# ---------------------------------------------------------------------------
def _fused_kernel(adj_ref, x_ref,
                  w1_ref, b1_ref, w2_ref, b2_ref,
                  w3_ref, b3_ref, w4_ref, b4_ref,
                  wa_ref, wf1_ref, bf1_ref, wf2_ref, bf2_ref,
                  o_ref, *, n_graphs, n_nodes, num_classes):
    f32 = jnp.float32
    g, n = n_graphs, n_nodes

    adj = adj_ref[...].astype(f32)                           # (G, N, N); 0/1 exact in bf16

    # ---- GCN normalization, hoisted out of the layer loop -------------------
    #   A_hat = D^-1/2 (A+I) D^-1/2  =  (dinv * A * dinv^T)  +  diag(1/deg)
    # NOTE: assumes symmetric adjacency (undirected graphs), so the column
    # degree equals the row degree and no in-kernel transpose is needed.
    deg = jnp.sum(adj, axis=2, keepdims=True) + 1.0          # (G, N, 1) degree of A+I
    deg_t = jnp.sum(adj, axis=1, keepdims=True) + 1.0        # (G, 1, N) == deg^T (symmetric A)
    dinv = jax.lax.rsqrt(deg)
    dinv_t = jax.lax.rsqrt(deg_t)
    a_hat = adj * dinv * dinv_t                              # off-diagonal part of A_hat
    d_self = dinv * dinv                                     # (G, N, 1) = 1/deg (self-loop part)

    def gcn_layer(h2, w_ref, b_ref):
        k = w_ref.shape[0]                                   # real contraction width
        w = w_ref[...].astype(f32)                           # (k, 128) bf16 -> f32 upcast
        b = b_ref[...].astype(f32)                           # (1, 128)
        # Stacked X @ W across all G graphs: (G*N, k) @ (k, 128) fills MXU M rows.
        xw = jnp.dot(h2[:, :k], w, preferred_element_type=f32)          # (G*N, 128)
        xw3 = xw.reshape(g, n, LANE)
        # Per-graph propagation: A_hat_offdiag @ XW + (1/deg)*XW (self loop) + b
        z = jnp.einsum("gnm,gmk->gnk", a_hat, xw3, preferred_element_type=f32)
        h3 = jnp.maximum(z + d_self * xw3 + b, 0.0)          # relu; dropout = identity (eval)
        return h3                                            # (G, N, 128)

    h3 = gcn_layer(x_ref[...], w1_ref, b1_ref)
    h3 = gcn_layer(h3.reshape(g * n, LANE), w2_ref, b2_ref)
    h3 = gcn_layer(h3.reshape(g * n, LANE), w3_ref, b3_ref)
    h3 = gcn_layer(h3.reshape(g * n, LANE), w4_ref, b4_ref)  # real cols = filters_4 = 32

    # ---- AttentionModule graph pooling ---------------------------------------
    # Mean over nodes and the linear projection commute: mean(h @ Wa) == mean(h) @ Wa.
    hbar = jnp.mean(h3, axis=1)                              # (G, 128), XLU sublane reduce
    gc = jnp.dot(hbar[:, :wa_ref.shape[0]], wa_ref[...].astype(f32),
                 preferred_element_type=f32)                 # (G, 128)
    t = jnp.tanh(gc)                                         # padded lanes stay exactly 0
    # logits[g, i] = <h3[g, i, :], t[g, :]>  (padded lanes are zero on both sides)
    logits = jnp.sum(h3 * t[:, None, :], axis=-1, keepdims=True)    # (G, N, 1) lane reduce
    scores = pl.reciprocal(1.0 + jnp.exp(-logits), approx=True)     # sigmoid via EUP vrcp
    pooled = jnp.sum(scores * h3, axis=1)                    # (G, 128), sublane reduce

    # ---- MLP head + masked log_softmax over the real class lanes -------------
    z1 = jnp.dot(pooled[:, :wf1_ref.shape[0]], wf1_ref[...].astype(f32),
                 preferred_element_type=f32) + bf1_ref[...].astype(f32)
    z1 = jnp.maximum(z1, 0.0)                                # (G, 128), real cols = 16
    s = jnp.dot(z1[:, :wf2_ref.shape[0]], wf2_ref[...].astype(f32),
                preferred_element_type=f32) + bf2_ref[...].astype(f32)    # (G, 128)

    col = jax.lax.broadcasted_iota(jnp.int32, s.shape, 1)
    s = jnp.where(col < num_classes, s, -1e30)               # mask padded class lanes (f32)
    m = jnp.max(s, axis=1, keepdims=True)
    zc = s - m
    lse = jnp.log(jnp.sum(jnp.exp(zc), axis=1, keepdims=True))
    o_ref[...] = zc - lse                                    # lane-dense (G, 128) store


# ---------------------------------------------------------------------------
# Wrapper: one pallas_call for the whole batched forward.
# ---------------------------------------------------------------------------
@functools.partial(jax.jit, static_argnames=("num_classes", "block_graphs"))
def gcn_cn_v2_forward(pp, adj, features, *, num_classes, block_graphs=8):
    """adj: (B, N, N) 0/1 symmetric (no self loops), features: (B, N, F)."""
    B, N, _ = adj.shape
    F = features.shape[-1]
    G = int(block_graphs)          # graphs per grid step; 8 -> 128 stacked node rows
    if B % G != 0:
        raise ValueError(f"num_graphs ({B}) must be a multiple of block_graphs ({G})")

    adj_bf = adj.astype(jnp.bfloat16)          # 0/1 exact; halves adjacency DMA
    feats2 = features.reshape(B * N, F)        # graph-major node rows for stacked X@W

    weights = (pp["gcn1_w"], pp["gcn1_b"], pp["gcn2_w"], pp["gcn2_b"],
               pp["gcn3_w"], pp["gcn3_b"], pp["gcn4_w"], pp["gcn4_b"],
               pp["att_w"],
               pp["fc1_w"], pp["fc1_b"], pp["fc2_w"], pp["fc2_b"])

    kern = functools.partial(_fused_kernel, n_graphs=G, n_nodes=N,
                             num_classes=num_classes)

    in_specs = [
        pl.BlockSpec((G, N, N), lambda i: (i, 0, 0)),        # per-step adjacency block
        pl.BlockSpec((G * N, F), lambda i: (i, 0)),          # per-step stacked node features
    ]
    # Weights/biases: constant index_map -> DMA'd once, VMEM-resident across steps.
    in_specs += [pl.BlockSpec(w.shape, lambda i: (0, 0)) for w in weights]

    out_pad = pl.pallas_call(
        kern,
        out_shape=jax.ShapeDtypeStruct((B, LANE), jnp.float32),
        grid=(B // G,),
        in_specs=in_specs,
        out_specs=pl.BlockSpec((G, LANE), lambda i: (i, 0)),
        compiler_params=pltpu.CompilerParams(dimension_semantics=("parallel",)),
    )(adj_bf, feats2, *weights)
    return out_pad[:, :num_classes]


# ---------------------------------------------------------------------------
# Parameters (real shapes for reference, compact lane-padded bf16 for kernel).
# ---------------------------------------------------------------------------
def xavier(key, fan_in, fan_out):
    bound = float(jnp.sqrt(6.0 / (fan_in + fan_out)))
    return jax.random.uniform(key, (fan_in, fan_out), jnp.float32, -bound, bound)


def linear_bias(key, fan_in, size):
    bound = 1.0 / float(jnp.sqrt(float(fan_in)))
    return jax.random.uniform(key, (1, size), jnp.float32, -bound, bound)


def init_raw_params(key, feature_dim, num_classes):
    f1 = f2 = 64
    f3 = f4 = 32
    bn = 16
    ks = jax.random.split(key, 13)
    return {
        "gcn1_w": xavier(ks[0], feature_dim, f1), "gcn1_b": linear_bias(ks[1], feature_dim, f1),
        "gcn2_w": xavier(ks[2], f1, f2),          "gcn2_b": linear_bias(ks[3], f1, f2),
        "gcn3_w": xavier(ks[4], f2, f3),          "gcn3_b": linear_bias(ks[5], f2, f3),
        "gcn4_w": xavier(ks[6], f3, f4),          "gcn4_b": linear_bias(ks[7], f3, f4),
        "att_w":  xavier(ks[8], f4, f4),
        # nn.Linear: y = x @ W^T + b; stored here already transposed to (in, out).
        "fc1_w": xavier(ks[9], f4, bn),           "fc1_b": linear_bias(ks[10], f4, bn),
        "fc2_w": xavier(ks[11], bn, num_classes), "fc2_b": linear_bias(ks[12], bn, num_classes),
    }


def pad_params(raw):
    """Pad only the output (lane) dim to 128 (contraction dim stays real); cast bf16."""
    pp = {}
    for name, v in raw.items():
        padded = jnp.zeros((v.shape[0], LANE), jnp.float32).at[:, : v.shape[1]].set(v)
        pp[name] = padded.astype(jnp.bfloat16)
    return pp


# ---------------------------------------------------------------------------
# Plain-JAX batched reference (f32 compute, unpadded shapes) for correctness.
# ---------------------------------------------------------------------------
def reference_forward(params, adj, features):
    B, N, _ = adj.shape
    a = adj + jnp.eye(N, dtype=jnp.float32)[None]
    deg = jnp.sum(a, axis=2)                                  # (B, N)
    dinv = jax.lax.rsqrt(deg)
    a_hat = a * dinv[:, :, None] * dinv[:, None, :]
    h = features                                              # (B, N, F)
    for i in (1, 2, 3, 4):
        xw = jnp.einsum("bnf,fk->bnk", h, params[f"gcn{i}_w"])
        h = jnp.maximum(jnp.einsum("bnm,bmk->bnk", a_hat, xw) + params[f"gcn{i}_b"], 0.0)
    gc = jnp.mean(jnp.einsum("bnf,fk->bnk", h, params["att_w"]), axis=1)   # (B, 32)
    t = jnp.tanh(gc)
    scores = jax.nn.sigmoid(jnp.einsum("bnk,bk->bn", h, t))[..., None]     # (B, N, 1)
    pooled = jnp.sum(scores * h, axis=1)                                   # (B, 32)
    z1 = jnp.maximum(pooled @ params["fc1_w"] + params["fc1_b"], 0.0)
    s = z1 @ params["fc2_w"] + params["fc2_b"]
    return jax.nn.log_softmax(s, axis=1)                                   # (B, C)


if __name__ == "__main__":
    key = jax.random.PRNGKey(0)
    k_adj, k_feat, k_params = jax.random.split(key, 3)

    N_NODES = 16        # nodes per graph (multiple of 8 -> dense sublanes)
    FEATURE_DIM = 32    # feature_dim_size
    NUM_CLASSES = 4
    NUM_GRAPHS = 32     # batch of independent graphs
    BLOCK_GRAPHS = 8    # graphs per grid step -> 128 stacked node rows (use 16 on v6e/v7x)

    # Random symmetric binary adjacencies (no self loops; the kernel adds them).
    rand = jax.random.uniform(k_adj, (NUM_GRAPHS, N_NODES, N_NODES))
    upper = jnp.triu((rand < 0.3).astype(jnp.float32), 1)
    adj = upper + jnp.swapaxes(upper, 1, 2)

    features = jax.random.normal(k_feat, (NUM_GRAPHS, N_NODES, FEATURE_DIM), jnp.float32)

    raw_params = init_raw_params(k_params, FEATURE_DIM, NUM_CLASSES)
    padded_params = pad_params(raw_params)
    # The kernel sees bf16-rounded weights; compare against an f32 reference that
    # uses the exact same rounded weight values (apples-to-apples check).
    quant_params = {k: v.astype(jnp.bfloat16).astype(jnp.float32) for k, v in raw_params.items()}

    out = gcn_cn_v2_forward(padded_params, adj, features,
                            num_classes=NUM_CLASSES, block_graphs=BLOCK_GRAPHS)
    jax.block_until_ready(out)

    assert out.shape == (NUM_GRAPHS, NUM_CLASSES)
    assert bool(jnp.all(jnp.isfinite(out)))
    # log_softmax sanity: per-graph probabilities sum to ~1
    probs = jnp.sum(jnp.exp(out), axis=1)
    assert bool(jnp.all(jnp.abs(probs - 1.0) < 1e-3))

    # End-to-end numerical check against the plain-JAX reference (f32 matmuls).
    with jax.default_matmul_precision("float32"):
        ref = reference_forward(quant_params, adj, features)
    # Tolerance covers approx-reciprocal sigmoid + MXU f32 pass emulation
    # (typical observed error is ~1e-4 - 1e-3 on the log-probs).
    assert jnp.allclose(out, ref, atol=2e-2, rtol=2e-2), (out, ref)

    print("KERNEL_OK")
</pallas_src>

<mosaic_0001>
module attributes {stable_mosaic.version = 11 : i64} {
  func.func @_fused_kernel(%arg0: i32, %arg1: memref<8x16x16xbf16, #tpu.memory_space<vmem>>, %arg2: memref<128x32xf32, #tpu.memory_space<vmem>>, %arg3: memref<32x128xbf16, #tpu.memory_space<vmem>>, %arg4: memref<1x128xbf16, #tpu.memory_space<vmem>>, %arg5: memref<64x128xbf16, #tpu.memory_space<vmem>>, %arg6: memref<1x128xbf16, #tpu.memory_space<vmem>>, %arg7: memref<64x128xbf16, #tpu.memory_space<vmem>>, %arg8: memref<1x128xbf16, #tpu.memory_space<vmem>>, %arg9: memref<32x128xbf16, #tpu.memory_space<vmem>>, %arg10: memref<1x128xbf16, #tpu.memory_space<vmem>>, %arg11: memref<32x128xbf16, #tpu.memory_space<vmem>>, %arg12: memref<32x128xbf16, #tpu.memory_space<vmem>>, %arg13: memref<1x128xbf16, #tpu.memory_space<vmem>>, %arg14: memref<16x128xbf16, #tpu.memory_space<vmem>>, %arg15: memref<1x128xbf16, #tpu.memory_space<vmem>>, %arg16: memref<8x128xf32, #tpu.memory_space<vmem>>) attributes {dimension_semantics = [#tpu.dimension_semantics<parallel>], iteration_bounds = array<i64: 4>, scalar_prefetch = 0 : i64, scratch_operands = 0 : i64, tpu.core_type = #tpu.core_type<tc>, window_params = [{transform_indices = @transform_0, window_bounds = array<i64: 8, 16, 16>}, {transform_indices = @transform_1, window_bounds = array<i64: 128, 32>}, {pipeline_mode = #tpu.pipeline_mode<synchronous>, transform_indices = @transform_2, window_bounds = array<i64: 32, 128>}, {pipeline_mode = #tpu.pipeline_mode<synchronous>, transform_indices = @transform_3, window_bounds = array<i64: 1, 128>}, {pipeline_mode = #tpu.pipeline_mode<synchronous>, transform_indices = @transform_4, window_bounds = array<i64: 64, 128>}, {pipeline_mode = #tpu.pipeline_mode<synchronous>, transform_indices = @transform_5, window_bounds = array<i64: 1, 128>}, {pipeline_mode = #tpu.pipeline_mode<synchronous>, transform_indices = @transform_6, window_bounds = array<i64: 64, 128>}, {pipeline_mode = #tpu.pipeline_mode<synchronous>, transform_indices = @transform_7, window_bounds = array<i64: 1, 128>}, {pipeline_mode = #tpu.pipeline_mode<synchronous>, transform_indices = @transform_8, window_bounds = array<i64: 32, 128>}, {pipeline_mode = #tpu.pipeline_mode<synchronous>, transform_indices = @transform_9, window_bounds = array<i64: 1, 128>}, {pipeline_mode = #tpu.pipeline_mode<synchronous>, transform_indices = @transform_10, window_bounds = array<i64: 32, 128>}, {pipeline_mode = #tpu.pipeline_mode<synchronous>, transform_indices = @transform_11, window_bounds = array<i64: 32, 128>}, {pipeline_mode = #tpu.pipeline_mode<synchronous>, transform_indices = @transform_12, window_bounds = array<i64: 1, 128>}, {pipeline_mode = #tpu.pipeline_mode<synchronous>, transform_indices = @transform_13, window_bounds = array<i64: 16, 128>}, {pipeline_mode = #tpu.pipeline_mode<synchronous>, transform_indices = @transform_14, window_bounds = array<i64: 1, 128>}, {transform_indices = @transform_15, window_bounds = array<i64: 8, 128>}]} {
    %c0 = arith.constant 0 : index
    %c0_0 = arith.constant 0 : index
    %c0_1 = arith.constant 0 : index
    %0 = vector.load %arg1[%c0, %c0_0, %c0_1] : memref<8x16x16xbf16, #tpu.memory_space<vmem>>, vector<8x16x16xbf16>
    %1 = arith.extf %0 : vector<8x16x16xbf16> to vector<8x16x16xf32>
    %cst = arith.constant dense<0.000000e+00> : vector<8x16xf32>
    %2 = vector.multi_reduction <add>, %1, %cst [2] : vector<8x16x16xf32> to vector<8x16xf32>
    %3 = vector.shape_cast %2 : vector<8x16xf32> to vector<8x16x1xf32>
    %cst_2 = arith.constant 1.000000e+00 : f32
    %4 = vector.broadcast %cst_2 : f32 to vector<8x16x1xf32>
    %5 = arith.addf %3, %4 : vector<8x16x1xf32>
    %cst_3 = arith.constant dense<0.000000e+00> : vector<8x16xf32>
    %6 = vector.multi_reduction <add>, %1, %cst_3 [1] : vector<8x16x16xf32> to vector<8x16xf32>
    %7 = vector.shape_cast %6 : vector<8x16xf32> to vector<8x1x16xf32>
    %cst_4 = arith.constant 1.000000e+00 : f32
    %8 = vector.broadcast %cst_4 : f32 to vector<8x1x16xf32>
    %9 = arith.addf %7, %8 : vector<8x1x16xf32>
    %10 = math.rsqrt %5 : vector<8x16x1xf32>
    %11 = math.rsqrt %9 : vector<8x1x16xf32>
    %12 = vector.broadcast %10 : vector<8x16x1xf32> to vector<8x16x16xf32>
    %13 = arith.mulf %1, %12 : vector<8x16x16xf32>
    %14 = vector.broadcast %11 : vector<8x1x16xf32> to vector<8x16x16xf32>
    %15 = arith.mulf %13, %14 : vector<8x16x16xf32>
    %16 = arith.mulf %10, %10 : vector<8x16x1xf32>
    %c0_5 = arith.constant 0 : index
    %c0_6 = arith.constant 0 : index
    %17 = vector.load %arg2[%c0_5, %c0_6] : memref<128x32xf32, #tpu.memory_space<vmem>>, vector<128x32xf32>
    %c0_7 = arith.constant 0 : index
    %c0_8 = arith.constant 0 : index
    %18 = vector.load %arg3[%c0_7, %c0_8] : memref<32x128xbf16, #tpu.memory_space<vmem>>, vector<32x128xbf16>
    %19 = arith.extf %18 : vector<32x128xbf16> to vector<32x128xf32>
    %c0_9 = arith.constant 0 : index
    %c0_10 = arith.constant 0 : index
    %20 = vector.load %arg4[%c0_9, %c0_10] : memref<1x128xbf16, #tpu.memory_space<vmem>>, vector<1x128xbf16>
    %21 = arith.extf %20 : vector<1x128xbf16> to vector<1x128xf32>
    %cst_11 = arith.constant dense<0.000000e+00> : vector<128x128xf32>
    %22 = tpu.matmul %17, %19, %cst_11 {dimension_numbers = #tpu.dot_dimension_numbers<[1], [0], [0], [1], [0, 0, 1, 1], [], []>} : vector<128x32xf32>, vector<32x128xf32>, vector<128x128xf32> -> vector<128x128xf32>
    %23 = vector.shape_cast %22 : vector<128x128xf32> to vector<8x16x128xf32>
    "tpu.trace_start"() <{level = 10 : i32, message = "gnm,gmk->gnk"}> : () -> ()
    %cst_12 = arith.constant dense<0.000000e+00> : vector<8x16x128xf32>
    %24 = tpu.matmul %15, %23, %cst_12 {dimension_numbers = #tpu.dot_dimension_numbers<[2], [1], [1], [2], [0, 0, 0, 1, 1, 2], [0], [0]>} : vector<8x16x16xf32>, vector<8x16x128xf32>, vector<8x16x128xf32> -> vector<8x16x128xf32>
    "tpu.trace_stop"() : () -> ()
    %25 = vector.broadcast %16 : vector<8x16x1xf32> to vector<8x16x128xf32>
    %26 = arith.mulf %25, %23 : vector<8x16x128xf32>
    %27 = arith.addf %24, %26 : vector<8x16x128xf32>
    %28 = vector.shape_cast %21 : vector<1x128xf32> to vector<1x1x128xf32>
    %29 = vector.broadcast %28 : vector<1x1x128xf32> to vector<8x16x128xf32>
    %30 = arith.addf %27, %29 : vector<8x16x128xf32>
    %cst_13 = arith.constant 0.000000e+00 : f32
    %31 = vector.broadcast %cst_13 : f32 to vector<8x16x128xf32>
    %32 = arith.maximumf %30, %31 : vector<8x16x128xf32>
    %33 = vector.shape_cast %32 : vector<8x16x128xf32> to vector<128x128xf32>
    %c0_14 = arith.constant 0 : index
    %c0_15 = arith.constant 0 : index
    %34 = vector.load %arg5[%c0_14, %c0_15] : memref<64x128xbf16, #tpu.memory_space<vmem>>, vector<64x128xbf16>
    %35 = arith.extf %34 : vector<64x128xbf16> to vector<64x128xf32>
    %c0_16 = arith.constant 0 : index
    %c0_17 = arith.constant 0 : index
    %36 = vector.load %arg6[%c0_16, %c0_17] : memref<1x128xbf16, #tpu.memory_space<vmem>>, vector<1x128xbf16>
    %37 = arith.extf %36 : vector<1x128xbf16> to vector<1x128xf32>
    %38 = vector.extract_strided_slice %33 {offsets = [0, 0], sizes = [128, 64], strides = [1, 1]} : vector<128x128xf32> to vector<128x64xf32>
    %cst_18 = arith.constant dense<0.000000e+00> : vector<128x128xf32>
    %39 = tpu.matmul %38, %35, %cst_18 {dimension_numbers = #tpu.dot_dimension_numbers<[1], [0], [0], [1], [0, 0, 1, 1], [], []>} : vector<128x64xf32>, vector<64x128xf32>, vector<128x128xf32> -> vector<128x128xf32>
    %40 = vector.shape_cast %39 : vector<128x128xf32> to vector<8x16x128xf32>
    "tpu.trace_start"() <{level = 10 : i32, message = "gnm,gmk->gnk"}> : () -> ()
    %cst_19 = arith.constant dense<0.000000e+00> : vector<8x16x128xf32>
    %41 = tpu.matmul %15, %40, %cst_19 {dimension_numbers = #tpu.dot_dimension_numbers<[2], [1], [1], [2], [0, 0, 0, 1, 1, 2], [0], [0]>} : vector<8x16x16xf32>, vector<8x16x128xf32>, vector<8x16x128xf32> -> vector<8x16x128xf32>
    "tpu.trace_stop"() : () -> ()
    %42 = vector.broadcast %16 : vector<8x16x1xf32> to vector<8x16x128xf32>
    %43 = arith.mulf %42, %40 : vector<8x16x128xf32>
    %44 = arith.addf %41, %43 : vector<8x16x128xf32>
    %45 = vector.shape_cast %37 : vector<1x128xf32> to vector<1x1x128xf32>
    %46 = vector.broadcast %45 : vector<1x1x128xf32> to vector<8x16x128xf32>
    %47 = arith.addf %44, %46 : vector<8x16x128xf32>
    %cst_20 = arith.constant 0.000000e+00 : f32
    %48 = vector.broadcast %cst_20 : f32 to vector<8x16x128xf32>
    %49 = arith.maximumf %47, %48 : vector<8x16x128xf32>
    %50 = vector.shape_cast %49 : vector<8x16x128xf32> to vector<128x128xf32>
    %c0_21 = arith.constant 0 : index
    %c0_22 = arith.constant 0 : index
    %51 = vector.load %arg7[%c0_21, %c0_22] : memref<64x128xbf16, #tpu.memory_space<vmem>>, vector<64x128xbf16>
    %52 = arith.extf %51 : vector<64x128xbf16> to vector<64x128xf32>
    %c0_23 = arith.constant 0 : index
    %c0_24 = arith.constant 0 : index
    %53 = vector.load %arg8[%c0_23, %c0_24] : memref<1x128xbf16, #tpu.memory_space<vmem>>, vector<1x128xbf16>
    %54 = arith.extf %53 : vector<1x128xbf16> to vector<1x128xf32>
    %55 = vector.extract_strided_slice %50 {offsets = [0, 0], sizes = [128, 64], strides = [1, 1]} : vector<128x128xf32> to vector<128x64xf32>
    %cst_25 = arith.constant dense<0.000000e+00> : vector<128x128xf32>
    %56 = tpu.matmul %55, %52, %cst_25 {dimension_numbers = #tpu.dot_dimension_numbers<[1], [0], [0], [1], [0, 0, 1, 1], [], []>} : vector<128x64xf32>, vector<64x128xf32>, vector<128x128xf32> -> vector<128x128xf32>
    %57 = vector.shape_cast %56 : vector<128x128xf32> to vector<8x16x128xf32>
    "tpu.trace_start"() <{level = 10 : i32, message = "gnm,gmk->gnk"}> : () -> ()
    %cst_26 = arith.constant dense<0.000000e+00> : vector<8x16x128xf32>
    %58 = tpu.matmul %15, %57, %cst_26 {dimension_numbers = #tpu.dot_dimension_numbers<[2], [1], [1], [2], [0, 0, 0, 1, 1, 2], [0], [0]>} : vector<8x16x16xf32>, vector<8x16x128xf32>, vector<8x16x128xf32> -> vector<8x16x128xf32>
    "tpu.trace_stop"() : () -> ()
    %59 = vector.broadcast %16 : vector<8x16x1xf32> to vector<8x16x128xf32>
    %60 = arith.mulf %59, %57 : vector<8x16x128xf32>
    %61 = arith.addf %58, %60 : vector<8x16x128xf32>
    %62 = vector.shape_cast %54 : vector<1x128xf32> to vector<1x1x128xf32>
    %63 = vector.broadcast %62 : vector<1x1x128xf32> to vector<8x16x128xf32>
    %64 = arith.addf %61, %63 : vector<8x16x128xf32>
    %cst_27 = arith.constant 0.000000e+00 : f32
    %65 = vector.broadcast %cst_27 : f32 to vector<8x16x128xf32>
    %66 = arith.maximumf %64, %65 : vector<8x16x128xf32>
    %67 = vector.shape_cast %66 : vector<8x16x128xf32> to vector<128x128xf32>
    %c0_28 = arith.constant 0 : index
    %c0_29 = arith.constant 0 : index
    %68 = vector.load %arg9[%c0_28, %c0_29] : memref<32x128xbf16, #tpu.memory_space<vmem>>, vector<32x128xbf16>
    %69 = arith.extf %68 : vector<32x128xbf16> to vector<32x128xf32>
    %c0_30 = arith.constant 0 : index
    %c0_31 = arith.constant 0 : index
    %70 = vector.load %arg10[%c0_30, %c0_31] : memref<1x128xbf16, #tpu.memory_space<vmem>>, vector<1x128xbf16>
    %71 = arith.extf %70 : vector<1x128xbf16> to vector<1x128xf32>
    %72 = vector.extract_strided_slice %67 {offsets = [0, 0], sizes = [128, 32], strides = [1, 1]} : vector<128x128xf32> to vector<128x32xf32>
    %cst_32 = arith.constant dense<0.000000e+00> : vector<128x128xf32>
    %73 = tpu.matmul %72, %69, %cst_32 {dimension_numbers = #tpu.dot_dimension_numbers<[1], [0], [0], [1], [0, 0, 1, 1], [], []>} : vector<128x32xf32>, vector<32x128xf32>, vector<128x128xf32> -> vector<128x128xf32>
    %74 = vector.shape_cast %73 : vector<128x128xf32> to vector<8x16x128xf32>
    "tpu.trace_start"() <{level = 10 : i32, message = "gnm,gmk->gnk"}> : () -> ()
    %cst_33 = arith.constant dense<0.000000e+00> : vector<8x16x128xf32>
    %75 = tpu.matmul %15, %74, %cst_33 {dimension_numbers = #tpu.dot_dimension_numbers<[2], [1], [1], [2], [0, 0, 0, 1, 1, 2], [0], [0]>} : vector<8x16x16xf32>, vector<8x16x128xf32>, vector<8x16x128xf32> -> vector<8x16x128xf32>
    "tpu.trace_stop"() : () -> ()
    %76 = vector.broadcast %16 : vector<8x16x1xf32> to vector<8x16x128xf32>
    %77 = arith.mulf %76, %74 : vector<8x16x128xf32>
    %78 = arith.addf %75, %77 : vector<8x16x128xf32>
    %79 = vector.shape_cast %71 : vector<1x128xf32> to vector<1x1x128xf32>
    %80 = vector.broadcast %79 : vector<1x1x128xf32> to vector<8x16x128xf32>
    %81 = arith.addf %78, %80 : vector<8x16x128xf32>
    %cst_34 = arith.constant 0.000000e+00 : f32
    %82 = vector.broadcast %cst_34 : f32 to vector<8x16x128xf32>
    %83 = arith.maximumf %81, %82 : vector<8x16x128xf32>
    %cst_35 = arith.constant dense<0.000000e+00> : vector<8x128xf32>
    %84 = vector.multi_reduction <add>, %83, %cst_35 [1] : vector<8x16x128xf32> to vector<8x128xf32>
    %cst_36 = arith.constant 1.600000e+01 : f32
    %85 = vector.broadcast %cst_36 : f32 to vector<8x128xf32>
    %86 = arith.divf %84, %85 : vector<8x128xf32>
    %87 = vector.extract_strided_slice %86 {offsets = [0, 0], sizes = [8, 32], strides = [1, 1]} : vector<8x128xf32> to vector<8x32xf32>
    %c0_37 = arith.constant 0 : index
    %c0_38 = arith.constant 0 : index
    %88 = vector.load %arg11[%c0_37, %c0_38] : memref<32x128xbf16, #tpu.memory_space<vmem>>, vector<32x128xbf16>
    %89 = arith.extf %88 : vector<32x128xbf16> to vector<32x128xf32>
    %cst_39 = arith.constant dense<0.000000e+00> : vector<8x128xf32>
    %90 = tpu.matmul %87, %89, %cst_39 {dimension_numbers = #tpu.dot_dimension_numbers<[1], [0], [0], [1], [0, 0, 1, 1], [], []>} : vector<8x32xf32>, vector<32x128xf32>, vector<8x128xf32> -> vector<8x128xf32>
    %91 = math.tanh %90 : vector<8x128xf32>
    %92 = vector.shape_cast %91 : vector<8x128xf32> to vector<8x1x128xf32>
    %93 = vector.broadcast %92 : vector<8x1x128xf32> to vector<8x16x128xf32>
    %94 = arith.mulf %83, %93 : vector<8x16x128xf32>
    %cst_40 = arith.constant dense<0.000000e+00> : vector<8x16xf32>
    %95 = vector.multi_reduction <add>, %94, %cst_40 [2] : vector<8x16x128xf32> to vector<8x16xf32>
    %96 = vector.shape_cast %95 : vector<8x16xf32> to vector<8x16x1xf32>
    %cst_41 = arith.constant 0.000000e+00 : f32
    %97 = vector.broadcast %cst_41 : f32 to vector<8x16x1xf32>
    %98 = arith.subf %97, %96 : vector<8x16x1xf32>
    %99 = math.exp %98 : vector<8x16x1xf32>
    %cst_42 = arith.constant 1.000000e+00 : f32
    %100 = vector.broadcast %cst_42 : f32 to vector<8x16x1xf32>
    %101 = arith.addf %100, %99 : vector<8x16x1xf32>
    %102 = tpu.reciprocal %101 {approx = true} : vector<8x16x1xf32> -> vector<8x16x1xf32>
    %103 = vector.broadcast %102 : vector<8x16x1xf32> to vector<8x16x128xf32>
    %104 = arith.mulf %103, %83 : vector<8x16x128xf32>
    %cst_43 = arith.constant dense<0.000000e+00> : vector<8x128xf32>
    %105 = vector.multi_reduction <add>, %104, %cst_43 [1] : vector<8x16x128xf32> to vector<8x128xf32>
    %106 = vector.extract_strided_slice %105 {offsets = [0, 0], sizes = [8, 32], strides = [1, 1]} : vector<8x128xf32> to vector<8x32xf32>
    %c0_44 = arith.constant 0 : index
    %c0_45 = arith.constant 0 : index
    %107 = vector.load %arg12[%c0_44, %c0_45] : memref<32x128xbf16, #tpu.memory_space<vmem>>, vector<32x128xbf16>
    %108 = arith.extf %107 : vector<32x128xbf16> to vector<32x128xf32>
    %cst_46 = arith.constant dense<0.000000e+00> : vector<8x128xf32>
    %109 = tpu.matmul %106, %108, %cst_46 {dimension_numbers = #tpu.dot_dimension_numbers<[1], [0], [0], [1], [0, 0, 1, 1], [], []>} : vector<8x32xf32>, vector<32x128xf32>, vector<8x128xf32> -> vector<8x128xf32>
    %c0_47 = arith.constant 0 : index
    %c0_48 = arith.constant 0 : index
    %110 = vector.load %arg13[%c0_47, %c0_48] : memref<1x128xbf16, #tpu.memory_space<vmem>>, vector<1x128xbf16>
    %111 = arith.extf %110 : vector<1x128xbf16> to vector<1x128xf32>
    %112 = vector.broadcast %111 : vector<1x128xf32> to vector<8x128xf32>
    %113 = arith.addf %109, %112 : vector<8x128xf32>
    %cst_49 = arith.constant 0.000000e+00 : f32
    %114 = vector.broadcast %cst_49 : f32 to vector<8x128xf32>
    %115 = arith.maximumf %113, %114 : vector<8x128xf32>
    %116 = vector.extract_strided_slice %115 {offsets = [0, 0], sizes = [8, 16], strides = [1, 1]} : vector<8x128xf32> to vector<8x16xf32>
    %c0_50 = arith.constant 0 : index
    %c0_51 = arith.constant 0 : index
    %117 = vector.load %arg14[%c0_50, %c0_51] : memref<16x128xbf16, #tpu.memory_space<vmem>>, vector<16x128xbf16>
    %118 = arith.extf %117 : vector<16x128xbf16> to vector<16x128xf32>
    %cst_52 = arith.constant dense<0.000000e+00> : vector<8x128xf32>
    %119 = tpu.matmul %116, %118, %cst_52 {dimension_numbers = #tpu.dot_dimension_numbers<[1], [0], [0], [1], [0, 0, 1, 1], [], []>} : vector<8x16xf32>, vector<16x128xf32>, vector<8x128xf32> -> vector<8x128xf32>
    %c0_53 = arith.constant 0 : index
    %c0_54 = arith.constant 0 : index
    %120 = vector.load %arg15[%c0_53, %c0_54] : memref<1x128xbf16, #tpu.memory_space<vmem>>, vector<1x128xbf16>
    %121 = arith.extf %120 : vector<1x128xbf16> to vector<1x128xf32>
    %122 = vector.broadcast %121 : vector<1x128xf32> to vector<8x128xf32>
    %123 = arith.addf %119, %122 : vector<8x128xf32>
    %124 = tpu.iota {dimensions = array<i32: 1>} : vector<8x128xi32>
    %c4_i32 = arith.constant 4 : i32
    %125 = vector.broadcast %c4_i32 : i32 to vector<8x128xi32>
    %126 = arith.cmpi slt, %124, %125 : vector<8x128xi32>
    %cst_55 = arith.constant -1.000000e+30 : f32
    %127 = vector.broadcast %cst_55 : f32 to vector<8x128xf32>
    %128 = arith.select %126, %123, %127 : vector<8x128xi1>, vector<8x128xf32>
    %cst_56 = arith.constant dense<0xFF800000> : vector<8xf32>
    %129 = vector.multi_reduction <maximumf>, %128, %cst_56 [1] : vector<8x128xf32> to vector<8xf32>
    %130 = vector.shape_cast %129 : vector<8xf32> to vector<8x1xf32>
    %131 = vector.broadcast %130 : vector<8x1xf32> to vector<8x128xf32>
    %132 = arith.subf %128, %131 : vector<8x128xf32>
    %133 = math.exp %132 : vector<8x128xf32>
    %cst_57 = arith.constant dense<0.000000e+00> : vector<8xf32>
    %134 = vector.multi_reduction <add>, %133, %cst_57 [1] : vector<8x128xf32> to vector<8xf32>
    %135 = vector.shape_cast %134 : vector<8xf32> to vector<8x1xf32>
    %136 = math.log %135 : vector<8x1xf32>
    %137 = vector.broadcast %136 : vector<8x1xf32> to vector<8x128xf32>
    %138 = arith.subf %132, %137 : vector<8x128xf32>
    %c0_58 = arith.constant 0 : index
    %c0_59 = arith.constant 0 : index
    %139 = vector.load %arg16[%c0_58, %c0_59] : memref<8x128xf32, #tpu.memory_space<vmem>>, vector<8x128xf32>
    tpu.vector_store %arg16[%c0_58, %c0_59], %138 {strides = array<i32>} : memref<8x128xf32, #tpu.memory_space<vmem>>, vector<8x128xf32>,
    return
  }
  func.func @transform_0(%arg0: i32) -> (i32, i32, i32) {
    %c0_i32 = arith.constant 0 : i32
    %c0_i32_0 = arith.constant 0 : i32
    %c0_i32_1 = arith.constant 0 : i32
    return %arg0, %c0_i32, %c0_i32_0 : i32, i32, i32
  }
  func.func @transform_1(%arg0: i32) -> (i32, i32) {
    %c0_i32 = arith.constant 0 : i32
    %c0_i32_0 = arith.constant 0 : i32
    return %arg0, %c0_i32 : i32, i32
  }
  func.func @transform_2(%arg0: i32) -> (i32, i32) {
    %c0_i32 = arith.constant 0 : i32
    %c0_i32_0 = arith.constant 0 : i32
    %c0_i32_1 = arith.constant 0 : i32
    return %c0_i32, %c0_i32_0 : i32, i32
  }
  func.func @transform_3(%arg0: i32) -> (i32, i32) {
    %c0_i32 = arith.constant 0 : i32
    %c0_i32_0 = arith.constant 0 : i32
    %c0_i32_1 = arith.constant 0 : i32
    return %c0_i32, %c0_i32_0 : i32, i32
  }
  func.func @transform_4(%arg0: i32) -> (i32, i32) {
    %c0_i32 = arith.constant 0 : i32
    %c0_i32_0 = arith.constant 0 : i32
    %c0_i32_1 = arith.constant 0 : i32
    return %c0_i32, %c0_i32_0 : i32, i32
  }
  func.func @transform_5(%arg0: i32) -> (i32, i32) {
    %c0_i32 = arith.constant 0 : i32
    %c0_i32_0 = arith.constant 0 : i32
    %c0_i32_1 = arith.constant 0 : i32
    return %c0_i32, %c0_i32_0 : i32, i32
  }
  func.func @transform_6(%arg0: i32) -> (i32, i32) {
    %c0_i32 = arith.constant 0 : i32
    %c0_i32_0 = arith.constant 0 : i32
    %c0_i32_1 = arith.constant 0 : i32
    return %c0_i32, %c0_i32_0 : i32, i32
  }
  func.func @transform_7(%arg0: i32) -> (i32, i32) {
    %c0_i32 = arith.constant 0 : i32
    %c0_i32_0 = arith.constant 0 : i32
    %c0_i32_1 = arith.constant 0 : i32
    return %c0_i32, %c0_i32_0 : i32, i32
  }
  func.func @transform_8(%arg0: i32) -> (i32, i32) {
    %c0_i32 = arith.constant 0 : i32
    %c0_i32_0 = arith.constant 0 : i32
    %c0_i32_1 = arith.constant 0 : i32
    return %c0_i32, %c0_i32_0 : i32, i32
  }
  func.func @transform_9(%arg0: i32) -> (i32, i32) {
    %c0_i32 = arith.constant 0 : i32
    %c0_i32_0 = arith.constant 0 : i32
    %c0_i32_1 = arith.constant 0 : i32
    return %c0_i32, %c0_i32_0 : i32, i32
  }
  func.func @transform_10(%arg0: i32) -> (i32, i32) {
    %c0_i32 = arith.constant 0 : i32
    %c0_i32_0 = arith.constant 0 : i32
    %c0_i32_1 = arith.constant 0 : i32
    return %c0_i32, %c0_i32_0 : i32, i32
  }
  func.func @transform_11(%arg0: i32) -> (i32, i32) {
    %c0_i32 = arith.constant 0 : i32
    %c0_i32_0 = arith.constant 0 : i32
    %c0_i32_1 = arith.constant 0 : i32
    return %c0_i32, %c0_i32_0 : i32, i32
  }
  func.func @transform_12(%arg0: i32) -> (i32, i32) {
    %c0_i32 = arith.constant 0 : i32
    %c0_i32_0 = arith.constant 0 : i32
    %c0_i32_1 = arith.constant 0 : i32
    return %c0_i32, %c0_i32_0 : i32, i32
  }
  func.func @transform_13(%arg0: i32) -> (i32, i32) {
    %c0_i32 = arith.constant 0 : i32
    %c0_i32_0 = arith.constant 0 : i32
    %c0_i32_1 = arith.constant 0 : i32
    return %c0_i32, %c0_i32_0 : i32, i32
  }
  func.func @transform_14(%arg0: i32) -> (i32, i32) {
    %c0_i32 = arith.constant 0 : i32
    %c0_i32_0 = arith.constant 0 : i32
    %c0_i32_1 = arith.constant 0 : i32
    return %c0_i32, %c0_i32_0 : i32, i32
  }
  func.func @transform_15(%arg0: i32) -> (i32, i32) {
    %c0_i32 = arith.constant 0 : i32
    %c0_i32_0 = arith.constant 0 : i32
    return %arg0, %c0_i32 : i32, i32
  }
}

</mosaic_0001>

<llo_original>
// kernel: gcn_cn_v2_forward.1
$region0: #{gcn_cn_v2_forward.1}
  #allocation0 [shape = 'u32[]', space=smem, size = 0x4, offset = 0x4, fixed_abs, tag = 'smem constant byte address 0x4 - core index']
  #allocation1 [shape = 'u32[144,128]{1,0:T(1,128)}', space=vmem, size = 0x12000, scoped, tag = 'internal scratch']
  %s0 = inlined_call_operand.vmem [shape: bf16[32,16,16], index: 0, kind: input, shape index: {}]
  %s1 = inlined_call_operand.vmem [shape: f32[512,32], index: 1, kind: input, shape index: {}]
  %s2 = inlined_call_operand.vmem [shape: bf16[32,128], index: 2, kind: input, shape index: {}]
  %s3 = inlined_call_operand.vmem [shape: bf16[1,128], index: 3, kind: input, shape index: {}]
  %s4 = inlined_call_operand.vmem [shape: bf16[64,128], index: 4, kind: input, shape index: {}]
  %s5 = inlined_call_operand.vmem [shape: bf16[1,128], index: 5, kind: input, shape index: {}]
  %s6 = inlined_call_operand.vmem [shape: bf16[64,128], index: 6, kind: input, shape index: {}]
  %s7 = inlined_call_operand.vmem [shape: bf16[1,128], index: 7, kind: input, shape index: {}]
  %s8 = inlined_call_operand.vmem [shape: bf16[32,128], index: 8, kind: input, shape index: {}]
  %s9 = inlined_call_operand.vmem [shape: bf16[1,128], index: 9, kind: input, shape index: {}]
  %s10 = inlined_call_operand.vmem [shape: bf16[32,128], index: 10, kind: input, shape index: {}]
  %s11 = inlined_call_operand.vmem [shape: bf16[32,128], index: 11, kind: input, shape index: {}]
  %s12 = inlined_call_operand.vmem [shape: bf16[1,128], index: 12, kind: input, shape index: {}]
  %s13 = inlined_call_operand.vmem [shape: bf16[16,128], index: 13, kind: input, shape index: {}]
  %s14 = inlined_call_operand.vmem [shape: bf16[1,128], index: 14, kind: input, shape index: {}]
  %s15 = inlined_call_operand.vmem [shape: f32[32,128], index: 15, kind: output, shape index: {}]
  %s16 = sld [smem:[#allocation0]]
  $region93: #{gcn_cn_v2_forward.1} parent=0
    _
  %s18 = ssub.s32 1, %s16
  %s19 = scalar_select 0, %s18, %s16
  loop: start=0, step=1, limit=6
  $region2: #{gcn_cn_v2_forward.1} parent=0 // loop_pre_header
    _
  $region3: #{gcn_cn_v2_forward.1} parent=0 // loop_header
    %s21 = sphi 0, %s25
    %p22 = scmp.ge.s32.totalorder %s21, 6
    %s31 = sphi 0, %s33
    %s34 = sphi 0, %s31
    %s35 = sphi 0, %s34
    %s51 = sphi 0, %s35
    %s57 = sphi 0, %s59
    %s60 = sphi 0, %s57
    %s61 = sphi 0, %s60
    %s77 = sphi 0, %s61
    %s81 = sphi 0, %s81
    %s83 = sphi 0, %s81
    %s84 = sphi 0, %s83
    %s98 = sphi 0, %s84
    %s102 = sphi 0, %s102
    %s104 = sphi 0, %s102
    %s105 = sphi 0, %s104
    %s119 = sphi 0, %s105
    %s123 = sphi 0, %s123
    %s125 = sphi 0, %s123
    %s126 = sphi 0, %s125
    %s140 = sphi 0, %s126
    %s144 = sphi 0, %s144
    %s146 = sphi 0, %s144
    %s147 = sphi 0, %s146
    %s161 = sphi 0, %s147
    %s165 = sphi 0, %s165
    %s167 = sphi 0, %s165
    %s168 = sphi 0, %s167
    %s182 = sphi 0, %s168
    %s186 = sphi 0, %s186
    %s188 = sphi 0, %s186
    %s189 = sphi 0, %s188
    %s203 = sphi 0, %s189
    %s207 = sphi 0, %s207
    %s209 = sphi 0, %s207
    %s210 = sphi 0, %s209
    %s224 = sphi 0, %s210
    %s228 = sphi 0, %s228
    %s230 = sphi 0, %s228
    %s231 = sphi 0, %s230
    %s245 = sphi 0, %s231
    %s249 = sphi 0, %s249
    %s251 = sphi 0, %s249
    %s252 = sphi 0, %s251
    %s266 = sphi 0, %s252
    %s270 = sphi 0, %s270
    %s272 = sphi 0, %s270
    %s273 = sphi 0, %s272
    %s287 = sphi 0, %s273
    %s291 = sphi 0, %s291
    %s293 = sphi 0, %s291
    %s294 = sphi 0, %s293
    %s308 = sphi 0, %s294
    %s312 = sphi 0, %s312
    %s314 = sphi 0, %s312
    %s315 = sphi 0, %s314
    %s329 = sphi 0, %s315
    %s333 = sphi 0, %s333
    %s335 = sphi 0, %s333
    %s336 = sphi 0, %s335
    %s350 = sphi 0, %s336
    %s356 = sphi 0, %s358
    %s359 = sphi 0, %s356
    %s360 = sphi 0, %s359
    %s376 = sphi 0, %s360
  $region4: #{gcn_cn_v2_forward.1} parent=0 // loop_header_branch
    %24 = sbr.rel (%p22) target = $region8
  $region5: #{gcn_cn_v2_forward.1} parent=0 // loop_body
    %s26 = ssub.s32 %s21, 1
    %s27 = ssub.s32 %s21, 2
    %s28 = sadd.s32 %s21, 1
    %s29 = ssub.s32 %s21, %s28
    %p30 = scmp.eq.s32.totalorder %s29, 0
    %s32 = sadd.s32 %s31, 1
    %s33 = scalar_select %p30, %s31, %s32
    %p36 = pneg %p30
    %p37 = scmp.eq.s32.totalorder %s21, 3
    %p38 = por %p36, %p37
    %p39 = scmp.ne.s32.totalorder %s31, %s34
    %p40 = scmp.eq.s32.totalorder %s21, 0
    %p41 = por %p39, %p40
    %p42 = scmp.ne.s32.totalorder %s31, %s34
    %p43 = scmp.eq.s32.totalorder %s26, 3
    %p44 = por %p42, %p43
    %p45 = scmp.ne.s32.totalorder %s34, %s35
    %p46 = scmp.eq.s32.totalorder %s26, 0
    %p47 = por %p45, %p46
    %p48 = scmp.ne.s32.totalorder %s34, %s35
    %p49 = scmp.eq.s32.totalorder %s27, 3
    %p50 = por %p48, %p49
    %p52 = scmp.ne.s32.totalorder %s35, %s51
    %p53 = scmp.eq.s32.totalorder %s27, 0
    %p54 = por %p52, %p53
    %s55 = ssub.s32 %s21, %s28
    %p56 = scmp.eq.s32.totalorder %s55, 0
    %s58 = sadd.s32 %s57, 1
    %s59 = scalar_select %p56, %s57, %s58
    %p62 = pneg %p56
    %p63 = scmp.eq.s32.totalorder %s21, 3
    %p64 = por %p62, %p63
    %p65 = scmp.ne.s32.totalorder %s57, %s60
    %p66 = scmp.eq.s32.totalorder %s21, 0
    %p67 = por %p65, %p66
    %p68 = scmp.ne.s32.totalorder %s57, %s60
    %p69 = scmp.eq.s32.totalorder %s26, 3
    %p70 = por %p68, %p69
    %p71 = scmp.ne.s32.totalorder %s60, %s61
    %p72 = scmp.eq.s32.totalorder %s26, 0
    %p73 = por %p71, %p72
    %p74 = scmp.ne.s32.totalorder %s60, %s61
    %p75 = scmp.eq.s32.totalorder %s27, 3
    %p76 = por %p74, %p75
    %p78 = scmp.ne.s32.totalorder %s61, %s77
    %p79 = scmp.eq.s32.totalorder %s27, 0
    %p80 = por %p78, %p79
    %s82 = sadd.s32 %s81, 1
    %p85 = scmp.eq.s32.totalorder %s21, 3
    %p86 = scmp.ne.s32.totalorder %s81, %s83
    %p87 = scmp.eq.s32.totalorder %s21, 0
    %p88 = por %p86, %p87
    %p89 = scmp.ne.s32.totalorder %s81, %s83
    %p90 = scmp.eq.s32.totalorder %s26, 3
    %p91 = por %p89, %p90
    %p92 = scmp.ne.s32.totalorder %s83, %s84
    %p93 = scmp.eq.s32.totalorder %s26, 0
    %p94 = por %p92, %p93
    %p95 = scmp.ne.s32.totalorder %s83, %s84
    %p96 = scmp.eq.s32.totalorder %s27, 3
    %p97 = por %p95, %p96
    %p99 = scmp.ne.s32.totalorder %s84, %s98
    %p100 = scmp.eq.s32.totalorder %s27, 0
    %p101 = por %p99, %p100
    %s103 = sadd.s32 %s102, 1
    %p106 = scmp.eq.s32.totalorder %s21, 3
    %p107 = scmp.ne.s32.totalorder %s102, %s104
    %p108 = scmp.eq.s32.totalorder %s21, 0
    %p109 = por %p107, %p108
    %p110 = scmp.ne.s32.totalorder %s102, %s104
    %p111 = scmp.eq.s32.totalorder %s26, 3
    %p112 = por %p110, %p111
    %p113 = scmp.ne.s32.totalorder %s104, %s105
    %p114 = scmp.eq.s32.totalorder %s26, 0
    %p115 = por %p113, %p114
    %p116 = scmp.ne.s32.totalorder %s104, %s105
    %p117 = scmp.eq.s32.totalorder %s27, 3
    %p118 = por %p116, %p117
    %p120 = scmp.ne.s32.totalorder %s105, %s119
    %p121 = scmp.eq.s32.totalorder %s27, 0
    %p122 = por %p120, %p121
    %s124 = sadd.s32 %s123, 1
    %p127 = scmp.eq.s32.totalorder %s21, 3
    %p128 = scmp.ne.s32.totalorder %s123, %s125
    %p129 = scmp.eq.s32.totalorder %s21, 0
    %p130 = por %p128, %p129
    %p131 = scmp.ne.s32.totalorder %s123, %s125
    %p132 = scmp.eq.s32.totalorder %s26, 3
    %p133 = por %p131, %p132
    %p134 = scmp.ne.s32.totalorder %s125, %s126
    %p135 = scmp.eq.s32.totalorder %s26, 0
    %p136 = por %p134, %p135
    %p137 = scmp.ne.s32.totalorder %s125, %s126
    %p138 = scmp.eq.s32.totalorder %s27, 3
    %p139 = por %p137, %p138
    %p141 = scmp.ne.s32.totalorder %s126, %s140
    %p142 = scmp.eq.s32.totalorder %s27, 0
    %p143 = por %p141, %p142
    %s145 = sadd.s32 %s144, 1
    %p148 = scmp.eq.s32.totalorder %s21, 3
    %p149 = scmp.ne.s32.totalorder %s144, %s146
    %p150 = scmp.eq.s32.totalorder %s21, 0
    %p151 = por %p149, %p150
    %p152 = scmp.ne.s32.totalorder %s144, %s146
    %p153 = scmp.eq.s32.totalorder %s26, 3
    %p154 = por %p152, %p153
    %p155 = scmp.ne.s32.totalorder %s146, %s147
    %p156 = scmp.eq.s32.totalorder %s26, 0
    %p157 = por %p155, %p156
    %p158 = scmp.ne.s32.totalorder %s146, %s147
    %p159 = scmp.eq.s32.totalorder %s27, 3
    %p160 = por %p158, %p159
    %p162 = scmp.ne.s32.totalorder %s147, %s161
    %p163 = scmp.eq.s32.totalorder %s27, 0
    %p164 = por %p162, %p163
    %s166 = sadd.s32 %s165, 1
    %p169 = scmp.eq.s32.totalorder %s21, 3
    %p170 = scmp.ne.s32.totalorder %s165, %s167
    %p171 = scmp.eq.s32.totalorder %s21, 0
    %p172 = por %p170, %p171
    %p173 = scmp.ne.s32.totalorder %s165, %s167
    %p174 = scmp.eq.s32.totalorder %s26, 3
    %p175 = por %p173, %p174
    %p176 = scmp.ne.s32.totalorder %s167, %s168
    %p177 = scmp.eq.s32.totalorder %s26, 0
    %p178 = por %p176, %p177
    %p179 = scmp.ne.s32.totalorder %s167, %s168
    %p180 = scmp.eq.s32.totalorder %s27, 3
    %p181 = por %p179, %p180
    %p183 = scmp.ne.s32.totalorder %s168, %s182
    %p184 = scmp.eq.s32.totalorder %s27, 0
    %p185 = por %p183, %p184
    %s187 = sadd.s32 %s186, 1
    %p190 = scmp.eq.s32.totalorder %s21, 3
    %p191 = scmp.ne.s32.totalorder %s186, %s188
    %p192 = scmp.eq.s32.totalorder %s21, 0
    %p193 = por %p191, %p192
    %p194 = scmp.ne.s32.totalorder %s186, %s188
    %p195 = scmp.eq.s32.totalorder %s26, 3
    %p196 = por %p194, %p195
    %p197 = scmp.ne.s32.totalorder %s188, %s189
    %p198 = scmp.eq.s32.totalorder %s26, 0
    %p199 = por %p197, %p198
    %p200 = scmp.ne.s32.totalorder %s188, %s189
    %p201 = scmp.eq.s32.totalorder %s27, 3
    %p202 = por %p200, %p201
    %p204 = scmp.ne.s32.totalorder %s189, %s203
    %p205 = scmp.eq.s32.totalorder %s27, 0
    %p206 = por %p204, %p205
    %s208 = sadd.s32 %s207, 1
    %p211 = scmp.eq.s32.totalorder %s21, 3
    %p212 = scmp.ne.s32.totalorder %s207, %s209
    %p213 = scmp.eq.s32.totalorder %s21, 0
    %p214 = por %p212, %p213
    %p215 = scmp.ne.s32.totalorder %s207, %s209
    %p216 = scmp.eq.s32.totalorder %s26, 3
    %p217 = por %p215, %p216
    %p218 = scmp.ne.s32.totalorder %s209, %s210
    %p219 = scmp.eq.s32.totalorder %s26, 0
    %p220 = por %p218, %p219
    %p221 = scmp.ne.s32.totalorder %s209, %s210
    %p222 = scmp.eq.s32.totalorder %s27, 3
    %p223 = por %p221, %p222
    %p225 = scmp.ne.s32.totalorder %s210, %s224
    %p226 = scmp.eq.s32.totalorder %s27, 0
    %p227 = por %p225, %p226
    %s229 = sadd.s32 %s228, 1
    %p232 = scmp.eq.s32.totalorder %s21, 3
    %p233 = scmp.ne.s32.totalorder %s228, %s230
    %p234 = scmp.eq.s32.totalorder %s21, 0
    %p235 = por %p233, %p234
    %p236 = scmp.ne.s32.totalorder %s228, %s230
    %p237 = scmp.eq.s32.totalorder %s26, 3
    %p238 = por %p236, %p237
    %p239 = scmp.ne.s32.totalorder %s230, %s231
    %p240 = scmp.eq.s32.totalorder %s26, 0
    %p241 = por %p239, %p240
    %p242 = scmp.ne.s32.totalorder %s230, %s231
    %p243 = scmp.eq.s32.totalorder %s27, 3
    %p244 = por %p242, %p243
    %p246 = scmp.ne.s32.totalorder %s231, %s245
    %p247 = scmp.eq.s32.totalorder %s27, 0
    %p248 = por %p246, %p247
    %s250 = sadd.s32 %s249, 1
    %p253 = scmp.eq.s32.totalorder %s21, 3
    %p254 = scmp.ne.s32.totalorder %s249, %s251
    %p255 = scmp.eq.s32.totalorder %s21, 0
    %p256 = por %p254, %p255
    %p257 = scmp.ne.s32.totalorder %s249, %s251
    %p258 = scmp.eq.s32.totalorder %s26, 3
    %p259 = por %p257, %p258
    %p260 = scmp.ne.s32.totalorder %s251, %s252
    %p261 = scmp.eq.s32.totalorder %s26, 0
    %p262 = por %p260, %p261
    %p263 = scmp.ne.s32.totalorder %s251, %s252
    %p264 = scmp.eq.s32.totalorder %s27, 3
    %p265 = por %p263, %p264
    %p267 = scmp.ne.s32.totalorder %s252, %s266
    %p268 = scmp.eq.s32.totalorder %s27, 0
    %p269 = por %p267, %p268
    %s271 = sadd.s32 %s270, 1
    %p274 = scmp.eq.s32.totalorder %s21, 3
    %p275 = scmp.ne.s32.totalorder %s270, %s272
    %p276 = scmp.eq.s32.totalorder %s21, 0
    %p277 = por %p275, %p276
    %p278 = scmp.ne.s32.totalorder %s270, %s272
    %p279 = scmp.eq.s32.totalorder %s26, 3
    %p280 = por %p278, %p279
    %p281 = scmp.ne.s32.totalorder %s272, %s273
    %p282 = scmp.eq.s32.totalorder %s26, 0
    %p283 = por %p281, %p282
    %p284 = scmp.ne.s32.totalorder %s272, %s273
    %p285 = scmp.eq.s32.totalorder %s27, 3
    %p286 = por %p284, %p285
    %p288 = scmp.ne.s32.totalorder %s273, %s287
    %p289 = scmp.eq.s32.totalorder %s27, 0
    %p290 = por %p288, %p289
    %s292 = sadd.s32 %s291, 1
    %p295 = scmp.eq.s32.totalorder %s21, 3
    %p296 = scmp.ne.s32.totalorder %s291, %s293
    %p297 = scmp.eq.s32.totalorder %s21, 0
    %p298 = por %p296, %p297
    %p299 = scmp.ne.s32.totalorder %s291, %s293
    %p300 = scmp.eq.s32.totalorder %s26, 3
    %p301 = por %p299, %p300
    %p302 = scmp.ne.s32.totalorder %s293, %s294
    %p303 = scmp.eq.s32.totalorder %s26, 0
    %p304 = por %p302, %p303
    %p305 = scmp.ne.s32.totalorder %s293, %s294
    %p306 = scmp.eq.s32.totalorder %s27, 3
    %p307 = por %p305, %p306
    %p309 = scmp.ne.s32.totalorder %s294, %s308
    %p310 = scmp.eq.s32.totalorder %s27, 0
    %p311 = por %p309, %p310
    %s313 = sadd.s32 %s312, 1
    %p316 = scmp.eq.s32.totalorder %s21, 3
    %p317 = scmp.ne.s32.totalorder %s312, %s314
    %p318 = scmp.eq.s32.totalorder %s21, 0
    %p319 = por %p317, %p318
    %p320 = scmp.ne.s32.totalorder %s312, %s314
    %p321 = scmp.eq.s32.totalorder %s26, 3
    %p322 = por %p320, %p321
    %p323 = scmp.ne.s32.totalorder %s314, %s315
    %p324 = scmp.eq.s32.totalorder %s26, 0
    %p325 = por %p323, %p324
    %p326 = scmp.ne.s32.totalorder %s314, %s315
    %p327 = scmp.eq.s32.totalorder %s27, 3
    %p328 = por %p326, %p327
    %p330 = scmp.ne.s32.totalorder %s315, %s329
    %p331 = scmp.eq.s32.totalorder %s27, 0
    %p332 = por %p330, %p331
    %s334 = sadd.s32 %s333, 1
    %p337 = scmp.eq.s32.totalorder %s21, 3
    %p338 = scmp.ne.s32.totalorder %s333, %s335
    %p339 = scmp.eq.s32.totalorder %s21, 0
    %p340 = por %p338, %p339
    %p341 = scmp.ne.s32.totalorder %s333, %s335
    %p342 = scmp.eq.s32.totalorder %s26, 3
    %p343 = por %p341, %p342
    %p344 = scmp.ne.s32.totalorder %s335, %s336
    %p345 = scmp.eq.s32.totalorder %s26, 0
    %p346 = por %p344, %p345
    %p347 = scmp.ne.s32.totalorder %s335, %s336
    %p348 = scmp.eq.s32.totalorder %s27, 3
    %p349 = por %p347, %p348
    %p351 = scmp.ne.s32.totalorder %s336, %s350
    %p352 = scmp.eq.s32.totalorder %s27, 0
    %p353 = por %p351, %p352
    %s354 = ssub.s32 %s21, %s28
    %p355 = scmp.eq.s32.totalorder %s354, 0
    %s357 = sadd.s32 %s356, 1
    %s358 = scalar_select %p355, %s356, %s357
    %p361 = pneg %p355
    %p362 = scmp.eq.s32.totalorder %s21, 3
    %p363 = por %p361, %p362
    %p364 = scmp.ne.s32.totalorder %s356, %s359
    %p365 = scmp.eq.s32.totalorder %s21, 0
    %p366 = por %p364, %p365
    %p367 = scmp.ne.s32.totalorder %s356, %s359
    %p368 = scmp.eq.s32.totalorder %s26, 3
    %p369 = por %p367, %p368
    %p370 = scmp.ne.s32.totalorder %s359, %s360
    %p371 = scmp.eq.s32.totalorder %s26, 0
    %p372 = por %p370, %p371
    %p373 = scmp.ne.s32.totalorder %s359, %s360
    %p374 = scmp.eq.s32.totalorder %s27, 3
    %p375 = por %p373, %p374
    %p377 = scmp.ne.s32.totalorder %s360, %s376
    %p378 = scmp.eq.s32.totalorder %s27, 0
    %p379 = por %p377, %p378
    %p380 = scmp.le.s32.totalorder 1, %s21
    %p381 = scmp.lt.s32.totalorder %s21, 5
    %p382 = pnand %p380, %p381
    %p383 = pneg %p382
    // Predicated region
    $region9: #{gcn_cn_v2_forward.1} parent=5 // pred_check
      _
    $region10: #{gcn_cn_v2_forward.1} parent=5 // pred_check_branch
      %385 = sbr.rel (%p382) target = $region12
    $region11: #{gcn_cn_v2_forward.1} parent=5 // pred_region
      %s386 = ssub.s32 %s21, 1
      // Predicated region
      $region13: #{gcn_cn_v2_forward.1} parent=11 // pred_check
        %p387 = pneg %p94
      $region14: #{gcn_cn_v2_forward.1} parent=11 // pred_check_branch
        %389 = sbr.rel (%p387) target = $region16
      $region15: #{gcn_cn_v2_forward.1} parent=11 // pred_region
        _
      $region16: #{gcn_cn_v2_forward.1} parent=11 // pred_fallthru
        _
      // Predicated region
      $region17: #{gcn_cn_v2_forward.1} parent=11 // pred_check
        %p390 = pneg %p115
      $region18: #{gcn_cn_v2_forward.1} parent=11 // pred_check_branch
        %392 = sbr.rel (%p390) target = $region20
      $region19: #{gcn_cn_v2_forward.1} parent=11 // pred_region
        _
      $region20: #{gcn_cn_v2_forward.1} parent=11 // pred_fallthru
        _
      // Predicated region
      $region21: #{gcn_cn_v2_forward.1} parent=11 // pred_check
        %p393 = pneg %p136
      $region22: #{gcn_cn_v2_forward.1} parent=11 // pred_check_branch
        %395 = sbr.rel (%p393) target = $region24
      $region23: #{gcn_cn_v2_forward.1} parent=11 // pred_region
        _
      $region24: #{gcn_cn_v2_forward.1} parent=11 // pred_fallthru
        _
      // Predicated region
      $region25: #{gcn_cn_v2_forward.1} parent=11 // pred_check
        %p396 = pneg %p157
      $region26: #{gcn_cn_v2_forward.1} parent=11 // pred_check_branch
        %398 = sbr.rel (%p396) target = $region28
      $region27: #{gcn_cn_v2_forward.1} parent=11 // pred_region
        _
      $region28: #{gcn_cn_v2_forward.1} parent=11 // pred_fallthru
        _
      // Predicated region
      $region29: #{gcn_cn_v2_forward.1} parent=11 // pred_check
        %p399 = pneg %p178
      $region30: #{gcn_cn_v2_forward.1} parent=11 // pred_check_branch
        %401 = sbr.rel (%p399) target = $region32
      $region31: #{gcn_cn_v2_forward.1} parent=11 // pred_region
        _
      $region32: #{gcn_cn_v2_forward.1} parent=11 // pred_fallthru
        _
      // Predicated region
      $region33: #{gcn_cn_v2_forward.1} parent=11 // pred_check
        %p402 = pneg %p199
      $region34: #{gcn_cn_v2_forward.1} parent=11 // pred_check_branch
        %404 = sbr.rel (%p402) target = $region36
      $region35: #{gcn_cn_v2_forward.1} parent=11 // pred_region
        _
      $region36: #{gcn_cn_v2_forward.1} parent=11 // pred_fallthru
        _
      // Predicated region
      $region37: #{gcn_cn_v2_forward.1} parent=11 // pred_check
        %p405 = pneg %p220
      $region38: #{gcn_cn_v2_forward.1} parent=11 // pred_check_branch
        %407 = sbr.rel (%p405) target = $region40
      $region39: #{gcn_cn_v2_forward.1} parent=11 // pred_region
        _
      $region40: #{gcn_cn_v2_forward.1} parent=11 // pred_fallthru
        _
      // Predicated region
      $region41: #{gcn_cn_v2_forward.1} parent=11 // pred_check
        %p408 = pneg %p241
      $region42: #{gcn_cn_v2_forward.1} parent=11 // pred_check_branch
        %410 = sbr.rel (%p408) target = $region44
      $region43: #{gcn_cn_v2_forward.1} parent=11 // pred_region
        _
      $region44: #{gcn_cn_v2_forward.1} parent=11 // pred_fallthru
        _
      // Predicated region
      $region45: #{gcn_cn_v2_forward.1} parent=11 // pred_check
        %p411 = pneg %p262
      $region46: #{gcn_cn_v2_forward.1} parent=11 // pred_check_branch
        %413 = sbr.rel (%p411) target = $region48
      $region47: #{gcn_cn_v2_forward.1} parent=11 // pred_region
        _
      $region48: #{gcn_cn_v2_forward.1} parent=11 // pred_fallthru
        _
      // Predicated region
      $region49: #{gcn_cn_v2_forward.1} parent=11 // pred_check
        %p414 = pneg %p283
      $region50: #{gcn_cn_v2_forward.1} parent=11 // pred_check_branch
        %416 = sbr.rel (%p414) target = $region52
      $region51: #{gcn_cn_v2_forward.1} parent=11 // pred_region
        _
      $region52: #{gcn_cn_v2_forward.1} parent=11 // pred_fallthru
        _
      // Predicated region
      $region53: #{gcn_cn_v2_forward.1} parent=11 // pred_check
        %p417 = pneg %p304
      $region54: #{gcn_cn_v2_forward.1} parent=11 // pred_check_branch
        %419 = sbr.rel (%p417) target = $region56
      $region55: #{gcn_cn_v2_forward.1} parent=11 // pred_region
        _
      $region56: #{gcn_cn_v2_forward.1} parent=11 // pred_fallthru
        _
      // Predicated region
      $region57: #{gcn_cn_v2_forward.1} parent=11 // pred_check
        %p420 = pneg %p325
      $region58: #{gcn_cn_v2_forward.1} parent=11 // pred_check_branch
        %422 = sbr.rel (%p420) target = $region60
      $region59: #{gcn_cn_v2_forward.1} parent=11 // pred_region
        _
      $region60: #{gcn_cn_v2_forward.1} parent=11 // pred_fallthru
        _
      // Predicated region
      $region61: #{gcn_cn_v2_forward.1} parent=11 // pred_check
        %p423 = pneg %p346
      $region62: #{gcn_cn_v2_forward.1} parent=11 // pred_check_branch
        %425 = sbr.rel (%p423) target = $region64
      $region63: #{gcn_cn_v2_forward.1} parent=11 // pred_region
        _
      $region64: #{gcn_cn_v2_forward.1} parent=11 // pred_fallthru
        _
    $region12: #{gcn_cn_v2_forward.1} parent=5 // pred_fallthru
      _
    %p426 = scmp.lt.s32.totalorder %s21, 4
    // Predicated region
    $region65: #{gcn_cn_v2_forward.1} parent=5 // pred_check
      %p427 = pneg %p426
    $region66: #{gcn_cn_v2_forward.1} parent=5 // pred_check_branch
      %429 = sbr.rel (%p427) target = $region68
    $region67: #{gcn_cn_v2_forward.1} parent=5 // pred_region
      // Predicated region
      $region69: #{gcn_cn_v2_forward.1} parent=67 // pred_check
        %p430 = pneg %p41
      $region70: #{gcn_cn_v2_forward.1} parent=67 // pred_check_branch
        %432 = sbr.rel (%p430) target = $region72
      $region71: #{gcn_cn_v2_forward.1} parent=67 // pred_region
        %s433 = smul.u32 8, %s21
        %p434 = scmp.lt.s32.totalorder %s433, 31
        %s435 = scalar_select %p434, %s433, 31
        %s436 = smul.addr %s435, 2
        %s437 = smul.addr %s436, 4
        %s438 = scalar_lea.vmem %s0, %s437
        %s439 = smul.u32 8, %s21
      $region72: #{gcn_cn_v2_forward.1} parent=67 // pred_fallthru
        _
      // Predicated region
      $region73: #{gcn_cn_v2_forward.1} parent=67 // pred_check
        %p440 = pneg %p67
      $region74: #{gcn_cn_v2_forward.1} parent=67 // pred_check_branch
        %442 = sbr.rel (%p440) target = $region76
      $region75: #{gcn_cn_v2_forward.1} parent=67 // pred_region
        %s443 = smul.u32 16, %s21
        %p444 = scmp.lt.s32.totalorder %s443, 63
        %s445 = scalar_select %p444, %s443, 63
        %s446 = smul.addr %s445, 8
        %s447 = scalar_lea.vmem %s1, %s446
        %s448 = smul.u32 16, %s21
      $region76: #{gcn_cn_v2_forward.1} parent=67 // pred_fallthru
        _
    $region68: #{gcn_cn_v2_forward.1} parent=5 // pred_fallthru
      _
    %p449 = scmp.le.s32.totalorder 1, %s21
    %p450 = scmp.lt.s32.totalorder %s21, 5
    %p451 = pnand %p449, %p450
    %p452 = pneg %p451
    // Predicated region
    $region77: #{gcn_cn_v2_forward.1} parent=5 // pred_check
      _
    $region78: #{gcn_cn_v2_forward.1} parent=5 // pred_check_branch
      %454 = sbr.rel (%p451) target = $region80
    $region79: #{gcn_cn_v2_forward.1} parent=5 // pred_region
      %s455 = ssub.s32 %s21, 1
      %s456 = smul.u32 8, %s26
      %p457 = scmp.lt.s32.totalorder %s456, 31
      %s458 = scalar_select %p457, %s456, 31
      %s459 = smul.addr %s458, 2
      %s460 = smul.addr %s459, 4
      %s461 = scalar_lea.vmem %s0, %s460
      %p462 = pneg %p47
      %p463 = pneg %p44
      %s464 = smul.u32 16, %s26
      %p465 = scmp.lt.s32.totalorder %s464, 63
      %s466 = scalar_select %p465, %s464, 63
      %s467 = smul.addr %s466, 8
      %s468 = scalar_lea.vmem %s1, %s467
      %p469 = pneg %p73
      %p470 = pneg %p70
      %p471 = pneg %p94
      %p472 = pneg %p91
      %p473 = pneg %p115
      %p474 = pneg %p112
      %p475 = pneg %p136
      %p476 = pneg %p133
      %p477 = pneg %p157
      %p478 = pneg %p154
      %p479 = pneg %p178
      %p480 = pneg %p175
      %p481 = pneg %p199
      %p482 = pneg %p196
      %p483 = pneg %p220
      %p484 = pneg %p217
      %p485 = pneg %p241
      %p486 = pneg %p238
      %p487 = pneg %p262
      %p488 = pneg %p259
      %p489 = pneg %p283
      %p490 = pneg %p280
      %p491 = pneg %p304
      %p492 = pneg %p301
      %p493 = pneg %p325
      %p494 = pneg %p322
      %p495 = pneg %p346
      %p496 = pneg %p343
      %p497 = pneg %p372
      %p498 = pneg %p369
      %p499 = scmp.lt.s32.totalorder %s26, 3
      %s500 = scalar_select %p499, %s26, 3
      %s501 = smul.addr %s500, 8
      %s502 = scalar_lea.vmem %s15, %s501
      %s503 = smul.u32 8, %s26
      %p504 = scmp.lt.s32.totalorder %s503, 31
      %s505 = scalar_select %p504, %s503, 31
      %s506 = smul.addr %s505, 2
      %s507 = smul.addr %s506, 4
      %s508 = scalar_lea.vmem %s0, %s507
      %s509 = smul.u32 8, %s26
      %s510 = smul.u32 16, %s26
      %p511 = scmp.lt.s32.totalorder %s510, 63
      %s512 = scalar_select %p511, %s510, 63
      %s513 = smul.addr %s512, 8
      %s514 = scalar_lea.vmem %s1, %s513
      %s515 = smul.u32 16, %s26
      %p516 = scmp.lt.s32.totalorder %s26, 3
      %s517 = scalar_select %p516, %s26, 3
      %s518 = smul.addr %s517, 8
      %s519 = scalar_lea.vmem %s15, %s518
      %v520 = vld [vmem:[%s508] sm:$0xf]
      %v521 = vld [vmem:[%s508 + $0x4] sm:$0xf]
      %v522 = vld [vmem:[%s508 + $0x8] sm:$0xf]
      %v523 = vld [vmem:[%s508 + $0xc] sm:$0xf]
      %v524 = vld [vmem:[%s508 + $0x10] sm:$0xf]
      %v525 = vld [vmem:[%s508 + $0x14] sm:$0xf]
      %v526 = vld [vmem:[%s508 + $0x18] sm:$0xf]
      %v527 = vld [vmem:[%s508 + $0x1c] sm:$0xf]
      %v528 = vld [vmem:[%s508 + $0x20] sm:$0xf]
      %v529 = vld [vmem:[%s508 + $0x24] sm:$0xf]
      %v530 = vld [vmem:[%s508 + $0x28] sm:$0xf]
      %v531 = vld [vmem:[%s508 + $0x2c] sm:$0xf]
      %v532 = vld [vmem:[%s508 + $0x30] sm:$0xf]
      %v533 = vld [vmem:[%s508 + $0x34] sm:$0xf]
      %v534 = vld [vmem:[%s508 + $0x38] sm:$0xf]
      %v535 = vld [vmem:[%s508 + $0x3c] sm:$0xf]
      %v536 = vunpack.c.l.bf16 %v520
      %v537 = vunpack.c.l.bf16 %v521
      %v538 = vunpack.c.l.bf16 %v522
      %v539 = vunpack.c.l.bf16 %v523
      %v540 = vunpack.c.l.bf16 %v524
      %v541 = vunpack.c.l.bf16 %v525
      %v542 = vunpack.c.l.bf16 %v526
      %v543 = vunpack.c.l.bf16 %v527
      %v544 = vunpack.c.l.bf16 %v528
      %v545 = vunpack.c.l.bf16 %v529
      %v546 = vunpack.c.l.bf16 %v530
      %v547 = vunpack.c.l.bf16 %v531
      %v548 = vunpack.c.l.bf16 %v532
      %v549 = vunpack.c.l.bf16 %v533
      %v550 = vunpack.c.l.bf16 %v534
      %v551 = vunpack.c.l.bf16 %v535
      %vm552 = vcmask 130048
      %v553 = vsel %vm552, %v536, 0.0
      %554 = vadd.xlane.f32.xlu0 %v553
      %v555 = vpop.xlane.xlu0 %554
      %v556 = vsel %vm552, %v537, 0.0
      %557 = vadd.xlane.f32.xlu0 %v556
      %v558 = vpop.xlane.xlu0 %557
      %v559 = vsel %vm552, %v538, 0.0
      %560 = vadd.xlane.f32.xlu0 %v559
      %v561 = vpop.xlane.xlu0 %560
      %v562 = vsel %vm552, %v539, 0.0
      %563 = vadd.xlane.f32.xlu0 %v562
      %v564 = vpop.xlane.xlu0 %563
      %v565 = vsel %vm552, %v540, 0.0
      %566 = vadd.xlane.f32.xlu0 %v565
      %v567 = vpop.xlane.xlu0 %566
      %v568 = vsel %vm552, %v541, 0.0
      %569 = vadd.xlane.f32.xlu0 %v568
      %v570 = vpop.xlane.xlu0 %569
      %v571 = vsel %vm552, %v542, 0.0
      %572 = vadd.xlane.f32.xlu0 %v571
      %v573 = vpop.xlane.xlu0 %572
      %v574 = vsel %vm552, %v543, 0.0
      %575 = vadd.xlane.f32.xlu0 %v574
      %v576 = vpop.xlane.xlu0 %575
      %v577 = vsel %vm552, %v544, 0.0
      %578 = vadd.xlane.f32.xlu0 %v577
      %v579 = vpop.xlane.xlu0 %578
      %v580 = vsel %vm552, %v545, 0.0
      %581 = vadd.xlane.f32.xlu0 %v580
      %v582 = vpop.xlane.xlu0 %581
      %v583 = vsel %vm552, %v546, 0.0
      %584 = vadd.xlane.f32.xlu0 %v583
      %v585 = vpop.xlane.xlu0 %584
      %v586 = vsel %vm552, %v547, 0.0
      %587 = vadd.xlane.f32.xlu0 %v586
      %v588 = vpop.xlane.xlu0 %587
      %v589 = vsel %vm552, %v548, 0.0
      %590 = vadd.xlane.f32.xlu0 %v589
      %v591 = vpop.xlane.xlu0 %590
      %v592 = vsel %vm552, %v549, 0.0
      %593 = vadd.xlane.f32.xlu0 %v592
      %v594 = vpop.xlane.xlu0 %593
      %v595 = vsel %vm552, %v550, 0.0
      %596 = vadd.xlane.f32.xlu0 %v595
      %v597 = vpop.xlane.xlu0 %596
      %v598 = vsel %vm552, %v551, 0.0
      %599 = vadd.xlane.f32.xlu0 %v598
      %v600 = vpop.xlane.xlu0 %599
      %v601 = vadd.f32 %v555, 1.0
      %v602 = vadd.f32 %v558, 1.0
      %v603 = vadd.f32 %v561, 1.0
      %v604 = vadd.f32 %v564, 1.0
      %v605 = vadd.f32 %v567, 1.0
      %v606 = vadd.f32 %v570, 1.0
      %v607 = vadd.f32 %v573, 1.0
      %v608 = vadd.f32 %v576, 1.0
      %v609 = vadd.f32 %v579, 1.0
      %v610 = vadd.f32 %v582, 1.0
      %v611 = vadd.f32 %v585, 1.0
      %v612 = vadd.f32 %v588, 1.0
      %v613 = vadd.f32 %v591, 1.0
      %v614 = vadd.f32 %v594, 1.0
      %v615 = vadd.f32 %v597, 1.0
      %v616 = vadd.f32 %v600, 1.0
      %v617 = vadd.f32 %v553, %v556
      %v618 = vrot.slane %v617, 4
      %v619 = vadd.f32 %v617, %v618
      %v620 = vrot.slane %v619, 2
      %v621 = vadd.f32 %v619, %v620
      %v622 = vrot.slane %v621, 1
      %v623 = vadd.f32 %v621, %v622
      %v624 = vadd.f32 %v559, %v562
      %v625 = vrot.slane %v624, 4
      %v626 = vadd.f32 %v624, %v625
      %v627 = vrot.slane %v626, 2
      %v628 = vadd.f32 %v626, %v627
      %v629 = vrot.slane %v628, 1
      %v630 = vadd.f32 %v628, %v629
      %v631 = vadd.f32 %v565, %v568
      %v632 = vrot.slane %v631, 4
      %v633 = vadd.f32 %v631, %v632
      %v634 = vrot.slane %v633, 2
      %v635 = vadd.f32 %v633, %v634
      %v636 = vrot.slane %v635, 1
      %v637 = vadd.f32 %v635, %v636
      %v638 = vadd.f32 %v571, %v574
      %v639 = vrot.slane %v638, 4
      %v640 = vadd.f32 %v638, %v639
      %v641 = vrot.slane %v640, 2
      %v642 = vadd.f32 %v640, %v641
      %v643 = vrot.slane %v642, 1
      %v644 = vadd.f32 %v642, %v643
      %v645 = vadd.f32 %v577, %v580
      %v646 = vrot.slane %v645, 4
      %v647 = vadd.f32 %v645, %v646
      %v648 = vrot.slane %v647, 2
      %v649 = vadd.f32 %v647, %v648
      %v650 = vrot.slane %v649, 1
      %v651 = vadd.f32 %v649, %v650
      %v652 = vadd.f32 %v583, %v586
      %v653 = vrot.slane %v652, 4
      %v654 = vadd.f32 %v652, %v653
      %v655 = vrot.slane %v654, 2
      %v656 = vadd.f32 %v654, %v655
      %v657 = vrot.slane %v656, 1
      %v658 = vadd.f32 %v656, %v657
      %v659 = vadd.f32 %v589, %v592
      %v660 = vrot.slane %v659, 4
      %v661 = vadd.f32 %v659, %v660
      %v662 = vrot.slane %v661, 2
      %v663 = vadd.f32 %v661, %v662
      %v664 = vrot.slane %v663, 1
      %v665 = vadd.f32 %v663, %v664
      %v666 = vadd.f32 %v595, %v598
      %v667 = vrot.slane %v666, 4
      %v668 = vadd.f32 %v666, %v667
      %v669 = vrot.slane %v668, 2
      %v670 = vadd.f32 %v668, %v669
      %v671 = vrot.slane %v670, 1
      %v672 = vadd.f32 %v670, %v671
      %v673 = vadd.f32 %v623, 1.0
      %v674 = vadd.f32 %v630, 1.0
      %v675 = vadd.f32 %v637, 1.0
      %v676 = vadd.f32 %v644, 1.0
      %v677 = vadd.f32 %v651, 1.0
      %v678 = vadd.f32 %v658, 1.0
      %v679 = vadd.f32 %v665, 1.0
      %v680 = vadd.f32 %v672, 1.0
      %v681 = vrsqrt.pop %v601
      %v682 = vrsqrt.pop %v602
      %v683 = vrsqrt.pop %v603
      %v684 = vrsqrt.pop %v604
      %v685 = vrsqrt.pop %v605
      %v686 = vrsqrt.pop %v606
      %v687 = vrsqrt.pop %v607
      %v688 = vrsqrt.pop %v608
      %v689 = vrsqrt.pop %v609
      %v690 = vrsqrt.pop %v610
      %v691 = vrsqrt.pop %v611
      %v692 = vrsqrt.pop %v612
      %v693 = vrsqrt.pop %v613
      %v694 = vrsqrt.pop %v614
      %v695 = vrsqrt.pop %v615
      %v696 = vrsqrt.pop %v616
      %v697 = vrsqrt.pop %v673
      %v698 = vrsqrt.pop %v674
      %v699 = vrsqrt.pop %v675
      %v700 = vrsqrt.pop %v676
      %v701 = vrsqrt.pop %v677
      %v702 = vrsqrt.pop %v678
      %v703 = vrsqrt.pop %v679
      %v704 = vrsqrt.pop %v680
      %v705 = vmul.f32 %v536, %v681
      %v706 = vmul.f32 %v537, %v682
      %v707 = vmul.f32 %v538, %v683
      %v708 = vmul.f32 %v539, %v684
      %v709 = vmul.f32 %v540, %v685
      %v710 = vmul.f32 %v541, %v686
      %v711 = vmul.f32 %v542, %v687
      %v712 = vmul.f32 %v543, %v688
      %v713 = vmul.f32 %v544, %v689
      %v714 = vmul.f32 %v545, %v690
      %v715 = vmul.f32 %v546, %v691
      %v716 = vmul.f32 %v547, %v692
      %v717 = vmul.f32 %v548, %v693
      %v718 = vmul.f32 %v549, %v694
      %v719 = vmul.f32 %v550, %v695
      %v720 = vmul.f32 %v551, %v696
      %v721 = vmul.f32 %v705, %v697
      %v722 = vmul.f32 %v706, %v697
      %v723 = vmul.f32 %v707, %v698
      %v724 = vmul.f32 %v708, %v698
      %v725 = vmul.f32 %v709, %v699
      %v726 = vmul.f32 %v710, %v699
      %v727 = vmul.f32 %v711, %v700
      %v728 = vmul.f32 %v712, %v700
      %v729 = vmul.f32 %v713, %v701
      %v730 = vmul.f32 %v714, %v701
      %v731 = vmul.f32 %v715, %v702
      %v732 = vmul.f32 %v716, %v702
      %v733 = vmul.f32 %v717, %v703
      %v734 = vmul.f32 %v718, %v703
      %v735 = vmul.f32 %v719, %v704
      %v736 = vmul.f32 %v720, %v704
      %v737 = vmul.f32 %v681, %v681
      %v738 = vmul.f32 %v682, %v682
      %v739 = vmul.f32 %v683, %v683
      %v740 = vmul.f32 %v684, %v684
      %v741 = vmul.f32 %v685, %v685
      %v742 = vmul.f32 %v686, %v686
      %v743 = vmul.f32 %v687, %v687
      %v744 = vmul.f32 %v688, %v688
      %v745 = vmul.f32 %v689, %v689
      %v746 = vmul.f32 %v690, %v690
      %v747 = vmul.f32 %v691, %v691
      %v748 = vmul.f32 %v692, %v692
      %v749 = vmul.f32 %v693, %v693
      %v750 = vmul.f32 %v694, %v694
      %v751 = vmul.f32 %v695, %v695
      %v752 = vmul.f32 %v696, %v696
      %v753 = vld [vmem:[%s514] sm:$0xff]
      %v754 = vld [vmem:[%s514 + $0x8] sm:$0xff]
      %v755 = vld [vmem:[%s514 + $0x10] sm:$0xff]
      %v756 = vld [vmem:[%s514 + $0x18] sm:$0xff]
      %v757 = vld [vmem:[%s514 + $0x20] sm:$0xff]
      %v758 = vld [vmem:[%s514 + $0x28] sm:$0xff]
      %v759 = vld [vmem:[%s514 + $0x30] sm:$0xff]
      %v760 = vld [vmem:[%s514 + $0x38] sm:$0xff]
      %v761 = vld [vmem:[%s514 + $0x40] sm:$0xff]
      %v762 = vld [vmem:[%s514 + $0x48] sm:$0xff]
      %v763 = vld [vmem:[%s514 + $0x50] sm:$0xff]
      %v764 = vld [vmem:[%s514 + $0x58] sm:$0xff]
      %v765 = vld [vmem:[%s514 + $0x60] sm:$0xff]
      %v766 = vld [vmem:[%s514 + $0x68] sm:$0xff]
      %v767 = vld [vmem:[%s514 + $0x70] sm:$0xff]
      %v768 = vld [vmem:[%s514 + $0x78] sm:$0xff]
      %v769 = vld [vmem:[%s2] sm:$0xf]
      %v770 = vld [vmem:[%s2 + $0x4] sm:$0xf]
      %v771 = vld [vmem:[%s2 + $0x8] sm:$0xf]
      %v772 = vld [vmem:[%s2 + $0xc] sm:$0xf]
      %v773 = vunpack.c.l.bf16 %v769
      %v774 = vunpack.c.l.bf16 %v770
      %v775 = vunpack.c.l.bf16 %v771
      %v776 = vunpack.c.l.bf16 %v772
      %v777 = vld [vmem:[%s3] sm:$0x1]
      %v778 = vunpack.c.l.bf16 %v777
      %vm779 = vcmask 261120
      %v781 = vsel %vm779, %v753, 0
      %v784 = vsel %vm779, %v754, 0
      %v787 = vsel %vm779, %v755, 0
      %v790 = vsel %vm779, %v756, 0
      %v793 = vsel %vm779, %v757, 0
      %v796 = vsel %vm779, %v758, 0
      %v799 = vsel %vm779, %v759, 0
      %v802 = vsel %vm779, %v760, 0
      %v805 = vsel %vm779, %v761, 0
      %v808 = vsel %vm779, %v762, 0
      %v811 = vsel %vm779, %v763, 0
      %v814 = vsel %vm779, %v764, 0
      %v817 = vsel %vm779, %v765, 0
      %v820 = vsel %vm779, %v766, 0
      %v823 = vsel %vm779, %v767, 0
      %v826 = vsel %vm779, %v768, 0
      %828 = vmatprep.subr.mxu0 0.0
      %829 = vmatpush1.msra.mxu0 %v773
      %830 = vmatprep.subr.mxu0 0.0
      %831 = vmatpush1.msra.mxu0 %v774
      %832 = vmatprep.subr.mxu0 0.0
      %833 = vmatpush1.msra.mxu0 %v775
      %834 = vmatprep.subr.mxu0 0.0
      %835 = vmatpush1.msra.mxu0 %v776
      %836 = vmatprep.subr.mxu0 0.0
      %837 = vmatpush1.msra.mxu0 0.0
      %838 = vmatprep.subr.mxu0 0.0
      %839 = vmatpush1.msra.mxu0 0.0
      %840 = vmatprep.subr.mxu0 0.0
      %841 = vmatpush1.msra.mxu0 0.0
      %842 = vmatprep.subr.mxu0 0.0
      %843 = vmatpush1.msra.mxu0 0.0
      %844 = vmatprep.subr.mxu0 0.0
      %845 = vmatpush1.msra.mxu0 0.0
      %846 = vmatprep.subr.mxu0 0.0
      %847 = vmatpush1.msra.mxu0 0.0
      %848 = vmatprep.subr.mxu0 0.0
      %849 = vmatpush1.msra.mxu0 0.0
      %850 = vmatprep.subr.mxu0 0.0
      %851 = vmatpush1.msra.mxu0 0.0
      %852 = vmatprep.subr.mxu0 0.0
      %853 = vmatpush1.msra.mxu0 0.0
      %854 = vmatprep.subr.mxu0 0.0
      %855 = vmatpush1.msra.mxu0 0.0
      %856 = vmatprep.subr.mxu0 0.0
      %857 = vmatpush1.msra.mxu0 0.0
      %858 = vmatprep.subr.mxu0 0.0
      %859 = vmatpush1.msra.mxu0 0.0
      %860 = vmatprep.subr.mxu0 0.0
      %861 = vmatpush1.msra.mxu0 0.0
      %862 = vmatprep.subr.mxu0 0.0
      %863 = vmatpush1.msra.mxu0 0.0
      %864 = vmatprep.subr.mxu0 0.0
      %865 = vmatpush1.msra.mxu0 0.0
      %866 = vmatprep.subr.mxu0 0.0
      %867 = vmatpush1.msra.mxu0 0.0
      %868 = vmatprep.subr.mxu0 0.0
      %869 = vmatpush1.msra.mxu0 0.0
      %870 = vmatprep.subr.mxu0 0.0
      %871 = vmatpush1.msra.mxu0 0.0
      %872 = vmatprep.subr.mxu0 0.0
      %873 = vmatpush1.msra.mxu0 0.0
      %874 = vmatprep.subr.mxu0 0.0
      %875 = vmatpush1.msra.mxu0 0.0
      %876 = vmatprep.subr.mxu0 0.0
      %877 = vmatpush1.msra.mxu0 0.0
      %878 = vmatprep.subr.mxu0 0.0
      %879 = vmatpush1.msra.mxu0 0.0
      %880 = vmatprep.subr.mxu0 0.0
      %881 = vmatpush1.msra.mxu0 0.0
      %882 = vmatprep.subr.mxu0 0.0
      %883 = vmatpush1.msra.mxu0 0.0
      %884 = vmatprep.subr.mxu0 0.0
      %885 = vmatpush1.msra.mxu0 0.0
      %886 = vmatprep.subr.mxu0 0.0
      %887 = vmatpush1.msra.mxu0 0.0
      %888 = vmatprep.subr.mxu0 0.0
      %889 = vmatpush1.msra.mxu0 0.0
      %890 = vmatprep.subr.mxu0 0.0
      %891 = vmatpush1.msra.mxu0 0.0
      %892 = vmatprep.mubr.f32.mxu0 0.0
      %893 = vmatmul.mubr.f32.gmra.mrb[0].mxu0 %v781
      %v894 = vpop.f32.mrb[0].mxu0
      %v895 = vadd.f32 0.0, %v894
      %v896 = vpop.f32.mrb[0].mxu0
      %897 = vmatprep.mubr.f32.mxu0 0.0
      %898 = vmatmul.mubr.f32.gmra.mrb[0].mxu0 %v784
      %v899 = vpop.f32.mrb[0].mxu0
      %v900 = vadd.f32 0.0, %v899
      %v901 = vpop.f32.mrb[0].mxu0
      %902 = vmatprep.mubr.f32.mxu0 0.0
      %903 = vmatmul.mubr.f32.gmra.mrb[0].mxu0 %v787
      %v904 = vpop.f32.mrb[0].mxu0
      %v905 = vadd.f32 0.0, %v904
      %v906 = vpop.f32.mrb[0].mxu0
      %907 = vmatprep.mubr.f32.mxu0 0.0
      %908 = vmatmul.mubr.f32.gmra.mrb[0].mxu0 %v790
      %v909 = vpop.f32.mrb[0].mxu0
      %v910 = vadd.f32 0.0, %v909
      %v911 = vpop.f32.mrb[0].mxu0
      %912 = vmatprep.mubr.f32.mxu0 0.0
      %913 = vmatmul.mubr.f32.gmra.mrb[0].mxu0 %v793
      %v914 = vpop.f32.mrb[0].mxu0
      %v915 = vadd.f32 0.0, %v914
      %v916 = vpop.f32.mrb[0].mxu0
      %917 = vmatprep.mubr.f32.mxu0 0.0
      %918 = vmatmul.mubr.f32.gmra.mrb[0].mxu0 %v796
      %v919 = vpop.f32.mrb[0].mxu0
      %v920 = vadd.f32 0.0, %v919
      %v921 = vpop.f32.mrb[0].mxu0
      %922 = vmatprep.mubr.f32.mxu0 0.0
      %923 = vmatmul.mubr.f32.gmra.mrb[0].mxu0 %v799
      %v924 = vpop.f32.mrb[0].mxu0
      %v925 = vadd.f32 0.0, %v924
      %v926 = vpop.f32.mrb[0].mxu0
      %927 = vmatprep.mubr.f32.mxu0 0.0
      %928 = vmatmul.mubr.f32.gmra.mrb[0].mxu0 %v802
      %v929 = vpop.f32.mrb[0].mxu0
      %v930 = vadd.f32 0.0, %v929
      %v931 = vpop.f32.mrb[0].mxu0
      %932 = vmatprep.mubr.f32.mxu0 0.0
      %933 = vmatmul.mubr.f32.gmra.mrb[0].mxu0 %v805
      %v934 = vpop.f32.mrb[0].mxu0
      %v935 = vadd.f32 0.0, %v934
      %v936 = vpop.f32.mrb[0].mxu0
      %937 = vmatprep.mubr.f32.mxu0 0.0
      %938 = vmatmul.mubr.f32.gmra.mrb[0].mxu0 %v808
      %v939 = vpop.f32.mrb[0].mxu0
      %v940 = vadd.f32 0.0, %v939
      %v941 = vpop.f32.mrb[0].mxu0
      %942 = vmatprep.mubr.f32.mxu0 0.0
      %943 = vmatmul.mubr.f32.gmra.mrb[0].mxu0 %v811
      %v944 = vpop.f32.mrb[0].mxu0
      %v945 = vadd.f32 0.0, %v944
      %v946 = vpop.f32.mrb[0].mxu0
      %947 = vmatprep.mubr.f32.mxu0 0.0
      %948 = vmatmul.mubr.f32.gmra.mrb[0].mxu0 %v814
      %v949 = vpop.f32.mrb[0].mxu0
      %v950 = vadd.f32 0.0, %v949
      %v951 = vpop.f32.mrb[0].mxu0
      %952 = vmatprep.mubr.f32.mxu0 0.0
      %953 = vmatmul.mubr.f32.gmra.mrb[0].mxu0 %v817
      %v954 = vpop.f32.mrb[0].mxu0
      %v955 = vadd.f32 0.0, %v954
      %v956 = vpop.f32.mrb[0].mxu0
      %957 = vmatprep.mubr.f32.mxu0 0.0
      %958 = vmatmul.mubr.f32.gmra.mrb[0].mxu0 %v820
      %v959 = vpop.f32.mrb[0].mxu0
      %v960 = vadd.f32 0.0, %v959
      %v961 = vpop.f32.mrb[0].mxu0
      %962 = vmatprep.mubr.f32.mxu0 0.0
      %963 = vmatmul.mubr.f32.gmra.mrb[0].mxu0 %v823
      %v964 = vpop.f32.mrb[0].mxu0
      %v965 = vadd.f32 0.0, %v964
      %v966 = vpop.f32.mrb[0].mxu0
      %967 = vmatprep.mubr.f32.mxu0 0.0
      %968 = vmatmul.mubr.f32.gmra.mrb[0].mxu0 %v826
      %v969 = vpop.f32.mrb[0].mxu0
      %v970 = vadd.f32 0.0, %v969
      %v971 = vpop.f32.mrb[0].mxu0
      %972 = vdwg.mxu0
      %v973 = vmul.f32 %v737, %v895
      %v974 = vmul.f32 %v738, %v900
      %v975 = vmul.f32 %v739, %v905
      %v976 = vmul.f32 %v740, %v910
      %v977 = vmul.f32 %v741, %v915
      %v978 = vmul.f32 %v742, %v920
      %v979 = vmul.f32 %v743, %v925
      %v980 = vmul.f32 %v744, %v930
      %v981 = vmul.f32 %v745, %v935
      %v982 = vmul.f32 %v746, %v940
      %v983 = vmul.f32 %v747, %v945
      %v984 = vmul.f32 %v748, %v950
      %v985 = vmul.f32 %v749, %v955
      %v986 = vmul.f32 %v750, %v960
      %v987 = vmul.f32 %v751, %v965
      %v988 = vmul.f32 %v752, %v970
      %v990 = vsel %vm552, %v721, 0
      %v993 = vsel %vm552, %v722, 0
      %995 = vmatprep.subr.mxu0 0.0
      %996 = vmatpush1.msra.mxu0 %v895
      %997 = vmatprep.subr.mxu0 0.0
      %998 = vmatpush1.msra.mxu0 %v900
      %999 = vmatprep.subr.mxu0 0.0
      %1000 = vmatpush1.msra.mxu0 0.0
      %1001 = vmatprep.subr.mxu0 0.0
      %1002 = vmatpush1.msra.mxu0 0.0
      %1003 = vmatprep.subr.mxu0 0.0
      %1004 = vmatpush1.msra.mxu0 0.0
      %1005 = vmatprep.subr.mxu0 0.0
      %1006 = vmatpush1.msra.mxu0 0.0
      %1007 = vmatprep.subr.mxu0 0.0
      %1008 = vmatpush1.msra.mxu0 0.0
      %1009 = vmatprep.subr.mxu0 0.0
      %1010 = vmatpush1.msra.mxu0 0.0
      %1011 = vmatprep.subr.mxu0 0.0
      %1012 = vmatpush1.msra.mxu0 0.0
      %1013 = vmatprep.subr.mxu0 0.0
      %1014 = vmatpush1.msra.mxu0 0.0
      %1015 = vmatprep.subr.mxu0 0.0
      %1016 = vmatpush1.msra.mxu0 0.0
      %1017 = vmatprep.subr.mxu0 0.0
      %1018 = vmatpush1.msra.mxu0 0.0
      %1019 = vmatprep.subr.mxu0 0.0
      %1020 = vmatpush1.msra.mxu0 0.0
      %1021 = vmatprep.subr.mxu0 0.0
      %1022 = vmatpush1.msra.mxu0 0.0
      %1023 = vmatprep.subr.mxu0 0.0
      %1024 = vmatpush1.msra.mxu0 0.0
      %1025 = vmatprep.subr.mxu0 0.0
      %1026 = vmatpush1.msra.mxu0 0.0
      %1027 = vmatprep.subr.mxu0 0.0
      %1028 = vmatpush1.msra.mxu0 0.0
      %1029 = vmatprep.subr.mxu0 0.0
      %1030 = vmatpush1.msra.mxu0 0.0
      %1031 = vmatprep.subr.mxu0 0.0
      %1032 = vmatpush1.msra.mxu0 0.0
      %1033 = vmatprep.subr.mxu0 0.0
      %1034 = vmatpush1.msra.mxu0 0.0
      %1035 = vmatprep.subr.mxu0 0.0
      %1036 = vmatpush1.msra.mxu0 0.0
      %1037 = vmatprep.subr.mxu0 0.0
      %1038 = vmatpush1.msra.mxu0 0.0
      %1039 = vmatprep.subr.mxu0 0.0
      %1040 = vmatpush1.msra.mxu0 0.0
      %1041 = vmatprep.subr.mxu0 0.0
      %1042 = vmatpush1.msra.mxu0 0.0
      %1043 = vmatprep.subr.mxu0 0.0
      %1044 = vmatpush1.msra.mxu0 0.0
      %1045 = vmatprep.subr.mxu0 0.0
      %1046 = vmatpush1.msra.mxu0 0.0
      %1047 = vmatprep.subr.mxu0 0.0
      %1048 = vmatpush1.msra.mxu0 0.0
      %1049 = vmatprep.subr.mxu0 0.0
      %1050 = vmatpush1.msra.mxu0 0.0
      %1051 = vmatprep.subr.mxu0 0.0
      %1052 = vmatpush1.msra.mxu0 0.0
      %1053 = vmatprep.subr.mxu0 0.0
      %1054 = vmatpush1.msra.mxu0 0.0
      %1055 = vmatprep.subr.mxu0 0.0
      %1056 = vmatpush1.msra.mxu0 0.0
      %1057 = vmatprep.subr.mxu0 0.0
      %1058 = vmatpush1.msra.mxu0 0.0
      %1059 = vmatprep.mubr.f32.mxu0 0.0
      %1060 = vmatmul.mubr.f32.gmra.mrb[0].mxu0 %v990
      %v1061 = vpop.f32.mrb[0].mxu0
      %v1062 = vadd.f32 %v973, %v1061
      %v1063 = vpop.f32.mrb[0].mxu0
      %1064 = vmatprep.mubr.f32.mxu0 0.0
      %1065 = vmatmul.mubr.f32.gmra.mrb[0].mxu0 %v993
      %v1066 = vpop.f32.mrb[0].mxu0
      %v1067 = vadd.f32 %v974, %v1066
      %v1068 = vpop.f32.mrb[0].mxu0
      %1069 = vdwg.mxu0
      %v1071 = vsel %vm552, %v723, 0
      %v1074 = vsel %vm552, %v724, 0
      %1076 = vmatprep.subr.mxu0 0.0
      %1077 = vmatpush1.msra.mxu0 %v905
      %1078 = vmatprep.subr.mxu0 0.0
      %1079 = vmatpush1.msra.mxu0 %v910
      %1080 = vmatprep.subr.mxu0 0.0
      %1081 = vmatpush1.msra.mxu0 0.0
      %1082 = vmatprep.subr.mxu0 0.0
      %1083 = vmatpush1.msra.mxu0 0.0
      %1084 = vmatprep.subr.mxu0 0.0
      %1085 = vmatpush1.msra.mxu0 0.0
      %1086 = vmatprep.subr.mxu0 0.0
      %1087 = vmatpush1.msra.mxu0 0.0
      %1088 = vmatprep.subr.mxu0 0.0
      %1089 = vmatpush1.msra.mxu0 0.0
      %1090 = vmatprep.subr.mxu0 0.0
      %1091 = vmatpush1.msra.mxu0 0.0
      %1092 = vmatprep.subr.mxu0 0.0
      %1093 = vmatpush1.msra.mxu0 0.0
      %1094 = vmatprep.subr.mxu0 0.0
      %1095 = vmatpush1.msra.mxu0 0.0
      %1096 = vmatprep.subr.mxu0 0.0
      %1097 = vmatpush1.msra.mxu0 0.0
      %1098 = vmatprep.subr.mxu0 0.0
      %1099 = vmatpush1.msra.mxu0 0.0
      %1100 = vmatprep.subr.mxu0 0.0
      %1101 = vmatpush1.msra.mxu0 0.0
      %1102 = vmatprep.subr.mxu0 0.0
      %1103 = vmatpush1.msra.mxu0 0.0
      %1104 = vmatprep.subr.mxu0 0.0
      %1105 = vmatpush1.msra.mxu0 0.0
      %1106 = vmatprep.subr.mxu0 0.0
      %1107 = vmatpush1.msra.mxu0 0.0
      %1108 = vmatprep.subr.mxu0 0.0
      %1109 = vmatpush1.msra.mxu0 0.0
      %1110 = vmatprep.subr.mxu0 0.0
      %1111 = vmatpush1.msra.mxu0 0.0
      %1112 = vmatprep.subr.mxu0 0.0
      %1113 = vmatpush1.msra.mxu0 0.0
      %1114 = vmatprep.subr.mxu0 0.0
      %1115 = vmatpush1.msra.mxu0 0.0
      %1116 = vmatprep.subr.mxu0 0.0
      %1117 = vmatpush1.msra.mxu0 0.0
      %1118 = vmatprep.subr.mxu0 0.0
      %1119 = vmatpush1.msra.mxu0 0.0
      %1120 = vmatprep.subr.mxu0 0.0
      %1121 = vmatpush1.msra.mxu0 0.0
      %1122 = vmatprep.subr.mxu0 0.0
      %1123 = vmatpush1.msra.mxu0 0.0
      %1124 = vmatprep.subr.mxu0 0.0
      %1125 = vmatpush1.msra.mxu0 0.0
      %1126 = vmatprep.subr.mxu0 0.0
      %1127 = vmatpush1.msra.mxu0 0.0
      %1128 = vmatprep.subr.mxu0 0.0
      %1129 = vmatpush1.msra.mxu0 0.0
      %1130 = vmatprep.subr.mxu0 0.0
      %1131 = vmatpush1.msra.mxu0 0.0
      %1132 = vmatprep.subr.mxu0 0.0
      %1133 = vmatpush1.msra.mxu0 0.0
      %1134 = vmatprep.subr.mxu0 0.0
      %1135 = vmatpush1.msra.mxu0 0.0
      %1136 = vmatprep.subr.mxu0 0.0
      %1137 = vmatpush1.msra.mxu0 0.0
      %1138 = vmatprep.subr.mxu0 0.0
      %1139 = vmatpush1.msra.mxu0 0.0
      %1140 = vmatprep.mubr.f32.mxu0 0.0
      %1141 = vmatmul.mubr.f32.gmra.mrb[0].mxu0 %v1071
      %v1142 = vpop.f32.mrb[0].mxu0
      %v1143 = vadd.f32 %v975, %v1142
      %v1144 = vpop.f32.mrb[0].mxu0
      %1145 = vmatprep.mubr.f32.mxu0 0.0
      %1146 = vmatmul.mubr.f32.gmra.mrb[0].mxu0 %v1074
      %v1147 = vpop.f32.mrb[0].mxu0
      %v1148 = vadd.f32 %v976, %v1147
      %v1149 = vpop.f32.mrb[0].mxu0
      %1150 = vdwg.mxu0
      %v1152 = vsel %vm552, %v725, 0
      %v1155 = vsel %vm552, %v726, 0
      %1157 = vmatprep.subr.mxu0 0.0
      %1158 = vmatpush1.msra.mxu0 %v915
      %1159 = vmatprep.subr.mxu0 0.0
      %1160 = vmatpush1.msra.mxu0 %v920
      %1161 = vmatprep.subr.mxu0 0.0
      %1162 = vmatpush1.msra.mxu0 0.0
      %1163 = vmatprep.subr.mxu0 0.0
      %1164 = vmatpush1.msra.mxu0 0.0
      %1165 = vmatprep.subr.mxu0 0.0
      %1166 = vmatpush1.msra.mxu0 0.0
      %1167 = vmatprep.subr.mxu0 0.0
      %1168 = vmatpush1.msra.mxu0 0.0
      %1169 = vmatprep.subr.mxu0 0.0
      %1170 = vmatpush1.msra.mxu0 0.0
      %1171 = vmatprep.subr.mxu0 0.0
      %1172 = vmatpush1.msra.mxu0 0.0
      %1173 = vmatprep.subr.mxu0 0.0
      %1174 = vmatpush1.msra.mxu0 0.0
      %1175 = vmatprep.subr.mxu0 0.0
      %1176 = vmatpush1.msra.mxu0 0.0
      %1177 = vmatprep.subr.mxu0 0.0
      %1178 = vmatpush1.msra.mxu0 0.0
      %1179 = vmatprep.subr.mxu0 0.0
      %1180 = vmatpush1.msra.mxu0 0.0
      %1181 = vmatprep.subr.mxu0 0.0
      %1182 = vmatpush1.msra.mxu0 0.0
      %1183 = vmatprep.subr.mxu0 0.0
      %1184 = vmatpush1.msra.mxu0 0.0
      %1185 = vmatprep.subr.mxu0 0.0
      %1186 = vmatpush1.msra.mxu0 0.0
      %1187 = vmatprep.subr.mxu0 0.0
      %1188 = vmatpush1.msra.mxu0 0.0
      %1189 = vmatprep.subr.mxu0 0.0
      %1190 = vmatpush1.msra.mxu0 0.0
      %1191 = vmatprep.subr.mxu0 0.0
      %1192 = vmatpush1.msra.mxu0 0.0
      %1193 = vmatprep.subr.mxu0 0.0
      %1194 = vmatpush1.msra.mxu0 0.0
      %1195 = vmatprep.subr.mxu0 0.0
      %1196 = vmatpush1.msra.mxu0 0.0
      %1197 = vmatprep.subr.mxu0 0.0
      %1198 = vmatpush1.msra.mxu0 0.0
      %1199 = vmatprep.subr.mxu0 0.0
      %1200 = vmatpush1.msra.mxu0 0.0
      %1201 = vmatprep.subr.mxu0 0.0
      %1202 = vmatpush1.msra.mxu0 0.0
      %1203 = vmatprep.subr.mxu0 0.0
      %1204 = vmatpush1.msra.mxu0 0.0
      %1205 = vmatprep.subr.mxu0 0.0
      %1206 = vmatpush1.msra.mxu0 0.0
      %1207 = vmatprep.subr.mxu0 0.0
      %1208 = vmatpush1.msra.mxu0 0.0
      %1209 = vmatprep.subr.mxu0 0.0
      %1210 = vmatpush1.msra.mxu0 0.0
      %1211 = vmatprep.subr.mxu0 0.0
      %1212 = vmatpush1.msra.mxu0 0.0
      %1213 = vmatprep.subr.mxu0 0.0
      %1214 = vmatpush1.msra.mxu0 0.0
      %1215 = vmatprep.subr.mxu0 0.0
      %1216 = vmatpush1.msra.mxu0 0.0
      %1217 = vmatprep.subr.mxu0 0.0
      %1218 = vmatpush1.msra.mxu0 0.0
      %1219 = vmatprep.subr.mxu0 0.0
      %1220 = vmatpush1.msra.mxu0 0.0
      %1221 = vmatprep.mubr.f32.mxu0 0.0
      %1222 = vmatmul.mubr.f32.gmra.mrb[0].mxu0 %v1152
      %v1223 = vpop.f32.mrb[0].mxu0
      %v1224 = vadd.f32 %v977, %v1223
      %v1225 = vpop.f32.mrb[0].mxu0
      %1226 = vmatprep.mubr.f32.mxu0 0.0
      %1227 = vmatmul.mubr.f32.gmra.mrb[0].mxu0 %v1155
      %v1228 = vpop.f32.mrb[0].mxu0
      %v1229 = vadd.f32 %v978, %v1228
      %v1230 = vpop.f32.mrb[0].mxu0
      %1231 = vdwg.mxu0
      %v1233 = vsel %vm552, %v727, 0
      %v1236 = vsel %vm552, %v728, 0
      %1238 = vmatprep.subr.mxu0 0.0
      %1239 = vmatpush1.msra.mxu0 %v925
      %1240 = vmatprep.subr.mxu0 0.0
      %1241 = vmatpush1.msra.mxu0 %v930
      %1242 = vmatprep.subr.mxu0 0.0
      %1243 = vmatpush1.msra.mxu0 0.0
      %1244 = vmatprep.subr.mxu0 0.0
      %1245 = vmatpush1.msra.mxu0 0.0
      %1246 = vmatprep.subr.mxu0 0.0
      %1247 = vmatpush1.msra.mxu0 0.0
      %1248 = vmatprep.subr.mxu0 0.0
      %1249 = vmatpush1.msra.mxu0 0.0
      %1250 = vmatprep.subr.mxu0 0.0
      %1251 = vmatpush1.msra.mxu0 0.0
      %1252 = vmatprep.subr.mxu0 0.0
      %1253 = vmatpush1.msra.mxu0 0.0
      %1254 = vmatprep.subr.mxu0 0.0
      %1255 = vmatpush1.msra.mxu0 0.0
      %1256 = vmatprep.subr.mxu0 0.0
      %1257 = vmatpush1.msra.mxu0 0.0
      %1258 = vmatprep.subr.mxu0 0.0
      %1259 = vmatpush1.msra.mxu0 0.0
      %1260 = vmatprep.subr.mxu0 0.0
      %1261 = vmatpush1.msra.mxu0 0.0
      %1262 = vmatprep.subr.mxu0 0.0
      %1263 = vmatpush1.msra.mxu0 0.0
      %1264 = vmatprep.subr.mxu0 0.0
      %1265 = vmatpush1.msra.mxu0 0.0
      %1266 = vmatprep.subr.mxu0 0.0
      %1267 = vmatpush1.msra.mxu0 0.0
      %1268 = vmatprep.subr.mxu0 0.0
      %1269 = vmatpush1.msra.mxu0 0.0
      %1270 = vmatprep.subr.mxu0 0.0
      %1271 = vmatpush1.msra.mxu0 0.0
      %1272 = vmatprep.subr.mxu0 0.0
      %1273 = vmatpush1.msra.mxu0 0.0
      %1274 = vmatprep.subr.mxu0 0.0
      %1275 = vmatpush1.msra.mxu0 0.0
      %1276 = vmatprep.subr.mxu0 0.0
      %1277 = vmatpush1.msra.mxu0 0.0
      %1278 = vmatprep.subr.mxu0 0.0
      %1279 = vmatpush1.msra.mxu0 0.0
      %1280 = vmatprep.subr.mxu0 0.0
      %1281 = vmatpush1.msra.mxu0 0.0
      %1282 = vmatprep.subr.mxu0 0.0
      %1283 = vmatpush1.msra.mxu0 0.0
      %1284 = vmatprep.subr.mxu0 0.0
      %1285 = vmatpush1.msra.mxu0 0.0
      %1286 = vmatprep.subr.mxu0 0.0
      %1287 = vmatpush1.msra.mxu0 0.0
      %1288 = vmatprep.subr.mxu0 0.0
      %1289 = vmatpush1.msra.mxu0 0.0
      %1290 = vmatprep.subr.mxu0 0.0
      %1291 = vmatpush1.msra.mxu0 0.0
      %1292 = vmatprep.subr.mxu0 0.0
      %1293 = vmatpush1.msra.mxu0 0.0
      %1294 = vmatprep.subr.mxu0 0.0
      %1295 = vmatpush1.msra.mxu0 0.0
      %1296 = vmatprep.subr.mxu0 0.0
      %1297 = vmatpush1.msra.mxu0 0.0
      %1298 = vmatprep.subr.mxu0 0.0
      %1299 = vmatpush1.msra.mxu0 0.0
      %1300 = vmatprep.subr.mxu0 0.0
      %1301 = vmatpush1.msra.mxu0 0.0
      %1302 = vmatprep.mubr.f32.mxu0 0.0
      %1303 = vmatmul.mubr.f32.gmra.mrb[0].mxu0 %v1233
      %v1304 = vpop.f32.mrb[0].mxu0
      %v1305 = vadd.f32 %v979, %v1304
      %v1306 = vpop.f32.mrb[0].mxu0
      %1307 = vmatprep.mubr.f32.mxu0 0.0
      %1308 = vmatmul.mubr.f32.gmra.mrb[0].mxu0 %v1236
      %v1309 = vpop.f32.mrb[0].mxu0
      %v1310 = vadd.f32 %v980, %v1309
      %v1311 = vpop.f32.mrb[0].mxu0
      %1312 = vdwg.mxu0
      %v1314 = vsel %vm552, %v729, 0
      %v1317 = vsel %vm552, %v730, 0
      %1319 = vmatprep.subr.mxu0 0.0
      %1320 = vmatpush1.msra.mxu0 %v935
      %1321 = vmatprep.subr.mxu0 0.0
      %1322 = vmatpush1.msra.mxu0 %v940
      %1323 = vmatprep.subr.mxu0 0.0
      %1324 = vmatpush1.msra.mxu0 0.0
      %1325 = vmatprep.subr.mxu0 0.0
      %1326 = vmatpush1.msra.mxu0 0.0
      %1327 = vmatprep.subr.mxu0 0.0
      %1328 = vmatpush1.msra.mxu0 0.0
      %1329 = vmatprep.subr.mxu0 0.0
      %1330 = vmatpush1.msra.mxu0 0.0
      %1331 = vmatprep.subr.mxu0 0.0
      %1332 = vmatpush1.msra.mxu0 0.0
      %1333 = vmatprep.subr.mxu0 0.0
      %1334 = vmatpush1.msra.mxu0 0.0
      %1335 = vmatprep.subr.mxu0 0.0
      %1336 = vmatpush1.msra.mxu0 0.0
      %1337 = vmatprep.subr.mxu0 0.0
      %1338 = vmatpush1.msra.mxu0 0.0
      %1339 = vmatprep.subr.mxu0 0.0
      %1340 = vmatpush1.msra.mxu0 0.0
      %1341 = vmatprep.subr.mxu0 0.0
      %1342 = vmatpush1.msra.mxu0 0.0
      %1343 = vmatprep.subr.mxu0 0.0
      %1344 = vmatpush1.msra.mxu0 0.0
      %1345 = vmatprep.subr.mxu0 0.0
      %1346 = vmatpush1.msra.mxu0 0.0
      %1347 = vmatprep.subr.mxu0 0.0
      %1348 = vmatpush1.msra.mxu0 0.0
      %1349 = vmatprep.subr.mxu0 0.0
      %1350 = vmatpush1.msra.mxu0 0.0
      %1351 = vmatprep.subr.mxu0 0.0
      %1352 = vmatpush1.msra.mxu0 0.0
      %1353 = vmatprep.subr.mxu0 0.0
      %1354 = vmatpush1.msra.mxu0 0.0
      %1355 = vmatprep.subr.mxu0 0.0
      %1356 = vmatpush1.msra.mxu0 0.0
      %1357 = vmatprep.subr.mxu0 0.0
      %1358 = vmatpush1.msra.mxu0 0.0
      %1359 = vmatprep.subr.mxu0 0.0
      %1360 = vmatpush1.msra.mxu0 0.0
      %1361 = vmatprep.subr.mxu0 0.0
      %1362 = vmatpush1.msra.mxu0 0.0
      %1363 = vmatprep.subr.mxu0 0.0
      %1364 = vmatpush1.msra.mxu0 0.0
      %1365 = vmatprep.subr.mxu0 0.0
      %1366 = vmatpush1.msra.mxu0 0.0
      %1367 = vmatprep.subr.mxu0 0.0
      %1368 = vmatpush1.msra.mxu0 0.0
      %1369 = vmatprep.subr.mxu0 0.0
      %1370 = vmatpush1.msra.mxu0 0.0
      %1371 = vmatprep.subr.mxu0 0.0
      %1372 = vmatpush1.msra.mxu0 0.0
      %1373 = vmatprep.subr.mxu0 0.0
      %1374 = vmatpush1.msra.mxu0 0.0
      %1375 = vmatprep.subr.mxu0 0.0
      %1376 = vmatpush1.msra.mxu0 0.0
      %1377 = vmatprep.subr.mxu0 0.0
      %1378 = vmatpush1.msra.mxu0 0.0
      %1379 = vmatprep.subr.mxu0 0.0
      %1380 = vmatpush1.msra.mxu0 0.0
      %1381 = vmatprep.subr.mxu0 0.0
      %1382 = vmatpush1.msra.mxu0 0.0
      %1383 = vmatprep.mubr.f32.mxu0 0.0
      %1384 = vmatmul.mubr.f32.gmra.mrb[0].mxu0 %v1314
      %v1385 = vpop.f32.mrb[0].mxu0
      %v1386 = vadd.f32 %v981, %v1385
      %v1387 = vpop.f32.mrb[0].mxu0
      %1388 = vmatprep.mubr.f32.mxu0 0.0
      %1389 = vmatmul.mubr.f32.gmra.mrb[0].mxu0 %v1317
      %v1390 = vpop.f32.mrb[0].mxu0
      %v1391 = vadd.f32 %v982, %v1390
      %v1392 = vpop.f32.mrb[0].mxu0
      %1393 = vdwg.mxu0
      %v1395 = vsel %vm552, %v731, 0
      %v1398 = vsel %vm552, %v732, 0
      %1400 = vmatprep.subr.mxu0 0.0
      %1401 = vmatpush1.msra.mxu0 %v945
      %1402 = vmatprep.subr.mxu0 0.0
      %1403 = vmatpush1.msra.mxu0 %v950
      %1404 = vmatprep.subr.mxu0 0.0
      %1405 = vmatpush1.msra.mxu0 0.0
      %1406 = vmatprep.subr.mxu0 0.0
      %1407 = vmatpush1.msra.mxu0 0.0
      %1408 = vmatprep.subr.mxu0 0.0
      %1409 = vmatpush1.msra.mxu0 0.0
      %1410 = vmatprep.subr.mxu0 0.0
      %1411 = vmatpush1.msra.mxu0 0.0
      %1412 = vmatprep.subr.mxu0 0.0
      %1413 = vmatpush1.msra.mxu0 0.0
      %1414 = vmatprep.subr.mxu0 0.0
      %1415 = vmatpush1.msra.mxu0 0.0
      %1416 = vmatprep.subr.mxu0 0.0
      %1417 = vmatpush1.msra.mxu0 0.0
      %1418 = vmatprep.subr.mxu0 0.0
      %1419 = vmatpush1.msra.mxu0 0.0
      %1420 = vmatprep.subr.mxu0 0.0
      %1421 = vmatpush1.msra.mxu0 0.0
      %1422 = vmatprep.subr.mxu0 0.0
      %1423 = vmatpush1.msra.mxu0 0.0
      %1424 = vmatprep.subr.mxu0 0.0
      %1425 = vmatpush1.msra.mxu0 0.0
      %1426 = vmatprep.subr.mxu0 0.0
      %1427 = vmatpush1.msra.mxu0 0.0
      %1428 = vmatprep.subr.mxu0 0.0
      %1429 = vmatpush1.msra.mxu0 0.0
      %1430 = vmatprep.subr.mxu0 0.0
      %1431 = vmatpush1.msra.mxu0 0.0
      %1432 = vmatprep.subr.mxu0 0.0
      %1433 = vmatpush1.msra.mxu0 0.0
      %1434 = vmatprep.subr.mxu0 0.0
      %1435 = vmatpush1.msra.mxu0 0.0
      %1436 = vmatprep.subr.mxu0 0.0
      %1437 = vmatpush1.msra.mxu0 0.0
      %1438 = vmatprep.subr.mxu0 0.0
      %1439 = vmatpush1.msra.mxu0 0.0
      %1440 = vmatprep.subr.mxu0 0.0
      %1441 = vmatpush1.msra.mxu0 0.0
      %1442 = vmatprep.subr.mxu0 0.0
      %1443 = vmatpush1.msra.mxu0 0.0
      %1444 = vmatprep.subr.mxu0 0.0
      %1445 = vmatpush1.msra.mxu0 0.0
      %1446 = vmatprep.subr.mxu0 0.0
      %1447 = vmatpush1.msra.mxu0 0.0
      %1448 = vmatprep.subr.mxu0 0.0
      %1449 = vmatpush1.msra.mxu0 0.0
      %1450 = vmatprep.subr.mxu0 0.0
      %1451 = vmatpush1.msra.mxu0 0.0
      %1452 = vmatprep.subr.mxu0 0.0
      %1453 = vmatpush1.msra.mxu0 0.0
      %1454 = vmatprep.subr.mxu0 0.0
      %1455 = vmatpush1.msra.mxu0 0.0
      %1456 = vmatprep.subr.mxu0 0.0
      %1457 = vmatpush1.msra.mxu0 0.0
      %1458 = vmatprep.subr.mxu0 0.0
      %1459 = vmatpush1.msra.mxu0 0.0
      %1460 = vmatprep.subr.mxu0 0.0
      %1461 = vmatpush1.msra.mxu0 0.0
      %1462 = vmatprep.subr.mxu0 0.0
      %1463 = vmatpush1.msra.mxu0 0.0
      %1464 = vmatprep.mubr.f32.mxu0 0.0
      %1465 = vmatmul.mubr.f32.gmra.mrb[0].mxu0 %v1395
      %v1466 = vpop.f32.mrb[0].mxu0
      %v1467 = vadd.f32 %v983, %v1466
      %v1468 = vpop.f32.mrb[0].mxu0
      %1469 = vmatprep.mubr.f32.mxu0 0.0
      %1470 = vmatmul.mubr.f32.gmra.mrb[0].mxu0 %v1398
      %v1471 = vpop.f32.mrb[0].mxu0
      %v1472 = vadd.f32 %v984, %v1471
      %v1473 = vpop.f32.mrb[0].mxu0
      %1474 = vdwg.mxu0
      %v1476 = vsel %vm552, %v733, 0
      %v1479 = vsel %vm552, %v734, 0
      %1481 = vmatprep.subr.mxu0 0.0
      %1482 = vmatpush1.msra.mxu0 %v955
      %1483 = vmatprep.subr.mxu0 0.0
      %1484 = vmatpush1.msra.mxu0 %v960
      %1485 = vmatprep.subr.mxu0 0.0
      %1486 = vmatpush1.msra.mxu0 0.0
      %1487 = vmatprep.subr.mxu0 0.0
      %1488 = vmatpush1.msra.mxu0 0.0
      %1489 = vmatprep.subr.mxu0 0.0
      %1490 = vmatpush1.msra.mxu0 0.0
      %1491 = vmatprep.subr.mxu0 0.0
      %1492 = vmatpush1.msra.mxu0 0.0
      %1493 = vmatprep.subr.mxu0 0.0
      %1494 = vmatpush1.msra.mxu0 0.0
      %1495 = vmatprep.subr.mxu0 0.0
      %1496 = vmatpush1.msra.mxu0 0.0
      %1497 = vmatprep.subr.mxu0 0.0
      %1498 = vmatpush1.msra.mxu0 0.0
      %1499 = vmatprep.subr.mxu0 0.0
      %1500 = vmatpush1.msra.mxu0 0.0
      %1501 = vmatprep.subr.mxu0 0.0
      %1502 = vmatpush1.msra.mxu0 0.0
      %1503 = vmatprep.subr.mxu0 0.0
      %1504 = vmatpush1.msra.mxu0 0.0
      %1505 = vmatprep.subr.mxu0 0.0
      %1506 = vmatpush1.msra.mxu0 0.0
      %1507 = vmatprep.subr.mxu0 0.0
      %1508 = vmatpush1.msra.mxu0 0.0
      %1509 = vmatprep.subr.mxu0 0.0
      %1510 = vmatpush1.msra.mxu0 0.0
      %1511 = vmatprep.subr.mxu0 0.0
      %1512 = vmatpush1.msra.mxu0 0.0
      %1513 = vmatprep.subr.mxu0 0.0
      %1514 = vmatpush1.msra.mxu0 0.0
      %1515 = vmatprep.subr.mxu0 0.0
      %1516 = vmatpush1.msra.mxu0 0.0
      %1517 = vmatprep.subr.mxu0 0.0
      %1518 = vmatpush1.msra.mxu0 0.0
      %1519 = vmatprep.subr.mxu0 0.0
      %1520 = vmatpush1.msra.mxu0 0.0
      %1521 = vmatprep.subr.mxu0 0.0
      %1522 = vmatpush1.msra.mxu0 0.0
      %1523 = vmatprep.subr.mxu0 0.0
      %1524 = vmatpush1.msra.mxu0 0.0
      %1525 = vmatprep.subr.mxu0 0.0
      %1526 = vmatpush1.msra.mxu0 0.0
      %1527 = vmatprep.subr.mxu0 0.0
      %1528 = vmatpush1.msra.mxu0 0.0
      %1529 = vmatprep.subr.mxu0 0.0
      %1530 = vmatpush1.msra.mxu0 0.0
      %1531 = vmatprep.subr.mxu0 0.0
      %1532 = vmatpush1.msra.mxu0 0.0
      %1533 = vmatprep.subr.mxu0 0.0
      %1534 = vmatpush1.msra.mxu0 0.0
      %1535 = vmatprep.subr.mxu0 0.0
      %1536 = vmatpush1.msra.mxu0 0.0
      %1537 = vmatprep.subr.mxu0 0.0
      %1538 = vmatpush1.msra.mxu0 0.0
      %1539 = vmatprep.subr.mxu0 0.0
      %1540 = vmatpush1.msra.mxu0 0.0
      %1541 = vmatprep.subr.mxu0 0.0
      %1542 = vmatpush1.msra.mxu0 0.0
      %1543 = vmatprep.subr.mxu0 0.0
      %1544 = vmatpush1.msra.mxu0 0.0
      %1545 = vmatprep.mubr.f32.mxu0 0.0
      %1546 = vmatmul.mubr.f32.gmra.mrb[0].mxu0 %v1476
      %v1547 = vpop.f32.mrb[0].mxu0
      %v1548 = vadd.f32 %v985, %v1547
      %v1549 = vpop.f32.mrb[0].mxu0
      %1550 = vmatprep.mubr.f32.mxu0 0.0
      %1551 = vmatmul.mubr.f32.gmra.mrb[0].mxu0 %v1479
      %v1552 = vpop.f32.mrb[0].mxu0
      %v1553 = vadd.f32 %v986, %v1552
      %v1554 = vpop.f32.mrb[0].mxu0
      %1555 = vdwg.mxu0
      %v1557 = vsel %vm552, %v735, 0
      %v1560 = vsel %vm552, %v736, 0
      %1562 = vmatprep.subr.mxu0 0.0
      %1563 = vmatpush1.msra.mxu0 %v965
      %1564 = vmatprep.subr.mxu0 0.0
      %1565 = vmatpush1.msra.mxu0 %v970
      %1566 = vmatprep.subr.mxu0 0.0
      %1567 = vmatpush1.msra.mxu0 0.0
      %1568 = vmatprep.subr.mxu0 0.0
      %1569 = vmatpush1.msra.mxu0 0.0
      %1570 = vmatprep.subr.mxu0 0.0
      %1571 = vmatpush1.msra.mxu0 0.0
      %1572 = vmatprep.subr.mxu0 0.0
      %1573 = vmatpush1.msra.mxu0 0.0
      %1574 = vmatprep.subr.mxu0 0.0
      %1575 = vmatpush1.msra.mxu0 0.0
      %1576 = vmatprep.subr.mxu0 0.0
      %1577 = vmatpush1.msra.mxu0 0.0
      %1578 = vmatprep.subr.mxu0 0.0
      %1579 = vmatpush1.msra.mxu0 0.0
      %1580 = vmatprep.subr.mxu0 0.0
      %1581 = vmatpush1.msra.mxu0 0.0
      %1582 = vmatprep.subr.mxu0 0.0
      %1583 = vmatpush1.msra.mxu0 0.0
      %1584 = vmatprep.subr.mxu0 0.0
      %1585 = vmatpush1.msra.mxu0 0.0
      %1586 = vmatprep.subr.mxu0 0.0
      %1587 = vmatpush1.msra.mxu0 0.0
      %1588 = vmatprep.subr.mxu0 0.0
      %1589 = vmatpush1.msra.mxu0 0.0
      %1590 = vmatprep.subr.mxu0 0.0
      %1591 = vmatpush1.msra.mxu0 0.0
      %1592 = vmatprep.subr.mxu0 0.0
      %1593 = vmatpush1.msra.mxu0 0.0
      %1594 = vmatprep.subr.mxu0 0.0
      %1595 = vmatpush1.msra.mxu0 0.0
      %1596 = vmatprep.subr.mxu0 0.0
      %1597 = vmatpush1.msra.mxu0 0.0
      %1598 = vmatprep.subr.mxu0 0.0
      %1599 = vmatpush1.msra.mxu0 0.0
      %1600 = vmatprep.subr.mxu0 0.0
      %1601 = vmatpush1.msra.mxu0 0.0
      %1602 = vmatprep.subr.mxu0 0.0
      %1603 = vmatpush1.msra.mxu0 0.0
      %1604 = vmatprep.subr.mxu0 0.0
      %1605 = vmatpush1.msra.mxu0 0.0
      %1606 = vmatprep.subr.mxu0 0.0
      %1607 = vmatpush1.msra.mxu0 0.0
      %1608 = vmatprep.subr.mxu0 0.0
      %1609 = vmatpush1.msra.mxu0 0.0
      %1610 = vmatprep.subr.mxu0 0.0
      %1611 = vmatpush1.msra.mxu0 0.0
      %1612 = vmatprep.subr.mxu0 0.0
      %1613 = vmatpush1.msra.mxu0 0.0
      %1614 = vmatprep.subr.mxu0 0.0
      %1615 = vmatpush1.msra.mxu0 0.0
      %1616 = vmatprep.subr.mxu0 0.0
      %1617 = vmatpush1.msra.mxu0 0.0
      %1618 = vmatprep.subr.mxu0 0.0
      %1619 = vmatpush1.msra.mxu0 0.0
      %1620 = vmatprep.subr.mxu0 0.0
      %1621 = vmatpush1.msra.mxu0 0.0
      %1622 = vmatprep.subr.mxu0 0.0
      %1623 = vmatpush1.msra.mxu0 0.0
      %1624 = vmatprep.subr.mxu0 0.0
      %1625 = vmatpush1.msra.mxu0 0.0
      %1626 = vmatprep.mubr.f32.mxu0 0.0
      %1627 = vmatmul.mubr.f32.gmra.mrb[0].mxu0 %v1557
      %v1628 = vpop.f32.mrb[0].mxu0
      %v1629 = vadd.f32 %v987, %v1628
      %v1630 = vpop.f32.mrb[0].mxu0
      %1631 = vmatprep.mubr.f32.mxu0 0.0
      %1632 = vmatmul.mubr.f32.gmra.mrb[0].mxu0 %v1560
      %v1633 = vpop.f32.mrb[0].mxu0
      %v1634 = vadd.f32 %v988, %v1633
      %v1635 = vpop.f32.mrb[0].mxu0
      %1636 = vdwg.mxu0
      %v1637 = vlaneseq
      %v1638 = vshrl.u32 %v1637, 7
      %v1639 = vsub.s32 0, %v1638
      %v1640 = vrot.slane %v778, %v1639
      %v1641 = vadd.f32 %v1062, %v1640
      %v1642 = vadd.f32 %v1067, %v1640
      %v1643 = vadd.f32 %v1143, %v1640
      %v1644 = vadd.f32 %v1148, %v1640
      %v1645 = vadd.f32 %v1224, %v1640
      %v1646 = vadd.f32 %v1229, %v1640
      %v1647 = vadd.f32 %v1305, %v1640
      %v1648 = vadd.f32 %v1310, %v1640
      %v1649 = vadd.f32 %v1386, %v1640
      %v1650 = vadd.f32 %v1391, %v1640
      %v1651 = vadd.f32 %v1467, %v1640
      %v1652 = vadd.f32 %v1472, %v1640
      %v1653 = vadd.f32 %v1548, %v1640
      %v1654 = vadd.f32 %v1553, %v1640
      %v1655 = vadd.f32 %v1629, %v1640
      %v1656 = vadd.f32 %v1634, %v1640
      %v1657 = vmax.f32 %v1641, 0.0
      %v1658 = vmax.f32 %v1642, 0.0
      %v1659 = vmax.f32 %v1643, 0.0
      %v1660 = vmax.f32 %v1644, 0.0
      %v1661 = vmax.f32 %v1645, 0.0
      %v1662 = vmax.f32 %v1646, 0.0
      %v1663 = vmax.f32 %v1647, 0.0
      %v1664 = vmax.f32 %v1648, 0.0
      %v1665 = vmax.f32 %v1649, 0.0
      %v1666 = vmax.f32 %v1650, 0.0
      %v1667 = vmax.f32 %v1651, 0.0
      %v1668 = vmax.f32 %v1652, 0.0
      %v1669 = vmax.f32 %v1653, 0.0
      %v1670 = vmax.f32 %v1654, 0.0
      %v1671 = vmax.f32 %v1655, 0.0
      %v1672 = vmax.f32 %v1656, 0.0
      %v1673 = vld [vmem:[%s4] sm:$0xf]
      %v1674 = vld [vmem:[%s4 + $0x4] sm:$0xf]
      %v1675 = vld [vmem:[%s4 + $0x8] sm:$0xf]
      %v1676 = vld [vmem:[%s4 + $0xc] sm:$0xf]
      %v1677 = vld [vmem:[%s4 + $0x10] sm:$0xf]
      %v1678 = vld [vmem:[%s4 + $0x14] sm:$0xf]
      %v1679 = vld [vmem:[%s4 + $0x18] sm:$0xf]
      %v1680 = vld [vmem:[%s4 + $0x1c] sm:$0xf]
      %v1681 = vunpack.c.l.bf16 %v1673
      %v1682 = vunpack.c.l.bf16 %v1674
      %v1683 = vunpack.c.l.bf16 %v1675
      %v1684 = vunpack.c.l.bf16 %v1676
      %v1685 = vunpack.c.l.bf16 %v1677
      %v1686 = vunpack.c.l.bf16 %v1678
      %v1687 = vunpack.c.l.bf16 %v1679
      %v1688 = vunpack.c.l.bf16 %v1680
      %v1689 = vld [vmem:[%s5] sm:$0x1]
      %v1690 = vunpack.c.l.bf16 %v1689
      %vm1691 = vcmask 523264
      %v1693 = vsel %vm1691, %v1657, 0
      %v1696 = vsel %vm1691, %v1658, 0
      %v1699 = vsel %vm1691, %v1659, 0
      %v1702 = vsel %vm1691, %v1660, 0
      %v1705 = vsel %vm1691, %v1661, 0
      %v1708 = vsel %vm1691, %v1662, 0
      %v1711 = vsel %vm1691, %v1663, 0
      %v1714 = vsel %vm1691, %v1664, 0
      %v1717 = vsel %vm1691, %v1665, 0
      %v1720 = vsel %vm1691, %v1666, 0
      %v1723 = vsel %vm1691, %v1667, 0
      %v1726 = vsel %vm1691, %v1668, 0
      %v1729 = vsel %vm1691, %v1669, 0
      %v1732 = vsel %vm1691, %v1670, 0
      %v1735 = vsel %vm1691, %v1671, 0
      %v1738 = vsel %vm1691, %v1672, 0
      %1740 = vmatprep.subr.mxu0 0.0
      %1741 = vmatpush1.msra.mxu0 %v1681
      %1742 = vmatprep.subr.mxu0 0.0
      %1743 = vmatpush1.msra.mxu0 %v1682
      %1744 = vmatprep.subr.mxu0 0.0
      %1745 = vmatpush1.msra.mxu0 %v1683
      %1746 = vmatprep.subr.mxu0 0.0
      %1747 = vmatpush1.msra.mxu0 %v1684
      %1748 = vmatprep.subr.mxu0 0.0
      %1749 = vmatpush1.msra.mxu0 %v1685
      %1750 = vmatprep.subr.mxu0 0.0
      %1751 = vmatpush1.msra.mxu0 %v1686
      %1752 = vmatprep.subr.mxu0 0.0
      %1753 = vmatpush1.msra.mxu0 %v1687
      %1754 = vmatprep.subr.mxu0 0.0
      %1755 = vmatpush1.msra.mxu0 %v1688
      %1756 = vmatprep.subr.mxu0 0.0
      %1757 = vmatpush1.msra.mxu0 0.0
      %1758 = vmatprep.subr.mxu0 0.0
      %1759 = vmatpush1.msra.mxu0 0.0
      %1760 = vmatprep.subr.mxu0 0.0
      %1761 = vmatpush1.msra.mxu0 0.0
      %1762 = vmatprep.subr.mxu0 0.0
      %1763 = vmatpush1.msra.mxu0 0.0
      %1764 = vmatprep.subr.mxu0 0.0
      %1765 = vmatpush1.msra.mxu0 0.0
      %1766 = vmatprep.subr.mxu0 0.0
      %1767 = vmatpush1.msra.mxu0 0.0
      %1768 = vmatprep.subr.mxu0 0.0
      %1769 = vmatpush1.msra.mxu0 0.0
      %1770 = vmatprep.subr.mxu0 0.0
      %1771 = vmatpush1.msra.mxu0 0.0
      %1772 = vmatprep.subr.mxu0 0.0
      %1773 = vmatpush1.msra.mxu0 0.0
      %1774 = vmatprep.subr.mxu0 0.0
      %1775 = vmatpush1.msra.mxu0 0.0
      %1776 = vmatprep.subr.mxu0 0.0
      %1777 = vmatpush1.msra.mxu0 0.0
      %1778 = vmatprep.subr.mxu0 0.0
      %1779 = vmatpush1.msra.mxu0 0.0
      %1780 = vmatprep.subr.mxu0 0.0
      %1781 = vmatpush1.msra.mxu0 0.0
      %1782 = vmatprep.subr.mxu0 0.0
      %1783 = vmatpush1.msra.mxu0 0.0
      %1784 = vmatprep.subr.mxu0 0.0
      %1785 = vmatpush1.msra.mxu0 0.0
      %1786 = vmatprep.subr.mxu0 0.0
      %1787 = vmatpush1.msra.mxu0 0.0
      %1788 = vmatprep.subr.mxu0 0.0
      %1789 = vmatpush1.msra.mxu0 0.0
      %1790 = vmatprep.subr.mxu0 0.0
      %1791 = vmatpush1.msra.mxu0 0.0
      %1792 = vmatprep.subr.mxu0 0.0
      %1793 = vmatpush1.msra.mxu0 0.0
      %1794 = vmatprep.subr.mxu0 0.0
      %1795 = vmatpush1.msra.mxu0 0.0
      %1796 = vmatprep.subr.mxu0 0.0
      %1797 = vmatpush1.msra.mxu0 0.0
      %1798 = vmatprep.subr.mxu0 0.0
      %1799 = vmatpush1.msra.mxu0 0.0
      %1800 = vmatprep.subr.mxu0 0.0
      %1801 = vmatpush1.msra.mxu0 0.0
      %1802 = vmatprep.subr.mxu0 0.0
      %1803 = vmatpush1.msra.mxu0 0.0
      %1804 = vmatprep.mubr.f32.mxu0 0.0
      %1805 = vmatmul.mubr.f32.gmra.mrb[0].mxu0 %v1693
      %v1806 = vpop.f32.mrb[0].mxu0
      %v1807 = vadd.f32 0.0, %v1806
      %v1808 = vpop.f32.mrb[0].mxu0
      %1809 = vmatprep.mubr.f32.mxu0 0.0
      %1810 = vmatmul.mubr.f32.gmra.mrb[0].mxu0 %v1696
      %v1811 = vpop.f32.mrb[0].mxu0
      %v1812 = vadd.f32 0.0, %v1811
      %v1813 = vpop.f32.mrb[0].mxu0
      %1814 = vmatprep.mubr.f32.mxu0 0.0
      %1815 = vmatmul.mubr.f32.gmra.mrb[0].mxu0 %v1699
      %v1816 = vpop.f32.mrb[0].mxu0
      %v1817 = vadd.f32 0.0, %v1816
      %v1818 = vpop.f32.mrb[0].mxu0
      %1819 = vmatprep.mubr.f32.mxu0 0.0
      %1820 = vmatmul.mubr.f32.gmra.mrb[0].mxu0 %v1702
      %v1821 = vpop.f32.mrb[0].mxu0
      %v1822 = vadd.f32 0.0, %v1821
      %v1823 = vpop.f32.mrb[0].mxu0
      %1824 = vmatprep.mubr.f32.mxu0 0.0
      %1825 = vmatmul.mubr.f32.gmra.mrb[0].mxu0 %v1705
      %v1826 = vpop.f32.mrb[0].mxu0
      %v1827 = vadd.f32 0.0, %v1826
      %v1828 = vpop.f32.mrb[0].mxu0
      %1829 = vmatprep.mubr.f32.mxu0 0.0
      %1830 = vmatmul.mubr.f32.gmra.mrb[0].mxu0 %v1708
      %v1831 = vpop.f32.mrb[0].mxu0
      %v1832 = vadd.f32 0.0, %v1831
      %v1833 = vpop.f32.mrb[0].mxu0
      %1834 = vmatprep.mubr.f32.mxu0 0.0
      %1835 = vmatmul.mubr.f32.gmra.mrb[0].mxu0 %v1711
      %v1836 = vpop.f32.mrb[0].mxu0
      %v1837 = vadd.f32 0.0, %v1836
      %v1838 = vpop.f32.mrb[0].mxu0
      %1839 = vmatprep.mubr.f32.mxu0 0.0
      %1840 = vmatmul.mubr.f32.gmra.mrb[0].mxu0 %v1714
      %v1841 = vpop.f32.mrb[0].mxu0
      %v1842 = vadd.f32 0.0, %v1841
      %v1843 = vpop.f32.mrb[0].mxu0
      %1844 = vmatprep.mubr.f32.mxu0 0.0
      %1845 = vmatmul.mubr.f32.gmra.mrb[0].mxu0 %v1717
      %v1846 = vpop.f32.mrb[0].mxu0
      %v1847 = vadd.f32 0.0, %v1846
      %v1848 = vpop.f32.mrb[0].mxu0
      %1849 = vmatprep.mubr.f32.mxu0 0.0
      %1850 = vmatmul.mubr.f32.gmra.mrb[0].mxu0 %v1720
      %v1851 = vpop.f32.mrb[0].mxu0
      %v1852 = vadd.f32 0.0, %v1851
      %v1853 = vpop.f32.mrb[0].mxu0
      %1854 = vmatprep.mubr.f32.mxu0 0.0
      %1855 = vmatmul.mubr.f32.gmra.mrb[0].mxu0 %v1723
      %v1856 = vpop.f32.mrb[0].mxu0
      %v1857 = vadd.f32 0.0, %v1856
      %v1858 = vpop.f32.mrb[0].mxu0
      %1859 = vmatprep.mubr.f32.mxu0 0.0
      %1860 = vmatmul.mubr.f32.gmra.mrb[0].mxu0 %v1726
      %v1861 = vpop.f32.mrb[0].mxu0
      %v1862 = vadd.f32 0.0, %v1861
      %v1863 = vpop.f32.mrb[0].mxu0
      %1864 = vmatprep.mubr.f32.mxu0 0.0
      %1865 = vmatmul.mubr.f32.gmra.mrb[0].mxu0 %v1729
      %v1866 = vpop.f32.mrb[0].mxu0
      %v1867 = vadd.f32 0.0, %v1866
      %v1868 = vpop.f32.mrb[0].mxu0
      %1869 = vmatprep.mubr.f32.mxu0 0.0
      %1870 = vmatmul.mubr.f32.gmra.mrb[0].mxu0 %v1732
      %v1871 = vpop.f32.mrb[0].mxu0
      %v1872 = vadd.f32 0.0, %v1871
      %v1873 = vpop.f32.mrb[0].mxu0
      %1874 = vmatprep.mubr.f32.mxu0 0.0
      %1875 = vmatmul.mubr.f32.gmra.mrb[0].mxu0 %v1735
      %v1876 = vpop.f32.mrb[0].mxu0
      %v1877 = vadd.f32 0.0, %v1876
      %v1878 = vpop.f32.mrb[0].mxu0
      %1879 = vmatprep.mubr.f32.mxu0 0.0
      %1880 = vmatmul.mubr.f32.gmra.mrb[0].mxu0 %v1738
      %v1881 = vpop.f32.mrb[0].mxu0
      %v1882 = vadd.f32 0.0, %v1881
      %v1883 = vpop.f32.mrb[0].mxu0
      %1884 = vdwg.mxu0
      %v1885 = vmul.f32 %v737, %v1807
      %v1886 = vmul.f32 %v738, %v1812
      %v1887 = vmul.f32 %v739, %v1817
      %v1888 = vmul.f32 %v740, %v1822
      %v1889 = vmul.f32 %v741, %v1827
      %v1890 = vmul.f32 %v742, %v1832
      %v1891 = vmul.f32 %v743, %v1837
      %v1892 = vmul.f32 %v744, %v1842
      %v1893 = vmul.f32 %v745, %v1847
      %v1894 = vmul.f32 %v746, %v1852
      %v1895 = vmul.f32 %v747, %v1857
      %v1896 = vmul.f32 %v748, %v1862
      %v1897 = vmul.f32 %v749, %v1867
      %v1898 = vmul.f32 %v750, %v1872
      %v1899 = vmul.f32 %v751, %v1877
      %v1900 = vmul.f32 %v752, %v1882
      %1901 = vmatprep.subr.mxu0 0.0
      %1902 = vmatpush1.msra.mxu0 %v1807
      %1903 = vmatprep.subr.mxu0 0.0
      %1904 = vmatpush1.msra.mxu0 %v1812
      %1905 = vmatprep.subr.mxu0 0.0
      %1906 = vmatpush1.msra.mxu0 0.0
      %1907 = vmatprep.subr.mxu0 0.0
      %1908 = vmatpush1.msra.mxu0 0.0
      %1909 = vmatprep.subr.mxu0 0.0
      %1910 = vmatpush1.msra.mxu0 0.0
      %1911 = vmatprep.subr.mxu0 0.0
      %1912 = vmatpush1.msra.mxu0 0.0
      %1913 = vmatprep.subr.mxu0 0.0
      %1914 = vmatpush1.msra.mxu0 0.0
      %1915 = vmatprep.subr.mxu0 0.0
      %1916 = vmatpush1.msra.mxu0 0.0
      %1917 = vmatprep.subr.mxu0 0.0
      %1918 = vmatpush1.msra.mxu0 0.0
      %1919 = vmatprep.subr.mxu0 0.0
      %1920 = vmatpush1.msra.mxu0 0.0
      %1921 = vmatprep.subr.mxu0 0.0
      %1922 = vmatpush1.msra.mxu0 0.0
      %1923 = vmatprep.subr.mxu0 0.0
      %1924 = vmatpush1.msra.mxu0 0.0
      %1925 = vmatprep.subr.mxu0 0.0
      %1926 = vmatpush1.msra.mxu0 0.0
      %1927 = vmatprep.subr.mxu0 0.0
      %1928 = vmatpush1.msra.mxu0 0.0
      %1929 = vmatprep.subr.mxu0 0.0
      %1930 = vmatpush1.msra.mxu0 0.0
      %1931 = vmatprep.subr.mxu0 0.0
      %1932 = vmatpush1.msra.mxu0 0.0
      %1933 = vmatprep.subr.mxu0 0.0
      %1934 = vmatpush1.msra.mxu0 0.0
      %1935 = vmatprep.subr.mxu0 0.0
      %1936 = vmatpush1.msra.mxu0 0.0
      %1937 = vmatprep.subr.mxu0 0.0
      %1938 = vmatpush1.msra.mxu0 0.0
      %1939 = vmatprep.subr.mxu0 0.0
      %1940 = vmatpush1.msra.mxu0 0.0
      %1941 = vmatprep.subr.mxu0 0.0
      %1942 = vmatpush1.msra.mxu0 0.0
      %1943 = vmatprep.subr.mxu0 0.0
      %1944 = vmatpush1.msra.mxu0 0.0
      %1945 = vmatprep.subr.mxu0 0.0
      %1946 = vmatpush1.msra.mxu0 0.0
      %1947 = vmatprep.subr.mxu0 0.0
      %1948 = vmatpush1.msra.mxu0 0.0
      %1949 = vmatprep.subr.mxu0 0.0
      %1950 = vmatpush1.msra.mxu0 0.0
      %1951 = vmatprep.subr.mxu0 0.0
      %1952 = vmatpush1.msra.mxu0 0.0
      %1953 = vmatprep.subr.mxu0 0.0
      %1954 = vmatpush1.msra.mxu0 0.0
      %1955 = vmatprep.subr.mxu0 0.0
      %1956 = vmatpush1.msra.mxu0 0.0
      %1957 = vmatprep.subr.mxu0 0.0
      %1958 = vmatpush1.msra.mxu0 0.0
      %1959 = vmatprep.subr.mxu0 0.0
      %1960 = vmatpush1.msra.mxu0 0.0
      %1961 = vmatprep.subr.mxu0 0.0
      %1962 = vmatpush1.msra.mxu0 0.0
      %1963 = vmatprep.subr.mxu0 0.0
      %1964 = vmatpush1.msra.mxu0 0.0
      %1965 = vmatprep.mubr.f32.mxu0 0.0
      %1966 = vmatmul.mubr.f32.gmra.mrb[0].mxu0 %v990
      %v1967 = vpop.f32.mrb[0].mxu0
      %v1968 = vadd.f32 %v1885, %v1967
      %v1969 = vpop.f32.mrb[0].mxu0
      %1970 = vmatprep.mubr.f32.mxu0 0.0
      %1971 = vmatmul.mubr.f32.gmra.mrb[0].mxu0 %v993
      %v1972 = vpop.f32.mrb[0].mxu0
      %v1973 = vadd.f32 %v1886, %v1972
      %v1974 = vpop.f32.mrb[0].mxu0
      %1975 = vdwg.mxu0
      %1976 = vmatprep.subr.mxu0 0.0
      %1977 = vmatpush1.msra.mxu0 %v1817
      %1978 = vmatprep.subr.mxu0 0.0
      %1979 = vmatpush1.msra.mxu0 %v1822
      %1980 = vmatprep.subr.mxu0 0.0
      %1981 = vmatpush1.msra.mxu0 0.0
      %1982 = vmatprep.subr.mxu0 0.0
      %1983 = vmatpush1.msra.mxu0 0.0
      %1984 = vmatprep.subr.mxu0 0.0
      %1985 = vmatpush1.msra.mxu0 0.0
      %1986 = vmatprep.subr.mxu0 0.0
      %1987 = vmatpush1.msra.mxu0 0.0
      %1988 = vmatprep.subr.mxu0 0.0
      %1989 = vmatpush1.msra.mxu0 0.0
      %1990 = vmatprep.subr.mxu0 0.0
      %1991 = vmatpush1.msra.mxu0 0.0
      %1992 = vmatprep.subr.mxu0 0.0
      %1993 = vmatpush1.msra.mxu0 0.0
      %1994 = vmatprep.subr.mxu0 0.0
      %1995 = vmatpush1.msra.mxu0 0.0
      %1996 = vmatprep.subr.mxu0 0.0
      %1997 = vmatpush1.msra.mxu0 0.0
      %1998 = vmatprep.subr.mxu0 0.0
      %1999 = vmatpush1.msra.mxu0 0.0
      %2000 = vmatprep.subr.mxu0 0.0
      %2001 = vmatpush1.msra.mxu0 0.0
      %2002 = vmatprep.subr.mxu0 0.0
      %2003 = vmatpush1.msra.mxu0 0.0
      %2004 = vmatprep.subr.mxu0 0.0
      %2005 = vmatpush1.msra.mxu0 0.0
      %2006 = vmatprep.subr.mxu0 0.0
      %2007 = vmatpush1.msra.mxu0 0.0
      %2008 = vmatprep.subr.mxu0 0.0
      %2009 = vmatpush1.msra.mxu0 0.0
      %2010 = vmatprep.subr.mxu0 0.0
      %2011 = vmatpush1.msra.mxu0 0.0
      %2012 = vmatprep.subr.mxu0 0.0
      %2013 = vmatpush1.msra.mxu0 0.0
      %2014 = vmatprep.subr.mxu0 0.0
      %2015 = vmatpush1.msra.mxu0 0.0
      %2016 = vmatprep.subr.mxu0 0.0
      %2017 = vmatpush1.msra.mxu0 0.0
      %2018 = vmatprep.subr.mxu0 0.0
      %2019 = vmatpush1.msra.mxu0 0.0
      %2020 = vmatprep.subr.mxu0 0.0
      %2021 = vmatpush1.msra.mxu0 0.0
      %2022 = vmatprep.subr.mxu0 0.0
      %2023 = vmatpush1.msra.mxu0 0.0
      %2024 = vmatprep.subr.mxu0 0.0
      %2025 = vmatpush1.msra.mxu0 0.0
      %2026 = vmatprep.subr.mxu0 0.0
      %2027 = vmatpush1.msra.mxu0 0.0
      %2028 = vmatprep.subr.mxu0 0.0
      %2029 = vmatpush1.msra.mxu0 0.0
      %2030 = vmatprep.subr.mxu0 0.0
      %2031 = vmatpush1.msra.mxu0 0.0
      %2032 = vmatprep.subr.mxu0 0.0
      %2033 = vmatpush1.msra.mxu0 0.0
      %2034 = vmatprep.subr.mxu0 0.0
      %2035 = vmatpush1.msra.mxu0 0.0
      %2036 = vmatprep.subr.mxu0 0.0
      %2037 = vmatpush1.msra.mxu0 0.0
      %2038 = vmatprep.subr.mxu0 0.0
      %2039 = vmatpush1.msra.mxu0 0.0
      %2040 = vmatprep.mubr.f32.mxu0 0.0
      %2041 = vmatmul.mubr.f32.gmra.mrb[0].mxu0 %v1071
      %v2042 = vpop.f32.mrb[0].mxu0
      %v2043 = vadd.f32 %v1887, %v2042
      %v2044 = vpop.f32.mrb[0].mxu0
      %2045 = vmatprep.mubr.f32.mxu0 0.0
      %2046 = vmatmul.mubr.f32.gmra.mrb[0].mxu0 %v1074
      %v2047 = vpop.f32.mrb[0].mxu0
      %v2048 = vadd.f32 %v1888, %v2047
      %v2049 = vpop.f32.mrb[0].mxu0
      %2050 = vdwg.mxu0
      %2051 = vmatprep.subr.mxu0 0.0
      %2052 = vmatpush1.msra.mxu0 %v1827
      %2053 = vmatprep.subr.mxu0 0.0
      %2054 = vmatpush1.msra.mxu0 %v1832
      %2055 = vmatprep.subr.mxu0 0.0
      %2056 = vmatpush1.msra.mxu0 0.0
      %2057 = vmatprep.subr.mxu0 0.0
      %2058 = vmatpush1.msra.mxu0 0.0
      %2059 = vmatprep.subr.mxu0 0.0
      %2060 = vmatpush1.msra.mxu0 0.0
      %2061 = vmatprep.subr.mxu0 0.0
      %2062 = vmatpush1.msra.mxu0 0.0
      %2063 = vmatprep.subr.mxu0 0.0
      %2064 = vmatpush1.msra.mxu0 0.0
      %2065 = vmatprep.subr.mxu0 0.0
      %2066 = vmatpush1.msra.mxu0 0.0
      %2067 = vmatprep.subr.mxu0 0.0
      %2068 = vmatpush1.msra.mxu0 0.0
      %2069 = vmatprep.subr.mxu0 0.0
      %2070 = vmatpush1.msra.mxu0 0.0
      %2071 = vmatprep.subr.mxu0 0.0
      %2072 = vmatpush1.msra.mxu0 0.0
      %2073 = vmatprep.subr.mxu0 0.0
      %2074 = vmatpush1.msra.mxu0 0.0
      %2075 = vmatprep.subr.mxu0 0.0
      %2076 = vmatpush1.msra.mxu0 0.0
      %2077 = vmatprep.subr.mxu0 0.0
      %2078 = vmatpush1.msra.mxu0 0.0
      %2079 = vmatprep.subr.mxu0 0.0
      %2080 = vmatpush1.msra.mxu0 0.0
      %2081 = vmatprep.subr.mxu0 0.0
      %2082 = vmatpush1.msra.mxu0 0.0
      %2083 = vmatprep.subr.mxu0 0.0
      %2084 = vmatpush1.msra.mxu0 0.0
      %2085 = vmatprep.subr.mxu0 0.0
      %2086 = vmatpush1.msra.mxu0 0.0
      %2087 = vmatprep.subr.mxu0 0.0
      %2088 = vmatpush1.msra.mxu0 0.0
      %2089 = vmatprep.subr.mxu0 0.0
      %2090 = vmatpush1.msra.mxu0 0.0
      %2091 = vmatprep.subr.mxu0 0.0
      %2092 = vmatpush1.msra.mxu0 0.0
      %2093 = vmatprep.subr.mxu0 0.0
      %2094 = vmatpush1.msra.mxu0 0.0
      %2095 = vmatprep.subr.mxu0 0.0
      %2096 = vmatpush1.msra.mxu0 0.0
      %2097 = vmatprep.subr.mxu0 0.0
      %2098 = vmatpush1.msra.mxu0 0.0
      %2099 = vmatprep.subr.mxu0 0.0
      %2100 = vmatpush1.msra.mxu0 0.0
      %2101 = vmatprep.subr.mxu0 0.0
      %2102 = vmatpush1.msra.mxu0 0.0
      %2103 = vmatprep.subr.mxu0 0.0
      %2104 = vmatpush1.msra.mxu0 0.0
      %2105 = vmatprep.subr.mxu0 0.0
      %2106 = vmatpush1.msra.mxu0 0.0
      %2107 = vmatprep.subr.mxu0 0.0
      %2108 = vmatpush1.msra.mxu0 0.0
      %2109 = vmatprep.subr.mxu0 0.0
      %2110 = vmatpush1.msra.mxu0 0.0
      %2111 = vmatprep.subr.mxu0 0.0
      %2112 = vmatpush1.msra.mxu0 0.0
      %2113 = vmatprep.subr.mxu0 0.0
      %2114 = vmatpush1.msra.mxu0 0.0
      %2115 = vmatprep.mubr.f32.mxu0 0.0
      %2116 = vmatmul.mubr.f32.gmra.mrb[0].mxu0 %v1152
      %v2117 = vpop.f32.mrb[0].mxu0
      %v2118 = vadd.f32 %v1889, %v2117
      %v2119 = vpop.f32.mrb[0].mxu0
      %2120 = vmatprep.mubr.f32.mxu0 0.0
      %2121 = vmatmul.mubr.f32.gmra.mrb[0].mxu0 %v1155
      %v2122 = vpop.f32.mrb[0].mxu0
      %v2123 = vadd.f32 %v1890, %v2122
      %v2124 = vpop.f32.mrb[0].mxu0
      %2125 = vdwg.mxu0
      %2126 = vmatprep.subr.mxu0 0.0
      %2127 = vmatpush1.msra.mxu0 %v1837
      %2128 = vmatprep.subr.mxu0 0.0
      %2129 = vmatpush1.msra.mxu0 %v1842
      %2130 = vmatprep.subr.mxu0 0.0
      %2131 = vmatpush1.msra.mxu0 0.0
      %2132 = vmatprep.subr.mxu0 0.0
      %2133 = vmatpush1.msra.mxu0 0.0
      %2134 = vmatprep.subr.mxu0 0.0
      %2135 = vmatpush1.msra.mxu0 0.0
      %2136 = vmatprep.subr.mxu0 0.0
      %2137 = vmatpush1.msra.mxu0 0.0
      %2138 = vmatprep.subr.mxu0 0.0
      %2139 = vmatpush1.msra.mxu0 0.0
      %2140 = vmatprep.subr.mxu0 0.0
      %2141 = vmatpush1.msra.mxu0 0.0
      %2142 = vmatprep.subr.mxu0 0.0
      %2143 = vmatpush1.msra.mxu0 0.0
      %2144 = vmatprep.subr.mxu0 0.0
      %2145 = vmatpush1.msra.mxu0 0.0
      %2146 = vmatprep.subr.mxu0 0.0
      %2147 = vmatpush1.msra.mxu0 0.0
      %2148 = vmatprep.subr.mxu0 0.0
      %2149 = vmatpush1.msra.mxu0 0.0
      %2150 = vmatprep.subr.mxu0 0.0
      %2151 = vmatpush1.msra.mxu0 0.0
      %2152 = vmatprep.subr.mxu0 0.0
      %2153 = vmatpush1.msra.mxu0 0.0
      %2154 = vmatprep.subr.mxu0 0.0
      %2155 = vmatpush1.msra.mxu0 0.0
      %2156 = vmatprep.subr.mxu0 0.0
      %2157 = vmatpush1.msra.mxu0 0.0
      %2158 = vmatprep.subr.mxu0 0.0
      %2159 = vmatpush1.msra.mxu0 0.0
      %2160 = vmatprep.subr.mxu0 0.0
      %2161 = vmatpush1.msra.mxu0 0.0
      %2162 = vmatprep.subr.mxu0 0.0
      %2163 = vmatpush1.msra.mxu0 0.0
      %2164 = vmatprep.subr.mxu0 0.0
      %2165 = vmatpush1.msra.mxu0 0.0
      %2166 = vmatprep.subr.mxu0 0.0
      %2167 = vmatpush1.msra.mxu0 0.0
      %2168 = vmatprep.subr.mxu0 0.0
      %2169 = vmatpush1.msra.mxu0 0.0
      %2170 = vmatprep.subr.mxu0 0.0
      %2171 = vmatpush1.msra.mxu0 0.0
      %2172 = vmatprep.subr.mxu0 0.0
      %2173 = vmatpush1.msra.mxu0 0.0
      %2174 = vmatprep.subr.mxu0 0.0
      %2175 = vmatpush1.msra.mxu0 0.0
      %2176 = vmatprep.subr.mxu0 0.0
      %2177 = vmatpush1.msra.mxu0 0.0
      %2178 = vmatprep.subr.mxu0 0.0
      %2179 = vmatpush1.msra.mxu0 0.0
      %2180 = vmatprep.subr.mxu0 0.0
      %2181 = vmatpush1.msra.mxu0 0.0
      %2182 = vmatprep.subr.mxu0 0.0
      %2183 = vmatpush1.msra.mxu0 0.0
      %2184 = vmatprep.subr.mxu0 0.0
      %2185 = vmatpush1.msra.mxu0 0.0
      %2186 = vmatprep.subr.mxu0 0.0
      %2187 = vmatpush1.msra.mxu0 0.0
      %2188 = vmatprep.subr.mxu0 0.0
      %2189 = vmatpush1.msra.mxu0 0.0
      %2190 = vmatprep.mubr.f32.mxu0 0.0
      %2191 = vmatmul.mubr.f32.gmra.mrb[0].mxu0 %v1233
      %v2192 = vpop.f32.mrb[0].mxu0
      %v2193 = vadd.f32 %v1891, %v2192
      %v2194 = vpop.f32.mrb[0].mxu0
      %2195 = vmatprep.mubr.f32.mxu0 0.0
      %2196 = vmatmul.mubr.f32.gmra.mrb[0].mxu0 %v1236
      %v2197 = vpop.f32.mrb[0].mxu0
      %v2198 = vadd.f32 %v1892, %v2197
      %v2199 = vpop.f32.mrb[0].mxu0
      %2200 = vdwg.mxu0
      %2201 = vmatprep.subr.mxu0 0.0
      %2202 = vmatpush1.msra.mxu0 %v1847
      %2203 = vmatprep.subr.mxu0 0.0
      %2204 = vmatpush1.msra.mxu0 %v1852
      %2205 = vmatprep.subr.mxu0 0.0
      %2206 = vmatpush1.msra.mxu0 0.0
      %2207 = vmatprep.subr.mxu0 0.0
      %2208 = vmatpush1.msra.mxu0 0.0
      %2209 = vmatprep.subr.mxu0 0.0
      %2210 = vmatpush1.msra.mxu0 0.0
      %2211 = vmatprep.subr.mxu0 0.0
      %2212 = vmatpush1.msra.mxu0 0.0
      %2213 = vmatprep.subr.mxu0 0.0
      %2214 = vmatpush1.msra.mxu0 0.0
      %2215 = vmatprep.subr.mxu0 0.0
      %2216 = vmatpush1.msra.mxu0 0.0
      %2217 = vmatprep.subr.mxu0 0.0
      %2218 = vmatpush1.msra.mxu0 0.0
      %2219 = vmatprep.subr.mxu0 0.0
      %2220 = vmatpush1.msra.mxu0 0.0
      %2221 = vmatprep.subr.mxu0 0.0
      %2222 = vmatpush1.msra.mxu0 0.0
      %2223 = vmatprep.subr.mxu0 0.0
      %2224 = vmatpush1.msra.mxu0 0.0
      %2225 = vmatprep.subr.mxu0 0.0
      %2226 = vmatpush1.msra.mxu0 0.0
      %2227 = vmatprep.subr.mxu0 0.0
      %2228 = vmatpush1.msra.mxu0 0.0
      %2229 = vmatprep.subr.mxu0 0.0
      %2230 = vmatpush1.msra.mxu0 0.0
      %2231 = vmatprep.subr.mxu0 0.0
      %2232 = vmatpush1.msra.mxu0 0.0
      %2233 = vmatprep.subr.mxu0 0.0
      %2234 = vmatpush1.msra.mxu0 0.0
      %2235 = vmatprep.subr.mxu0 0.0
      %2236 = vmatpush1.msra.mxu0 0.0
      %2237 = vmatprep.subr.mxu0 0.0
      %2238 = vmatpush1.msra.mxu0 0.0
      %2239 = vmatprep.subr.mxu0 0.0
      %2240 = vmatpush1.msra.mxu0 0.0
      %2241 = vmatprep.subr.mxu0 0.0
      %2242 = vmatpush1.msra.mxu0 0.0
      %2243 = vmatprep.subr.mxu0 0.0
      %2244 = vmatpush1.msra.mxu0 0.0
      %2245 = vmatprep.subr.mxu0 0.0
      %2246 = vmatpush1.msra.mxu0 0.0
      %2247 = vmatprep.subr.mxu0 0.0
      %2248 = vmatpush1.msra.mxu0 0.0
      %2249 = vmatprep.subr.mxu0 0.0
      %2250 = vmatpush1.msra.mxu0 0.0
      %2251 = vmatprep.subr.mxu0 0.0
      %2252 = vmatpush1.msra.mxu0 0.0
      %2253 = vmatprep.subr.mxu0 0.0
      %2254 = vmatpush1.msra.mxu0 0.0
      %2255 = vmatprep.subr.mxu0 0.0
      %2256 = vmatpush1.msra.mxu0 0.0
      %2257 = vmatprep.subr.mxu0 0.0
      %2258 = vmatpush1.msra.mxu0 0.0
      %2259 = vmatprep.subr.mxu0 0.0
      %2260 = vmatpush1.msra.mxu0 0.0
      %2261 = vmatprep.subr.mxu0 0.0
      %2262 = vmatpush1.msra.mxu0 0.0
      %2263 = vmatprep.subr.mxu0 0.0
      %2264 = vmatpush1.msra.mxu0 0.0
      %2265 = vmatprep.mubr.f32.mxu0 0.0
      %2266 = vmatmul.mubr.f32.gmra.mrb[0].mxu0 %v1314
      %v2267 = vpop.f32.mrb[0].mxu0
      %v2268 = vadd.f32 %v1893, %v2267
      %v2269 = vpop.f32.mrb[0].mxu0
      %2270 = vmatprep.mubr.f32.mxu0 0.0
      %2271 = vmatmul.mubr.f32.gmra.mrb[0].mxu0 %v1317
      %v2272 = vpop.f32.mrb[0].mxu0
      %v2273 = vadd.f32 %v1894, %v2272
      %v2274 = vpop.f32.mrb[0].mxu0
      %2275 = vdwg.mxu0
      %2276 = vmatprep.subr.mxu0 0.0
      %2277 = vmatpush1.msra.mxu0 %v1857
      %2278 = vmatprep.subr.mxu0 0.0
      %2279 = vmatpush1.msra.mxu0 %v1862
      %2280 = vmatprep.subr.mxu0 0.0
      %2281 = vmatpush1.msra.mxu0 0.0
      %2282 = vmatprep.subr.mxu0 0.0
      %2283 = vmatpush1.msra.mxu0 0.0
      %2284 = vmatprep.subr.mxu0 0.0
      %2285 = vmatpush1.msra.mxu0 0.0
      %2286 = vmatprep.subr.mxu0 0.0
      %2287 = vmatpush1.msra.mxu0 0.0
      %2288 = vmatprep.subr.mxu0 0.0
      %2289 = vmatpush1.msra.mxu0 0.0
      %2290 = vmatprep.subr.mxu0 0.0
      %2291 = vmatpush1.msra.mxu0 0.0
      %2292 = vmatprep.subr.mxu0 0.0
      %2293 = vmatpush1.msra.mxu0 0.0
      %2294 = vmatprep.subr.mxu0 0.0
      %2295 = vmatpush1.msra.mxu0 0.0
      %2296 = vmatprep.subr.mxu0 0.0
      %2297 = vmatpush1.msra.mxu0 0.0
      %2298 = vmatprep.subr.mxu0 0.0
      %2299 = vmatpush1.msra.mxu0 0.0
      %2300 = vmatprep.subr.mxu0 0.0
      %2301 = vmatpush1.msra.mxu0 0.0
      %2302 = vmatprep.subr.mxu0 0.0
      %2303 = vmatpush1.msra.mxu0 0.0
      %2304 = vmatprep.subr.mxu0 0.0
      %2305 = vmatpush1.msra.mxu0 0.0
      %2306 = vmatprep.subr.mxu0 0.0
      %2307 = vmatpush1.msra.mxu0 0.0
      %2308 = vmatprep.subr.mxu0 0.0
      %2309 = vmatpush1.msra.mxu0 0.0
      %2310 = vmatprep.subr.mxu0 0.0
      %2311 = vmatpush1.msra.mxu0 0.0
      %2312 = vmatprep.subr.mxu0 0.0
      %2313 = vmatpush1.msra.mxu0 0.0
      %2314 = vmatprep.subr.mxu0 0.0
      %2315 = vmatpush1.msra.mxu0 0.0
      %2316 = vmatprep.subr.mxu0 0.0
      %2317 = vmatpush1.msra.mxu0 0.0
      %2318 = vmatprep.subr.mxu0 0.0
      %2319 = vmatpush1.msra.mxu0 0.0
      %2320 = vmatprep.subr.mxu0 0.0
      %2321 = vmatpush1.msra.mxu0 0.0
      %2322 = vmatprep.subr.mxu0 0.0
      %2323 = vmatpush1.msra.mxu0 0.0
      %2324 = vmatprep.subr.mxu0 0.0
      %2325 = vmatpush1.msra.mxu0 0.0
      %2326 = vmatprep.subr.mxu0 0.0
      %2327 = vmatpush1.msra.mxu0 0.0
      %2328 = vmatprep.subr.mxu0 0.0
      %2329 = vmatpush1.msra.mxu0 0.0
      %2330 = vmatprep.subr.mxu0 0.0
      %2331 = vmatpush1.msra.mxu0 0.0
      %2332 = vmatprep.subr.mxu0 0.0
      %2333 = vmatpush1.msra.mxu0 0.0
      %2334 = vmatprep.subr.mxu0 0.0
      %2335 = vmatpush1.msra.mxu0 0.0
      %2336 = vmatprep.subr.mxu0 0.0
      %2337 = vmatpush1.msra.mxu0 0.0
      %2338 = vmatprep.subr.mxu0 0.0
      %2339 = vmatpush1.msra.mxu0 0.0
      %2340 = vmatprep.mubr.f32.mxu0 0.0
      %2341 = vmatmul.mubr.f32.gmra.mrb[0].mxu0 %v1395
      %v2342 = vpop.f32.mrb[0].mxu0
      %v2343 = vadd.f32 %v1895, %v2342
      %v2344 = vpop.f32.mrb[0].mxu0
      %2345 = vmatprep.mubr.f32.mxu0 0.0
      %2346 = vmatmul.mubr.f32.gmra.mrb[0].mxu0 %v1398
      %v2347 = vpop.f32.mrb[0].mxu0
      %v2348 = vadd.f32 %v1896, %v2347
      %v2349 = vpop.f32.mrb[0].mxu0
      %2350 = vdwg.mxu0
      %2351 = vmatprep.subr.mxu0 0.0
      %2352 = vmatpush1.msra.mxu0 %v1867
      %2353 = vmatprep.subr.mxu0 0.0
      %2354 = vmatpush1.msra.mxu0 %v1872
      %2355 = vmatprep.subr.mxu0 0.0
      %2356 = vmatpush1.msra.mxu0 0.0
      %2357 = vmatprep.subr.mxu0 0.0
      %2358 = vmatpush1.msra.mxu0 0.0
      %2359 = vmatprep.subr.mxu0 0.0
      %2360 = vmatpush1.msra.mxu0 0.0
      %2361 = vmatprep.subr.mxu0 0.0
      %2362 = vmatpush1.msra.mxu0 0.0
      %2363 = vmatprep.subr.mxu0 0.0
      %2364 = vmatpush1.msra.mxu0 0.0
      %2365 = vmatprep.subr.mxu0 0.0
      %2366 = vmatpush1.msra.mxu0 0.0
      %2367 = vmatprep.subr.mxu0 0.0
      %2368 = vmatpush1.msra.mxu0 0.0
      %2369 = vmatprep.subr.mxu0 0.0
      %2370 = vmatpush1.msra.mxu0 0.0
      %2371 = vmatprep.subr.mxu0 0.0
      %2372 = vmatpush1.msra.mxu0 0.0
      %2373 = vmatprep.subr.mxu0 0.0
      %2374 = vmatpush1.msra.mxu0 0.0
      %2375 = vmatprep.subr.mxu0 0.0
      %2376 = vmatpush1.msra.mxu0 0.0
      %2377 = vmatprep.subr.mxu0 0.0
      %2378 = vmatpush1.msra.mxu0 0.0
      %2379 = vmatprep.subr.mxu0 0.0
      %2380 = vmatpush1.msra.mxu0 0.0
      %2381 = vmatprep.subr.mxu0 0.0
      %2382 = vmatpush1.msra.mxu0 0.0
      %2383 = vmatprep.subr.mxu0 0.0
      %2384 = vmatpush1.msra.mxu0 0.0
      %2385 = vmatprep.subr.mxu0 0.0
      %2386 = vmatpush1.msra.mxu0 0.0
      %2387 = vmatprep.subr.mxu0 0.0
      %2388 = vmatpush1.msra.mxu0 0.0
      %2389 = vmatprep.subr.mxu0 0.0
      %2390 = vmatpush1.msra.mxu0 0.0
      %2391 = vmatprep.subr.mxu0 0.0
      %2392 = vmatpush1.msra.mxu0 0.0
      %2393 = vmatprep.subr.mxu0 0.0
      %2394 = vmatpush1.msra.mxu0 0.0
      %2395 = vmatprep.subr.mxu0 0.0
      %2396 = vmatpush1.msra.mxu0 0.0
      %2397 = vmatprep.subr.mxu0 0.0
      %2398 = vmatpush1.msra.mxu0 0.0
      %2399 = vmatprep.subr.mxu0 0.0
      %2400 = vmatpush1.msra.mxu0 0.0
      %2401 = vmatprep.subr.mxu0 0.0
      %2402 = vmatpush1.msra.mxu0 0.0
      %2403 = vmatprep.subr.mxu0 0.0
      %2404 = vmatpush1.msra.mxu0 0.0
      %2405 = vmatprep.subr.mxu0 0.0
      %2406 = vmatpush1.msra.mxu0 0.0
      %2407 = vmatprep.subr.mxu0 0.0
      %2408 = vmatpush1.msra.mxu0 0.0
      %2409 = vmatprep.subr.mxu0 0.0
      %2410 = vmatpush1.msra.mxu0 0.0
      %2411 = vmatprep.subr.mxu0 0.0
      %2412 = vmatpush1.msra.mxu0 0.0
      %2413 = vmatprep.subr.mxu0 0.0
      %2414 = vmatpush1.msra.mxu0 0.0
      %2415 = vmatprep.mubr.f32.mxu0 0.0
      %2416 = vmatmul.mubr.f32.gmra.mrb[0].mxu0 %v1476
      %v2417 = vpop.f32.mrb[0].mxu0
      %v2418 = vadd.f32 %v1897, %v2417
      %v2419 = vpop.f32.mrb[0].mxu0
      %2420 = vmatprep.mubr.f32.mxu0 0.0
      %2421 = vmatmul.mubr.f32.gmra.mrb[0].mxu0 %v1479
      %v2422 = vpop.f32.mrb[0].mxu0
      %v2423 = vadd.f32 %v1898, %v2422
      %v2424 = vpop.f32.mrb[0].mxu0
      %2425 = vdwg.mxu0
      %2426 = vmatprep.subr.mxu0 0.0
      %2427 = vmatpush1.msra.mxu0 %v1877
      %2428 = vmatprep.subr.mxu0 0.0
      %2429 = vmatpush1.msra.mxu0 %v1882
      %2430 = vmatprep.subr.mxu0 0.0
      %2431 = vmatpush1.msra.mxu0 0.0
      %2432 = vmatprep.subr.mxu0 0.0
      %2433 = vmatpush1.msra.mxu0 0.0
      %2434 = vmatprep.subr.mxu0 0.0
      %2435 = vmatpush1.msra.mxu0 0.0
      %2436 = vmatprep.subr.mxu0 0.0
      %2437 = vmatpush1.msra.mxu0 0.0
      %2438 = vmatprep.subr.mxu0 0.0
      %2439 = vmatpush1.msra.mxu0 0.0
      %2440 = vmatprep.subr.mxu0 0.0
      %2441 = vmatpush1.msra.mxu0 0.0
      %2442 = vmatprep.subr.mxu0 0.0
      %2443 = vmatpush1.msra.mxu0 0.0
      %2444 = vmatprep.subr.mxu0 0.0
      %2445 = vmatpush1.msra.mxu0 0.0
      %2446 = vmatprep.subr.mxu0 0.0
      %2447 = vmatpush1.msra.mxu0 0.0
      %2448 = vmatprep.subr.mxu0 0.0
      %2449 = vmatpush1.msra.mxu0 0.0
      %2450 = vmatprep.subr.mxu0 0.0
      %2451 = vmatpush1.msra.mxu0 0.0
      %2452 = vmatprep.subr.mxu0 0.0
      %2453 = vmatpush1.msra.mxu0 0.0
      %2454 = vmatprep.subr.mxu0 0.0
      %2455 = vmatpush1.msra.mxu0 0.0
      %2456 = vmatprep.subr.mxu0 0.0
      %2457 = vmatpush1.msra.mxu0 0.0
      %2458 = vmatprep.subr.mxu0 0.0
      %2459 = vmatpush1.msra.mxu0 0.0
      %2460 = vmatprep.subr.mxu0 0.0
      %2461 = vmatpush1.msra.mxu0 0.0
      %2462 = vmatprep.subr.mxu0 0.0
      %2463 = vmatpush1.msra.mxu0 0.0
      %2464 = vmatprep.subr.mxu0 0.0
      %2465 = vmatpush1.msra.mxu0 0.0
      %2466 = vmatprep.subr.mxu0 0.0
      %2467 = vmatpush1.msra.mxu0 0.0
      %2468 = vmatprep.subr.mxu0 0.0
      %2469 = vmatpush1.msra.mxu0 0.0
      %2470 = vmatprep.subr.mxu0 0.0
      %2471 = vmatpush1.msra.mxu0 0.0
      %2472 = vmatprep.subr.mxu0 0.0
      %2473 = vmatpush1.msra.mxu0 0.0
      %2474 = vmatprep.subr.mxu0 0.0
      %2475 = vmatpush1.msra.mxu0 0.0
      %2476 = vmatprep.subr.mxu0 0.0
      %2477 = vmatpush1.msra.mxu0 0.0
      %2478 = vmatprep.subr.mxu0 0.0
      %2479 = vmatpush1.msra.mxu0 0.0
      %2480 = vmatprep.subr.mxu0 0.0
      %2481 = vmatpush1.msra.mxu0 0.0
      %2482 = vmatprep.subr.mxu0 0.0
      %2483 = vmatpush1.msra.mxu0 0.0
      %2484 = vmatprep.subr.mxu0 0.0
      %2485 = vmatpush1.msra.mxu0 0.0
      %2486 = vmatprep.subr.mxu0 0.0
      %2487 = vmatpush1.msra.mxu0 0.0
      %2488 = vmatprep.subr.mxu0 0.0
      %2489 = vmatpush1.msra.mxu0 0.0
      %2490 = vmatprep.mubr.f32.mxu0 0.0
      %2491 = vmatmul.mubr.f32.gmra.mrb[0].mxu0 %v1557
      %v2492 = vpop.f32.mrb[0].mxu0
      %v2493 = vadd.f32 %v1899, %v2492
      %v2494 = vpop.f32.mrb[0].mxu0
      %2495 = vmatprep.mubr.f32.mxu0 0.0
      %2496 = vmatmul.mubr.f32.gmra.mrb[0].mxu0 %v1560
      %v2497 = vpop.f32.mrb[0].mxu0
      %v2498 = vadd.f32 %v1900, %v2497
      %v2499 = vpop.f32.mrb[0].mxu0
      %2500 = vdwg.mxu0
      %v2501 = vlaneseq
      %v2502 = vshrl.u32 %v2501, 7
      %v2503 = vsub.s32 0, %v2502
      %v2504 = vrot.slane %v1690, %v2503
      %v2505 = vadd.f32 %v1968, %v2504
      %v2506 = vadd.f32 %v1973, %v2504
      %v2507 = vadd.f32 %v2043, %v2504
      %v2508 = vadd.f32 %v2048, %v2504
      %v2509 = vadd.f32 %v2118, %v2504
      %v2510 = vadd.f32 %v2123, %v2504
      %v2511 = vadd.f32 %v2193, %v2504
      %v2512 = vadd.f32 %v2198, %v2504
      %v2513 = vadd.f32 %v2268, %v2504
      %v2514 = vadd.f32 %v2273, %v2504
      %v2515 = vadd.f32 %v2343, %v2504
      %v2516 = vadd.f32 %v2348, %v2504
      %v2517 = vadd.f32 %v2418, %v2504
      %v2518 = vadd.f32 %v2423, %v2504
      %v2519 = vadd.f32 %v2493, %v2504
      %v2520 = vadd.f32 %v2498, %v2504
      %v2521 = vmax.f32 %v2505, 0.0
      %v2522 = vmax.f32 %v2506, 0.0
      %v2523 = vmax.f32 %v2507, 0.0
      %v2524 = vmax.f32 %v2508, 0.0
      %v2525 = vmax.f32 %v2509, 0.0
      %v2526 = vmax.f32 %v2510, 0.0
      %v2527 = vmax.f32 %v2511, 0.0
      %v2528 = vmax.f32 %v2512, 0.0
      %v2529 = vmax.f32 %v2513, 0.0
      %v2530 = vmax.f32 %v2514, 0.0
      %v2531 = vmax.f32 %v2515, 0.0
      %v2532 = vmax.f32 %v2516, 0.0
      %v2533 = vmax.f32 %v2517, 0.0
      %v2534 = vmax.f32 %v2518, 0.0
      %v2535 = vmax.f32 %v2519, 0.0
      %v2536 = vmax.f32 %v2520, 0.0
      %v2537 = vld [vmem:[%s6] sm:$0xf]
      %v2538 = vld [vmem:[%s6 + $0x4] sm:$0xf]
      %v2539 = vld [vmem:[%s6 + $0x8] sm:$0xf]
      %v2540 = vld [vmem:[%s6 + $0xc] sm:$0xf]
      %v2541 = vld [vmem:[%s6 + $0x10] sm:$0xf]
      %v2542 = vld [vmem:[%s6 + $0x14] sm:$0xf]
      %v2543 = vld [vmem:[%s6 + $0x18] sm:$0xf]
      %v2544 = vld [vmem:[%s6 + $0x1c] sm:$0xf]
      %v2545 = vunpack.c.l.bf16 %v2537
      %v2546 = vunpack.c.l.bf16 %v2538
      %v2547 = vunpack.c.l.bf16 %v2539
      %v2548 = vunpack.c.l.bf16 %v2540
      %v2549 = vunpack.c.l.bf16 %v2541
      %v2550 = vunpack.c.l.bf16 %v2542
      %v2551 = vunpack.c.l.bf16 %v2543
      %v2552 = vunpack.c.l.bf16 %v2544
      %v2553 = vld [vmem:[%s7] sm:$0x1]
      %v2554 = vunpack.c.l.bf16 %v2553
      %v2556 = vsel %vm1691, %v2521, 0
      %v2559 = vsel %vm1691, %v2522, 0
      %v2562 = vsel %vm1691, %v2523, 0
      %v2565 = vsel %vm1691, %v2524, 0
      %v2568 = vsel %vm1691, %v2525, 0
      %v2571 = vsel %vm1691, %v2526, 0
      %v2574 = vsel %vm1691, %v2527, 0
      %v2577 = vsel %vm1691, %v2528, 0
      %v2580 = vsel %vm1691, %v2529, 0
      %v2583 = vsel %vm1691, %v2530, 0
      %v2586 = vsel %vm1691, %v2531, 0
      %v2589 = vsel %vm1691, %v2532, 0
      %v2592 = vsel %vm1691, %v2533, 0
      %v2595 = vsel %vm1691, %v2534, 0
      %v2598 = vsel %vm1691, %v2535, 0
      %v2601 = vsel %vm1691, %v2536, 0
      %2603 = vmatprep.subr.mxu0 0.0
      %2604 = vmatpush1.msra.mxu0 %v2545
      %2605 = vmatprep.subr.mxu0 0.0
      %2606 = vmatpush1.msra.mxu0 %v2546
      %2607 = vmatprep.subr.mxu0 0.0
      %2608 = vmatpush1.msra.mxu0 %v2547
      %2609 = vmatprep.subr.mxu0 0.0
      %2610 = vmatpush1.msra.mxu0 %v2548
      %2611 = vmatprep.subr.mxu0 0.0
      %2612 = vmatpush1.msra.mxu0 %v2549
      %2613 = vmatprep.subr.mxu0 0.0
      %2614 = vmatpush1.msra.mxu0 %v2550
      %2615 = vmatprep.subr.mxu0 0.0
      %2616 = vmatpush1.msra.mxu0 %v2551
      %2617 = vmatprep.subr.mxu0 0.0
      %2618 = vmatpush1.msra.mxu0 %v2552
      %2619 = vmatprep.subr.mxu0 0.0
      %2620 = vmatpush1.msra.mxu0 0.0
      %2621 = vmatprep.subr.mxu0 0.0
      %2622 = vmatpush1.msra.mxu0 0.0
      %2623 = vmatprep.subr.mxu0 0.0
      %2624 = vmatpush1.msra.mxu0 0.0
      %2625 = vmatprep.subr.mxu0 0.0
      %2626 = vmatpush1.msra.mxu0 0.0
      %2627 = vmatprep.subr.mxu0 0.0
      %2628 = vmatpush1.msra.mxu0 0.0
      %2629 = vmatprep.subr.mxu0 0.0
      %2630 = vmatpush1.msra.mxu0 0.0
      %2631 = vmatprep.subr.mxu0 0.0
      %2632 = vmatpush1.msra.mxu0 0.0
      %2633 = vmatprep.subr.mxu0 0.0
      %2634 = vmatpush1.msra.mxu0 0.0
      %2635 = vmatprep.subr.mxu0 0.0
      %2636 = vmatpush1.msra.mxu0 0.0
      %2637 = vmatprep.subr.mxu0 0.0
      %2638 = vmatpush1.msra.mxu0 0.0
      %2639 = vmatprep.subr.mxu0 0.0
      %2640 = vmatpush1.msra.mxu0 0.0
      %2641 = vmatprep.subr.mxu0 0.0
      %2642 = vmatpush1.msra.mxu0 0.0
      %2643 = vmatprep.subr.mxu0 0.0
      %2644 = vmatpush1.msra.mxu0 0.0
      %2645 = vmatprep.subr.mxu0 0.0
      %2646 = vmatpush1.msra.mxu0 0.0
      %2647 = vmatprep.subr.mxu0 0.0
      %2648 = vmatpush1.msra.mxu0 0.0
      %2649 = vmatprep.subr.mxu0 0.0
      %2650 = vmatpush1.msra.mxu0 0.0
      %2651 = vmatprep.subr.mxu0 0.0
      %2652 = vmatpush1.msra.mxu0 0.0
      %2653 = vmatprep.subr.mxu0 0.0
      %2654 = vmatpush1.msra.mxu0 0.0
      %2655 = vmatprep.subr.mxu0 0.0
      %2656 = vmatpush1.msra.mxu0 0.0
      %2657 = vmatprep.subr.mxu0 0.0
      %2658 = vmatpush1.msra.mxu0 0.0
      %2659 = vmatprep.subr.mxu0 0.0
      %2660 = vmatpush1.msra.mxu0 0.0
      %2661 = vmatprep.subr.mxu0 0.0
      %2662 = vmatpush1.msra.mxu0 0.0
      %2663 = vmatprep.subr.mxu0 0.0
      %2664 = vmatpush1.msra.mxu0 0.0
      %2665 = vmatprep.subr.mxu0 0.0
      %2666 = vmatpush1.msra.mxu0 0.0
      %2667 = vmatprep.mubr.f32.mxu0 0.0
      %2668 = vmatmul.mubr.f32.gmra.mrb[0].mxu0 %v2556
      %v2669 = vpop.f32.mrb[0].mxu0
      %v2670 = vadd.f32 0.0, %v2669
      %v2671 = vpop.f32.mrb[0].mxu0
      %2672 = vmatprep.mubr.f32.mxu0 0.0
      %2673 = vmatmul.mubr.f32.gmra.mrb[0].mxu0 %v2559
      %v2674 = vpop.f32.mrb[0].mxu0
      %v2675 = vadd.f32 0.0, %v2674
      %v2676 = vpop.f32.mrb[0].mxu0
      %2677 = vmatprep.mubr.f32.mxu0 0.0
      %2678 = vmatmul.mubr.f32.gmra.mrb[0].mxu0 %v2562
      %v2679 = vpop.f32.mrb[0].mxu0
      %v2680 = vadd.f32 0.0, %v2679
      %v2681 = vpop.f32.mrb[0].mxu0
      %2682 = vmatprep.mubr.f32.mxu0 0.0
      %2683 = vmatmul.mubr.f32.gmra.mrb[0].mxu0 %v2565
      %v2684 = vpop.f32.mrb[0].mxu0
      %v2685 = vadd.f32 0.0, %v2684
      %v2686 = vpop.f32.mrb[0].mxu0
      %2687 = vmatprep.mubr.f32.mxu0 0.0
      %2688 = vmatmul.mubr.f32.gmra.mrb[0].mxu0 %v2568
      %v2689 = vpop.f32.mrb[0].mxu0
      %v2690 = vadd.f32 0.0, %v2689
      %v2691 = vpop.f32.mrb[0].mxu0
      %2692 = vmatprep.mubr.f32.mxu0 0.0
      %2693 = vmatmul.mubr.f32.gmra.mrb[0].mxu0 %v2571
      %v2694 = vpop.f32.mrb[0].mxu0
      %v2695 = vadd.f32 0.0, %v2694
      %v2696 = vpop.f32.mrb[0].mxu0
      %2697 = vmatprep.mubr.f32.mxu0 0.0
      %2698 = vmatmul.mubr.f32.gmra.mrb[0].mxu0 %v2574
      %v2699 = vpop.f32.mrb[0].mxu0
      %v2700 = vadd.f32 0.0, %v2699
      %v2701 = vpop.f32.mrb[0].mxu0
      %2702 = vmatprep.mubr.f32.mxu0 0.0
      %2703 = vmatmul.mubr.f32.gmra.mrb[0].mxu0 %v2577
      %v2704 = vpop.f32.mrb[0].mxu0
      %v2705 = vadd.f32 0.0, %v2704
      %v2706 = vpop.f32.mrb[0].mxu0
      %2707 = vmatprep.mubr.f32.mxu0 0.0
      %2708 = vmatmul.mubr.f32.gmra.mrb[0].mxu0 %v2580
      %v2709 = vpop.f32.mrb[0].mxu0
      %v2710 = vadd.f32 0.0, %v2709
      %v2711 = vpop.f32.mrb[0].mxu0
      %2712 = vmatprep.mubr.f32.mxu0 0.0
      %2713 = vmatmul.mubr.f32.gmra.mrb[0].mxu0 %v2583
      %v2714 = vpop.f32.mrb[0].mxu0
      %v2715 = vadd.f32 0.0, %v2714
      %v2716 = vpop.f32.mrb[0].mxu0
      %2717 = vmatprep.mubr.f32.mxu0 0.0
      %2718 = vmatmul.mubr.f32.gmra.mrb[0].mxu0 %v2586
      %v2719 = vpop.f32.mrb[0].mxu0
      %v2720 = vadd.f32 0.0, %v2719
      %v2721 = vpop.f32.mrb[0].mxu0
      %2722 = vmatprep.mubr.f32.mxu0 0.0
      %2723 = vmatmul.mubr.f32.gmra.mrb[0].mxu0 %v2589
      %v2724 = vpop.f32.mrb[0].mxu0
      %v2725 = vadd.f32 0.0, %v2724
      %v2726 = vpop.f32.mrb[0].mxu0
      %2727 = vmatprep.mubr.f32.mxu0 0.0
      %2728 = vmatmul.mubr.f32.gmra.mrb[0].mxu0 %v2592
      %v2729 = vpop.f32.mrb[0].mxu0
      %v2730 = vadd.f32 0.0, %v2729
      %v2731 = vpop.f32.mrb[0].mxu0
      %2732 = vmatprep.mubr.f32.mxu0 0.0
      %2733 = vmatmul.mubr.f32.gmra.mrb[0].mxu0 %v2595
      %v2734 = vpop.f32.mrb[0].mxu0
      %v2735 = vadd.f32 0.0, %v2734
      %v2736 = vpop.f32.mrb[0].mxu0
      %2737 = vmatprep.mubr.f32.mxu0 0.0
      %2738 = vmatmul.mubr.f32.gmra.mrb[0].mxu0 %v2598
      %v2739 = vpop.f32.mrb[0].mxu0
      %v2740 = vadd.f32 0.0, %v2739
      %v2741 = vpop.f32.mrb[0].mxu0
      %2742 = vmatprep.mubr.f32.mxu0 0.0
      %2743 = vmatmul.mubr.f32.gmra.mrb[0].mxu0 %v2601
      %v2744 = vpop.f32.mrb[0].mxu0
      %v2745 = vadd.f32 0.0, %v2744
      %v2746 = vpop.f32.mrb[0].mxu0
      %2747 = vdwg.mxu0
      %v2748 = vmul.f32 %v737, %v2670
      %v2749 = vmul.f32 %v738, %v2675
      %v2750 = vmul.f32 %v739, %v2680
      %v2751 = vmul.f32 %v740, %v2685
      %v2752 = vmul.f32 %v741, %v2690
      %v2753 = vmul.f32 %v742, %v2695
      %v2754 = vmul.f32 %v743, %v2700
      %v2755 = vmul.f32 %v744, %v2705
      %v2756 = vmul.f32 %v745, %v2710
      %v2757 = vmul.f32 %v746, %v2715
      %v2758 = vmul.f32 %v747, %v2720
      %v2759 = vmul.f32 %v748, %v2725
      %v2760 = vmul.f32 %v749, %v2730
      %v2761 = vmul.f32 %v750, %v2735
      %v2762 = vmul.f32 %v751, %v2740
      %v2763 = vmul.f32 %v752, %v2745
      %2764 = vmatprep.subr.mxu0 0.0
      %2765 = vmatpush1.msra.mxu0 %v2670
      %2766 = vmatprep.subr.mxu0 0.0
      %2767 = vmatpush1.msra.mxu0 %v2675
      %2768 = vmatprep.subr.mxu0 0.0
      %2769 = vmatpush1.msra.mxu0 0.0
      %2770 = vmatprep.subr.mxu0 0.0
      %2771 = vmatpush1.msra.mxu0 0.0
      %2772 = vmatprep.subr.mxu0 0.0
      %2773 = vmatpush1.msra.mxu0 0.0
      %2774 = vmatprep.subr.mxu0 0.0
      %2775 = vmatpush1.msra.mxu0 0.0
      %2776 = vmatprep.subr.mxu0 0.0
      %2777 = vmatpush1.msra.mxu0 0.0
      %2778 = vmatprep.subr.mxu0 0.0
      %2779 = vmatpush1.msra.mxu0 0.0
      %2780 = vmatprep.subr.mxu0 0.0
      %2781 = vmatpush1.msra.mxu0 0.0
      %2782 = vmatprep.subr.mxu0 0.0
      %2783 = vmatpush1.msra.mxu0 0.0
      %2784 = vmatprep.subr.mxu0 0.0
      %2785 = vmatpush1.msra.mxu0 0.0
      %2786 = vmatprep.subr.mxu0 0.0
      %2787 = vmatpush1.msra.mxu0 0.0
      %2788 = vmatprep.subr.mxu0 0.0
      %2789 = vmatpush1.msra.mxu0 0.0
      %2790 = vmatprep.subr.mxu0 0.0
      %2791 = vmatpush1.msra.mxu0 0.0
      %2792 = vmatprep.subr.mxu0 0.0
      %2793 = vmatpush1.msra.mxu0 0.0
      %2794 = vmatprep.subr.mxu0 0.0
      %2795 = vmatpush1.msra.mxu0 0.0
      %2796 = vmatprep.subr.mxu0 0.0
      %2797 = vmatpush1.msra.mxu0 0.0
      %2798 = vmatprep.subr.mxu0 0.0
      %2799 = vmatpush1.msra.mxu0 0.0
      %2800 = vmatprep.subr.mxu0 0.0
      %2801 = vmatpush1.msra.mxu0 0.0
      %2802 = vmatprep.subr.mxu0 0.0
      %2803 = vmatpush1.msra.mxu0 0.0
      %2804 = vmatprep.subr.mxu0 0.0
      %2805 = vmatpush1.msra.mxu0 0.0
      %2806 = vmatprep.subr.mxu0 0.0
      %2807 = vmatpush1.msra.mxu0 0.0
      %2808 = vmatprep.subr.mxu0 0.0
      %2809 = vmatpush1.msra.mxu0 0.0
      %2810 = vmatprep.subr.mxu0 0.0
      %2811 = vmatpush1.msra.mxu0 0.0
      %2812 = vmatprep.subr.mxu0 0.0
      %2813 = vmatpush1.msra.mxu0 0.0
      %2814 = vmatprep.subr.mxu0 0.0
      %2815 = vmatpush1.msra.mxu0 0.0
      %2816 = vmatprep.subr.mxu0 0.0
      %2817 = vmatpush1.msra.mxu0 0.0
      %2818 = vmatprep.subr.mxu0 0.0
      %2819 = vmatpush1.msra.mxu0 0.0
      %2820 = vmatprep.subr.mxu0 0.0
      %2821 = vmatpush1.msra.mxu0 0.0
      %2822 = vmatprep.subr.mxu0 0.0
      %2823 = vmatpush1.msra.mxu0 0.0
      %2824 = vmatprep.subr.mxu0 0.0
      %2825 = vmatpush1.msra.mxu0 0.0
      %2826 = vmatprep.subr.mxu0 0.0
      %2827 = vmatpush1.msra.mxu0 0.0
      %2828 = vmatprep.mubr.f32.mxu0 0.0
      %2829 = vmatmul.mubr.f32.gmra.mrb[0].mxu0 %v990
      %v2830 = vpop.f32.mrb[0].mxu0
      %v2831 = vadd.f32 %v2748, %v2830
      %v2832 = vpop.f32.mrb[0].mxu0
      %2833 = vmatprep.mubr.f32.mxu0 0.0
      %2834 = vmatmul.mubr.f32.gmra.mrb[0].mxu0 %v993
      %v2835 = vpop.f32.mrb[0].mxu0
      %v2836 = vadd.f32 %v2749, %v2835
      %v2837 = vpop.f32.mrb[0].mxu0
      %2838 = vdwg.mxu0
      %2839 = vmatprep.subr.mxu0 0.0
      %2840 = vmatpush1.msra.mxu0 %v2680
      %2841 = vmatprep.subr.mxu0 0.0
      %2842 = vmatpush1.msra.mxu0 %v2685
      %2843 = vmatprep.subr.mxu0 0.0
      %2844 = vmatpush1.msra.mxu0 0.0
      %2845 = vmatprep.subr.mxu0 0.0
      %2846 = vmatpush1.msra.mxu0 0.0
      %2847 = vmatprep.subr.mxu0 0.0
      %2848 = vmatpush1.msra.mxu0 0.0
      %2849 = vmatprep.subr.mxu0 0.0
      %2850 = vmatpush1.msra.mxu0 0.0
      %2851 = vmatprep.subr.mxu0 0.0
      %2852 = vmatpush1.msra.mxu0 0.0
      %2853 = vmatprep.subr.mxu0 0.0
      %2854 = vmatpush1.msra.mxu0 0.0
      %2855 = vmatprep.subr.mxu0 0.0
      %2856 = vmatpush1.msra.mxu0 0.0
      %2857 = vmatprep.subr.mxu0 0.0
      %2858 = vmatpush1.msra.mxu0 0.0
      %2859 = vmatprep.subr.mxu0 0.0
      %2860 = vmatpush1.msra.mxu0 0.0
      %2861 = vmatprep.subr.mxu0 0.0
      %2862 = vmatpush1.msra.mxu0 0.0
      %2863 = vmatprep.subr.mxu0 0.0
      %2864 = vmatpush1.msra.mxu0 0.0
      %2865 = vmatprep.subr.mxu0 0.0
      %2866 = vmatpush1.msra.mxu0 0.0
      %2867 = vmatprep.subr.mxu0 0.0
      %2868 = vmatpush1.msra.mxu0 0.0
      %2869 = vmatprep.subr.mxu0 0.0
      %2870 = vmatpush1.msra.mxu0 0.0
      %2871 = vmatprep.subr.mxu0 0.0
      %2872 = vmatpush1.msra.mxu0 0.0
      %2873 = vmatprep.subr.mxu0 0.0
      %2874 = vmatpush1.msra.mxu0 0.0
      %2875 = vmatprep.subr.mxu0 0.0
      %2876 = vmatpush1.msra.mxu0 0.0
      %2877 = vmatprep.subr.mxu0 0.0
      %2878 = vmatpush1.msra.mxu0 0.0
      %2879 = vmatprep.subr.mxu0 0.0
      %2880 = vmatpush1.msra.mxu0 0.0
      %2881 = vmatprep.subr.mxu0 0.0
      %2882 = vmatpush1.msra.mxu0 0.0
      %2883 = vmatprep.subr.mxu0 0.0
      %2884 = vmatpush1.msra.mxu0 0.0
      %2885 = vmatprep.subr.mxu0 0.0
      %2886 = vmatpush1.msra.mxu0 0.0
      %2887 = vmatprep.subr.mxu0 0.0
      %2888 = vmatpush1.msra.mxu0 0.0
      %2889 = vmatprep.subr.mxu0 0.0
      %2890 = vmatpush1.msra.mxu0 0.0
      %2891 = vmatprep.subr.mxu0 0.0
      %2892 = vmatpush1.msra.mxu0 0.0
      %2893 = vmatprep.subr.mxu0 0.0
      %2894 = vmatpush1.msra.mxu0 0.0
      %2895 = vmatprep.subr.mxu0 0.0
      %2896 = vmatpush1.msra.mxu0 0.0
      %2897 = vmatprep.subr.mxu0 0.0
      %2898 = vmatpush1.msra.mxu0 0.0
      %2899 = vmatprep.subr.mxu0 0.0
      %2900 = vmatpush1.msra.mxu0 0.0
      %2901 = vmatprep.subr.mxu0 0.0
      %2902 = vmatpush1.msra.mxu0 0.0
      %2903 = vmatprep.mubr.f32.mxu0 0.0
      %2904 = vmatmul.mubr.f32.gmra.mrb[0].mxu0 %v1071
      %v2905 = vpop.f32.mrb[0].mxu0
      %v2906 = vadd.f32 %v2750, %v2905
      %v2907 = vpop.f32.mrb[0].mxu0
      %2908 = vmatprep.mubr.f32.mxu0 0.0
      %2909 = vmatmul.mubr.f32.gmra.mrb[0].mxu0 %v1074
      %v2910 = vpop.f32.mrb[0].mxu0
      %v2911 = vadd.f32 %v2751, %v2910
      %v2912 = vpop.f32.mrb[0].mxu0
      %2913 = vdwg.mxu0
      %2914 = vmatprep.subr.mxu0 0.0
      %2915 = vmatpush1.msra.mxu0 %v2690
      %2916 = vmatprep.subr.mxu0 0.0
      %2917 = vmatpush1.msra.mxu0 %v2695
      %2918 = vmatprep.subr.mxu0 0.0
      %2919 = vmatpush1.msra.mxu0 0.0
      %2920 = vmatprep.subr.mxu0 0.0
      %2921 = vmatpush1.msra.mxu0 0.0
      %2922 = vmatprep.subr.mxu0 0.0
      %2923 = vmatpush1.msra.mxu0 0.0
      %2924 = vmatprep.subr.mxu0 0.0
      %2925 = vmatpush1.msra.mxu0 0.0
      %2926 = vmatprep.subr.mxu0 0.0
      %2927 = vmatpush1.msra.mxu0 0.0
      %2928 = vmatprep.subr.mxu0 0.0
      %2929 = vmatpush1.msra.mxu0 0.0
      %2930 = vmatprep.subr.mxu0 0.0
      %2931 = vmatpush1.msra.mxu0 0.0
      %2932 = vmatprep.subr.mxu0 0.0
      %2933 = vmatpush1.msra.mxu0 0.0
      %2934 = vmatprep.subr.mxu0 0.0
      %2935 = vmatpush1.msra.mxu0 0.0
      %2936 = vmatprep.subr.mxu0 0.0
      %2937 = vmatpush1.msra.mxu0 0.0
      %2938 = vmatprep.subr.mxu0 0.0
      %2939 = vmatpush1.msra.mxu0 0.0
      %2940 = vmatprep.subr.mxu0 0.0
      %2941 = vmatpush1.msra.mxu0 0.0
      %2942 = vmatprep.subr.mxu0 0.0
      %2943 = vmatpush1.msra.mxu0 0.0
      %2944 = vmatprep.subr.mxu0 0.0
      %2945 = vmatpush1.msra.mxu0 0.0
      %2946 = vmatprep.subr.mxu0 0.0
      %2947 = vmatpush1.msra.mxu0 0.0
      %2948 = vmatprep.subr.mxu0 0.0
      %2949 = vmatpush1.msra.mxu0 0.0
      %2950 = vmatprep.subr.mxu0 0.0
      %2951 = vmatpush1.msra.mxu0 0.0
      %2952 = vmatprep.subr.mxu0 0.0
      %2953 = vmatpush1.msra.mxu0 0.0
      %2954 = vmatprep.subr.mxu0 0.0
      %2955 = vmatpush1.msra.mxu0 0.0
      %2956 = vmatprep.subr.mxu0 0.0
      %2957 = vmatpush1.msra.mxu0 0.0
      %2958 = vmatprep.subr.mxu0 0.0
      %2959 = vmatpush1.msra.mxu0 0.0
      %2960 = vmatprep.subr.mxu0 0.0
      %2961 = vmatpush1.msra.mxu0 0.0
      %2962 = vmatprep.subr.mxu0 0.0
      %2963 = vmatpush1.msra.mxu0 0.0
      %2964 = vmatprep.subr.mxu0 0.0
      %2965 = vmatpush1.msra.mxu0 0.0
      %2966 = vmatprep.subr.mxu0 0.0
      %2967 = vmatpush1.msra.mxu0 0.0
      %2968 = vmatprep.subr.mxu0 0.0
      %2969 = vmatpush1.msra.mxu0 0.0
      %2970 = vmatprep.subr.mxu0 0.0
      %2971 = vmatpush1.msra.mxu0 0.0
      %2972 = vmatprep.subr.mxu0 0.0
      %2973 = vmatpush1.msra.mxu0 0.0
      %2974 = vmatprep.subr.mxu0 0.0
      %2975 = vmatpush1.msra.mxu0 0.0
      %2976 = vmatprep.subr.mxu0 0.0
      %2977 = vmatpush1.msra.mxu0 0.0
      %2978 = vmatprep.mubr.f32.mxu0 0.0
      %2979 = vmatmul.mubr.f32.gmra.mrb[0].mxu0 %v1152
      %v2980 = vpop.f32.mrb[0].mxu0
      %v2981 = vadd.f32 %v2752, %v2980
      %v2982 = vpop.f32.mrb[0].mxu0
      %2983 = vmatprep.mubr.f32.mxu0 0.0
      %2984 = vmatmul.mubr.f32.gmra.mrb[0].mxu0 %v1155
      %v2985 = vpop.f32.mrb[0].mxu0
      %v2986 = vadd.f32 %v2753, %v2985
      %v2987 = vpop.f32.mrb[0].mxu0
      %2988 = vdwg.mxu0
      %2989 = vmatprep.subr.mxu0 0.0
      %2990 = vmatpush1.msra.mxu0 %v2700
      %2991 = vmatprep.subr.mxu0 0.0
      %2992 = vmatpush1.msra.mxu0 %v2705
      %2993 = vmatprep.subr.mxu0 0.0
      %2994 = vmatpush1.msra.mxu0 0.0
      %2995 = vmatprep.subr.mxu0 0.0
      %2996 = vmatpush1.msra.mxu0 0.0
      %2997 = vmatprep.subr.mxu0 0.0
      %2998 = vmatpush1.msra.mxu0 0.0
      %2999 = vmatprep.subr.mxu0 0.0
      %3000 = vmatpush1.msra.mxu0 0.0
      %3001 = vmatprep.subr.mxu0 0.0
      %3002 = vmatpush1.msra.mxu0 0.0
      %3003 = vmatprep.subr.mxu0 0.0
      %3004 = vmatpush1.msra.mxu0 0.0
      %3005 = vmatprep.subr.mxu0 0.0
      %3006 = vmatpush1.msra.mxu0 0.0
      %3007 = vmatprep.subr.mxu0 0.0
      %3008 = vmatpush1.msra.mxu0 0.0
      %3009 = vmatprep.subr.mxu0 0.0
      %3010 = vmatpush1.msra.mxu0 0.0
      %3011 = vmatprep.subr.mxu0 0.0
      %3012 = vmatpush1.msra.mxu0 0.0
      %3013 = vmatprep.subr.mxu0 0.0
      %3014 = vmatpush1.msra.mxu0 0.0
      %3015 = vmatprep.subr.mxu0 0.0
      %3016 = vmatpush1.msra.mxu0 0.0
      %3017 = vmatprep.subr.mxu0 0.0
      %3018 = vmatpush1.msra.mxu0 0.0
      %3019 = vmatprep.subr.mxu0 0.0
      %3020 = vmatpush1.msra.mxu0 0.0
      %3021 = vmatprep.subr.mxu0 0.0
      %3022 = vmatpush1.msra.mxu0 0.0
      %3023 = vmatprep.subr.mxu0 0.0
      %3024 = vmatpush1.msra.mxu0 0.0
      %3025 = vmatprep.subr.mxu0 0.0
      %3026 = vmatpush1.msra.mxu0 0.0
      %3027 = vmatprep.subr.mxu0 0.0
      %3028 = vmatpush1.msra.mxu0 0.0
      %3029 = vmatprep.subr.mxu0 0.0
      %3030 = vmatpush1.msra.mxu0 0.0
      %3031 = vmatprep.subr.mxu0 0.0
      %3032 = vmatpush1.msra.mxu0 0.0
      %3033 = vmatprep.subr.mxu0 0.0
      %3034 = vmatpush1.msra.mxu0 0.0
      %3035 = vmatprep.subr.mxu0 0.0
      %3036 = vmatpush1.msra.mxu0 0.0
      %3037 = vmatprep.subr.mxu0 0.0
      %3038 = vmatpush1.msra.mxu0 0.0
      %3039 = vmatprep.subr.mxu0 0.0
      %3040 = vmatpush1.msra.mxu0 0.0
      %3041 = vmatprep.subr.mxu0 0.0
      %3042 = vmatpush1.msra.mxu0 0.0
      %3043 = vmatprep.subr.mxu0 0.0
      %3044 = vmatpush1.msra.mxu0 0.0
      %3045 = vmatprep.subr.mxu0 0.0
      %3046 = vmatpush1.msra.mxu0 0.0
      %3047 = vmatprep.subr.mxu0 0.0
      %3048 = vmatpush1.msra.mxu0 0.0
      %3049 = vmatprep.subr.mxu0 0.0
      %3050 = vmatpush1.msra.mxu0 0.0
      %3051 = vmatprep.subr.mxu0 0.0
      %3052 = vmatpush1.msra.mxu0 0.0
      %3053 = vmatprep.mubr.f32.mxu0 0.0
      %3054 = vmatmul.mubr.f32.gmra.mrb[0].mxu0 %v1233
      %v3055 = vpop.f32.mrb[0].mxu0
      %v3056 = vadd.f32 %v2754, %v3055
      %v3057 = vpop.f32.mrb[0].mxu0
      %3058 = vmatprep.mubr.f32.mxu0 0.0
      %3059 = vmatmul.mubr.f32.gmra.mrb[0].mxu0 %v1236
      %v3060 = vpop.f32.mrb[0].mxu0
      %v3061 = vadd.f32 %v2755, %v3060
      %v3062 = vpop.f32.mrb[0].mxu0
      %3063 = vdwg.mxu0
      %3064 = vmatprep.subr.mxu0 0.0
      %3065 = vmatpush1.msra.mxu0 %v2710
      %3066 = vmatprep.subr.mxu0 0.0
      %3067 = vmatpush1.msra.mxu0 %v2715
      %3068 = vmatprep.subr.mxu0 0.0
      %3069 = vmatpush1.msra.mxu0 0.0
      %3070 = vmatprep.subr.mxu0 0.0
      %3071 = vmatpush1.msra.mxu0 0.0
      %3072 = vmatprep.subr.mxu0 0.0
      %3073 = vmatpush1.msra.mxu0 0.0
      %3074 = vmatprep.subr.mxu0 0.0
      %3075 = vmatpush1.msra.mxu0 0.0
      %3076 = vmatprep.subr.mxu0 0.0
      %3077 = vmatpush1.msra.mxu0 0.0
      %3078 = vmatprep.subr.mxu0 0.0
      %3079 = vmatpush1.msra.mxu0 0.0
      %3080 = vmatprep.subr.mxu0 0.0
      %3081 = vmatpush1.msra.mxu0 0.0
      %3082 = vmatprep.subr.mxu0 0.0
      %3083 = vmatpush1.msra.mxu0 0.0
      %3084 = vmatprep.subr.mxu0 0.0
      %3085 = vmatpush1.msra.mxu0 0.0
      %3086 = vmatprep.subr.mxu0 0.0
      %3087 = vmatpush1.msra.mxu0 0.0
      %3088 = vmatprep.subr.mxu0 0.0
      %3089 = vmatpush1.msra.mxu0 0.0
      %3090 = vmatprep.subr.mxu0 0.0
      %3091 = vmatpush1.msra.mxu0 0.0
      %3092 = vmatprep.subr.mxu0 0.0
      %3093 = vmatpush1.msra.mxu0 0.0
      %3094 = vmatprep.subr.mxu0 0.0
      %3095 = vmatpush1.msra.mxu0 0.0
      %3096 = vmatprep.subr.mxu0 0.0
      %3097 = vmatpush1.msra.mxu0 0.0
      %3098 = vmatprep.subr.mxu0 0.0
      %3099 = vmatpush1.msra.mxu0 0.0
      %3100 = vmatprep.subr.mxu0 0.0
      %3101 = vmatpush1.msra.mxu0 0.0
      %3102 = vmatprep.subr.mxu0 0.0
      %3103 = vmatpush1.msra.mxu0 0.0
      %3104 = vmatprep.subr.mxu0 0.0
      %3105 = vmatpush1.msra.mxu0 0.0
      %3106 = vmatprep.subr.mxu0 0.0
      %3107 = vmatpush1.msra.mxu0 0.0
      %3108 = vmatprep.subr.mxu0 0.0
      %3109 = vmatpush1.msra.mxu0 0.0
      %3110 = vmatprep.subr.mxu0 0.0
      %3111 = vmatpush1.msra.mxu0 0.0
      %3112 = vmatprep.subr.mxu0 0.0
      %3113 = vmatpush1.msra.mxu0 0.0
      %3114 = vmatprep.subr.mxu0 0.0
      %3115 = vmatpush1.msra.mxu0 0.0
      %3116 = vmatprep.subr.mxu0 0.0
      %3117 = vmatpush1.msra.mxu0 0.0
      %3118 = vmatprep.subr.mxu0 0.0
      %3119 = vmatpush1.msra.mxu0 0.0
      %3120 = vmatprep.subr.mxu0 0.0
      %3121 = vmatpush1.msra.mxu0 0.0
      %3122 = vmatprep.subr.mxu0 0.0
      %3123 = vmatpush1.msra.mxu0 0.0
      %3124 = vmatprep.subr.mxu0 0.0
      %3125 = vmatpush1.msra.mxu0 0.0
      %3126 = vmatprep.subr.mxu0 0.0
      %3127 = vmatpush1.msra.mxu0 0.0
      %3128 = vmatprep.mubr.f32.mxu0 0.0
      %3129 = vmatmul.mubr.f32.gmra.mrb[0].mxu0 %v1314
      %v3130 = vpop.f32.mrb[0].mxu0
      %v3131 = vadd.f32 %v2756, %v3130
      %v3132 = vpop.f32.mrb[0].mxu0
      %3133 = vmatprep.mubr.f32.mxu0 0.0
      %3134 = vmatmul.mubr.f32.gmra.mrb[0].mxu0 %v1317
      %v3135 = vpop.f32.mrb[0].mxu0
      %v3136 = vadd.f32 %v2757, %v3135
      %v3137 = vpop.f32.mrb[0].mxu0
      %3138 = vdwg.mxu0
      %3139 = vmatprep.subr.mxu0 0.0
      %3140 = vmatpush1.msra.mxu0 %v2720
      %3141 = vmatprep.subr.mxu0 0.0
      %3142 = vmatpush1.msra.mxu0 %v2725
      %3143 = vmatprep.subr.mxu0 0.0
      %3144 = vmatpush1.msra.mxu0 0.0
      %3145 = vmatprep.subr.mxu0 0.0
      %3146 = vmatpush1.msra.mxu0 0.0
      %3147 = vmatprep.subr.mxu0 0.0
      %3148 = vmatpush1.msra.mxu0 0.0
      %3149 = vmatprep.subr.mxu0 0.0
      %3150 = vmatpush1.msra.mxu0 0.0
      %3151 = vmatprep.subr.mxu0 0.0
      %3152 = vmatpush1.msra.mxu0 0.0
      %3153 = vmatprep.subr.mxu0 0.0
      %3154 = vmatpush1.msra.mxu0 0.0
      %3155 = vmatprep.subr.mxu0 0.0
      %3156 = vmatpush1.msra.mxu0 0.0
      %3157 = vmatprep.subr.mxu0 0.0
      %3158 = vmatpush1.msra.mxu0 0.0
      %3159 = vmatprep.subr.mxu0 0.0
      %3160 = vmatpush1.msra.mxu0 0.0
      %3161 = vmatprep.subr.mxu0 0.0
      %3162 = vmatpush1.msra.mxu0 0.0
      %3163 = vmatprep.subr.mxu0 0.0
      %3164 = vmatpush1.msra.mxu0 0.0
      %3165 = vmatprep.subr.mxu0 0.0
      %3166 = vmatpush1.msra.mxu0 0.0
      %3167 = vmatprep.subr.mxu0 0.0
      %3168 = vmatpush1.msra.mxu0 0.0
      %3169 = vmatprep.subr.mxu0 0.0
      %3170 = vmatpush1.msra.mxu0 0.0
      %3171 = vmatprep.subr.mxu0 0.0
      %3172 = vmatpush1.msra.mxu0 0.0
      %3173 = vmatprep.subr.mxu0 0.0
      %3174 = vmatpush1.msra.mxu0 0.0
      %3175 = vmatprep.subr.mxu0 0.0
      %3176 = vmatpush1.msra.mxu0 0.0
      %3177 = vmatprep.subr.mxu0 0.0
      %3178 = vmatpush1.msra.mxu0 0.0
      %3179 = vmatprep.subr.mxu0 0.0
      %3180 = vmatpush1.msra.mxu0 0.0
      %3181 = vmatprep.subr.mxu0 0.0
      %3182 = vmatpush1.msra.mxu0 0.0
      %3183 = vmatprep.subr.mxu0 0.0
      %3184 = vmatpush1.msra.mxu0 0.0
      %3185 = vmatprep.subr.mxu0 0.0
      %3186 = vmatpush1.msra.mxu0 0.0
      %3187 = vmatprep.subr.mxu0 0.0
      %3188 = vmatpush1.msra.mxu0 0.0
      %3189 = vmatprep.subr.mxu0 0.0
      %3190 = vmatpush1.msra.mxu0 0.0
      %3191 = vmatprep.subr.mxu0 0.0
      %3192 = vmatpush1.msra.mxu0 0.0
      %3193 = vmatprep.subr.mxu0 0.0
      %3194 = vmatpush1.msra.mxu0 0.0
      %3195 = vmatprep.subr.mxu0 0.0
      %3196 = vmatpush1.msra.mxu0 0.0
      %3197 = vmatprep.subr.mxu0 0.0
      %3198 = vmatpush1.msra.mxu0 0.0
      %3199 = vmatprep.subr.mxu0 0.0
      %3200 = vmatpush1.msra.mxu0 0.0
      %3201 = vmatprep.subr.mxu0 0.0
      %3202 = vmatpush1.msra.mxu0 0.0
      %3203 = vmatprep.mubr.f32.mxu0 0.0
      %3204 = vmatmul.mubr.f32.gmra.mrb[0].mxu0 %v1395
      %v3205 = vpop.f32.mrb[0].mxu0
      %v3206 = vadd.f32 %v2758, %v3205
      %v3207 = vpop.f32.mrb[0].mxu0
      %3208 = vmatprep.mubr.f32.mxu0 0.0
      %3209 = vmatmul.mubr.f32.gmra.mrb[0].mxu0 %v1398
      %v3210 = vpop.f32.mrb[0].mxu0
      %v3211 = vadd.f32 %v2759, %v3210
      %v3212 = vpop.f32.mrb[0].mxu0
      %3213 = vdwg.mxu0
      %3214 = vmatprep.subr.mxu0 0.0
      %3215 = vmatpush1.msra.mxu0 %v2730
      %3216 = vmatprep.subr.mxu0 0.0
      %3217 = vmatpush1.msra.mxu0 %v2735
      %3218 = vmatprep.subr.mxu0 0.0
      %3219 = vmatpush1.msra.mxu0 0.0
      %3220 = vmatprep.subr.mxu0 0.0
      %3221 = vmatpush1.msra.mxu0 0.0
      %3222 = vmatprep.subr.mxu0 0.0
      %3223 = vmatpush1.msra.mxu0 0.0
      %3224 = vmatprep.subr.mxu0 0.0
      %3225 = vmatpush1.msra.mxu0 0.0
      %3226 = vmatprep.subr.mxu0 0.0
      %3227 = vmatpush1.msra.mxu0 0.0
      %3228 = vmatprep.subr.mxu0 0.0
      %3229 = vmatpush1.msra.mxu0 0.0
      %3230 = vmatprep.subr.mxu0 0.0
      %3231 = vmatpush1.msra.mxu0 0.0
      %3232 = vmatprep.subr.mxu0 0.0
      %3233 = vmatpush1.msra.mxu0 0.0
      %3234 = vmatprep.subr.mxu0 0.0
      %3235 = vmatpush1.msra.mxu0 0.0
      %3236 = vmatprep.subr.mxu0 0.0
      %3237 = vmatpush1.msra.mxu0 0.0
      %3238 = vmatprep.subr.mxu0 0.0
      %3239 = vmatpush1.msra.mxu0 0.0
      %3240 = vmatprep.subr.mxu0 0.0
      %3241 = vmatpush1.msra.mxu0 0.0
      %3242 = vmatprep.subr.mxu0 0.0
      %3243 = vmatpush1.msra.mxu0 0.0
      %3244 = vmatprep.subr.mxu0 0.0
      %3245 = vmatpush1.msra.mxu0 0.0
      %3246 = vmatprep.subr.mxu0 0.0
      %3247 = vmatpush1.msra.mxu0 0.0
      %3248 = vmatprep.subr.mxu0 0.0
      %3249 = vmatpush1.msra.mxu0 0.0
      %3250 = vmatprep.subr.mxu0 0.0
      %3251 = vmatpush1.msra.mxu0 0.0
      %3252 = vmatprep.subr.mxu0 0.0
      %3253 = vmatpush1.msra.mxu0 0.0
      %3254 = vmatprep.subr.mxu0 0.0
      %3255 = vmatpush1.msra.mxu0 0.0
      %3256 = vmatprep.subr.mxu0 0.0
      %3257 = vmatpush1.msra.mxu0 0.0
      %3258 = vmatprep.subr.mxu0 0.0
      %3259 = vmatpush1.msra.mxu0 0.0
      %3260 = vmatprep.subr.mxu0 0.0
      %3261 = vmatpush1.msra.mxu0 0.0
      %3262 = vmatprep.subr.mxu0 0.0
      %3263 = vmatpush1.msra.mxu0 0.0
      %3264 = vmatprep.subr.mxu0 0.0
      %3265 = vmatpush1.msra.mxu0 0.0
      %3266 = vmatprep.subr.mxu0 0.0
      %3267 = vmatpush1.msra.mxu0 0.0
      %3268 = vmatprep.subr.mxu0 0.0
      %3269 = vmatpush1.msra.mxu0 0.0
      %3270 = vmatprep.subr.mxu0 0.0
      %3271 = vmatpush1.msra.mxu0 0.0
      %3272 = vmatprep.subr.mxu0 0.0
      %3273 = vmatpush1.msra.mxu0 0.0
      %3274 = vmatprep.subr.mxu0 0.0
      %3275 = vmatpush1.msra.mxu0 0.0
      %3276 = vmatprep.subr.mxu0 0.0
      %3277 = vmatpush1.msra.mxu0 0.0
      %3278 = vmatprep.mubr.f32.mxu0 0.0
      %3279 = vmatmul.mubr.f32.gmra.mrb[0].mxu0 %v1476
      %v3280 = vpop.f32.mrb[0].mxu0
      %v3281 = vadd.f32 %v2760, %v3280
      %v3282 = vpop.f32.mrb[0].mxu0
      %3283 = vmatprep.mubr.f32.mxu0 0.0
      %3284 = vmatmul.mubr.f32.gmra.mrb[0].mxu0 %v1479
      %v3285 = vpop.f32.mrb[0].mxu0
      %v3286 = vadd.f32 %v2761, %v3285
      %v3287 = vpop.f32.mrb[0].mxu0
      %3288 = vdwg.mxu0
      %3289 = vmatprep.subr.mxu0 0.0
      %3290 = vmatpush1.msra.mxu0 %v2740
      %3291 = vmatprep.subr.mxu0 0.0
      %3292 = vmatpush1.msra.mxu0 %v2745
      %3293 = vmatprep.subr.mxu0 0.0
      %3294 = vmatpush1.msra.mxu0 0.0
      %3295 = vmatprep.subr.mxu0 0.0
      %3296 = vmatpush1.msra.mxu0 0.0
      %3297 = vmatprep.subr.mxu0 0.0
      %3298 = vmatpush1.msra.mxu0 0.0
      %3299 = vmatprep.subr.mxu0 0.0
      %3300 = vmatpush1.msra.mxu0 0.0
      %3301 = vmatprep.subr.mxu0 0.0
      %3302 = vmatpush1.msra.mxu0 0.0
      %3303 = vmatprep.subr.mxu0 0.0
      %3304 = vmatpush1.msra.mxu0 0.0
      %3305 = vmatprep.subr.mxu0 0.0
      %3306 = vmatpush1.msra.mxu0 0.0
      %3307 = vmatprep.subr.mxu0 0.0
      %3308 = vmatpush1.msra.mxu0 0.0
      %3309 = vmatprep.subr.mxu0 0.0
      %3310 = vmatpush1.msra.mxu0 0.0
      %3311 = vmatprep.subr.mxu0 0.0
      %3312 = vmatpush1.msra.mxu0 0.0
      %3313 = vmatprep.subr.mxu0 0.0
      %3314 = vmatpush1.msra.mxu0 0.0
      %3315 = vmatprep.subr.mxu0 0.0
      %3316 = vmatpush1.msra.mxu0 0.0
      %3317 = vmatprep.subr.mxu0 0.0
      %3318 = vmatpush1.msra.mxu0 0.0
      %3319 = vmatprep.subr.mxu0 0.0
      %3320 = vmatpush1.msra.mxu0 0.0
      %3321 = vmatprep.subr.mxu0 0.0
      %3322 = vmatpush1.msra.mxu0 0.0
      %3323 = vmatprep.subr.mxu0 0.0
      %3324 = vmatpush1.msra.mxu0 0.0
      %3325 = vmatprep.subr.mxu0 0.0
      %3326 = vmatpush1.msra.mxu0 0.0
      %3327 = vmatprep.subr.mxu0 0.0
      %3328 = vmatpush1.msra.mxu0 0.0
      %3329 = vmatprep.subr.mxu0 0.0
      %3330 = vmatpush1.msra.mxu0 0.0
      %3331 = vmatprep.subr.mxu0 0.0
      %3332 = vmatpush1.msra.mxu0 0.0
      %3333 = vmatprep.subr.mxu0 0.0
      %3334 = vmatpush1.msra.mxu0 0.0
      %3335 = vmatprep.subr.mxu0 0.0
      %3336 = vmatpush1.msra.mxu0 0.0
      %3337 = vmatprep.subr.mxu0 0.0
      %3338 = vmatpush1.msra.mxu0 0.0
      %3339 = vmatprep.subr.mxu0 0.0
      %3340 = vmatpush1.msra.mxu0 0.0
      %3341 = vmatprep.subr.mxu0 0.0
      %3342 = vmatpush1.msra.mxu0 0.0
      %3343 = vmatprep.subr.mxu0 0.0
      %3344 = vmatpush1.msra.mxu0 0.0
      %3345 = vmatprep.subr.mxu0 0.0
      %3346 = vmatpush1.msra.mxu0 0.0
      %3347 = vmatprep.subr.mxu0 0.0
      %3348 = vmatpush1.msra.mxu0 0.0
      %3349 = vmatprep.subr.mxu0 0.0
      %3350 = vmatpush1.msra.mxu0 0.0
      %3351 = vmatprep.subr.mxu0 0.0
      %3352 = vmatpush1.msra.mxu0 0.0
      %3353 = vmatprep.mubr.f32.mxu0 0.0
      %3354 = vmatmul.mubr.f32.gmra.mrb[0].mxu0 %v1557
      %v3355 = vpop.f32.mrb[0].mxu0
      %v3356 = vadd.f32 %v2762, %v3355
      %v3357 = vpop.f32.mrb[0].mxu0
      %3358 = vmatprep.mubr.f32.mxu0 0.0
      %3359 = vmatmul.mubr.f32.gmra.mrb[0].mxu0 %v1560
      %v3360 = vpop.f32.mrb[0].mxu0
      %v3361 = vadd.f32 %v2763, %v3360
      %v3362 = vpop.f32.mrb[0].mxu0
      %3363 = vdwg.mxu0
      %v3364 = vlaneseq
      %v3365 = vshrl.u32 %v3364, 7
      %v3366 = vsub.s32 0, %v3365
      %v3367 = vrot.slane %v2554, %v3366
      %v3368 = vadd.f32 %v2831, %v3367
      %v3369 = vadd.f32 %v2836, %v3367
      %v3370 = vadd.f32 %v2906, %v3367
      %v3371 = vadd.f32 %v2911, %v3367
      %v3372 = vadd.f32 %v2981, %v3367
      %v3373 = vadd.f32 %v2986, %v3367
      %v3374 = vadd.f32 %v3056, %v3367
      %v3375 = vadd.f32 %v3061, %v3367
      %v3376 = vadd.f32 %v3131, %v3367
      %v3377 = vadd.f32 %v3136, %v3367
      %v3378 = vadd.f32 %v3206, %v3367
      %v3379 = vadd.f32 %v3211, %v3367
      %v3380 = vadd.f32 %v3281, %v3367
      %v3381 = vadd.f32 %v3286, %v3367
      %v3382 = vadd.f32 %v3356, %v3367
      %v3383 = vadd.f32 %v3361, %v3367
      %v3384 = vmax.f32 %v3368, 0.0
      %v3385 = vmax.f32 %v3369, 0.0
      %v3386 = vmax.f32 %v3370, 0.0
      %v3387 = vmax.f32 %v3371, 0.0
      %v3388 = vmax.f32 %v3372, 0.0
      %v3389 = vmax.f32 %v3373, 0.0
      %v3390 = vmax.f32 %v3374, 0.0
      %v3391 = vmax.f32 %v3375, 0.0
      %v3392 = vmax.f32 %v3376, 0.0
      %v3393 = vmax.f32 %v3377, 0.0
      %v3394 = vmax.f32 %v3378, 0.0
      %v3395 = vmax.f32 %v3379, 0.0
      %v3396 = vmax.f32 %v3380, 0.0
      %v3397 = vmax.f32 %v3381, 0.0
      %v3398 = vmax.f32 %v3382, 0.0
      %v3399 = vmax.f32 %v3383, 0.0
      %v3400 = vld [vmem:[%s8] sm:$0xf]
      %v3401 = vld [vmem:[%s8 + $0x4] sm:$0xf]
      %v3402 = vld [vmem:[%s8 + $0x8] sm:$0xf]
      %v3403 = vld [vmem:[%s8 + $0xc] sm:$0xf]
      %v3404 = vunpack.c.l.bf16 %v3400
      %v3405 = vunpack.c.l.bf16 %v3401
      %v3406 = vunpack.c.l.bf16 %v3402
      %v3407 = vunpack.c.l.bf16 %v3403
      %v3408 = vld [vmem:[%s9] sm:$0x1]
      %v3409 = vunpack.c.l.bf16 %v3408
      %v3411 = vsel %vm779, %v3384, 0
      %v3414 = vsel %vm779, %v3385, 0
      %v3417 = vsel %vm779, %v3386, 0
      %v3420 = vsel %vm779, %v3387, 0
      %v3423 = vsel %vm779, %v3388, 0
      %v3426 = vsel %vm779, %v3389, 0
      %v3429 = vsel %vm779, %v3390, 0
      %v3432 = vsel %vm779, %v3391, 0
      %v3435 = vsel %vm779, %v3392, 0
      %v3438 = vsel %vm779, %v3393, 0
      %v3441 = vsel %vm779, %v3394, 0
      %v3444 = vsel %vm779, %v3395, 0
      %v3447 = vsel %vm779, %v3396, 0
      %v3450 = vsel %vm779, %v3397, 0
      %v3453 = vsel %vm779, %v3398, 0
      %v3456 = vsel %vm779, %v3399, 0
      %3458 = vmatprep.subr.mxu0 0.0
      %3459 = vmatpush1.msra.mxu0 %v3404
      %3460 = vmatprep.subr.mxu0 0.0
      %3461 = vmatpush1.msra.mxu0 %v3405
      %3462 = vmatprep.subr.mxu0 0.0
      %3463 = vmatpush1.msra.mxu0 %v3406
      %3464 = vmatprep.subr.mxu0 0.0
      %3465 = vmatpush1.msra.mxu0 %v3407
      %3466 = vmatprep.subr.mxu0 0.0
      %3467 = vmatpush1.msra.mxu0 0.0
      %3468 = vmatprep.subr.mxu0 0.0
      %3469 = vmatpush1.msra.mxu0 0.0
      %3470 = vmatprep.subr.mxu0 0.0
      %3471 = vmatpush1.msra.mxu0 0.0
      %3472 = vmatprep.subr.mxu0 0.0
      %3473 = vmatpush1.msra.mxu0 0.0
      %3474 = vmatprep.subr.mxu0 0.0
      %3475 = vmatpush1.msra.mxu0 0.0
      %3476 = vmatprep.subr.mxu0 0.0
      %3477 = vmatpush1.msra.mxu0 0.0
      %3478 = vmatprep.subr.mxu0 0.0
      %3479 = vmatpush1.msra.mxu0 0.0
      %3480 = vmatprep.subr.mxu0 0.0
      %3481 = vmatpush1.msra.mxu0 0.0
      %3482 = vmatprep.subr.mxu0 0.0
      %3483 = vmatpush1.msra.mxu0 0.0
      %3484 = vmatprep.subr.mxu0 0.0
      %3485 = vmatpush1.msra.mxu0 0.0
      %3486 = vmatprep.subr.mxu0 0.0
      %3487 = vmatpush1.msra.mxu0 0.0
      %3488 = vmatprep.subr.mxu0 0.0
      %3489 = vmatpush1.msra.mxu0 0.0
      %3490 = vmatprep.subr.mxu0 0.0
      %3491 = vmatpush1.msra.mxu0 0.0
      %3492 = vmatprep.subr.mxu0 0.0
      %3493 = vmatpush1.msra.mxu0 0.0
      %3494 = vmatprep.subr.mxu0 0.0
      %3495 = vmatpush1.msra.mxu0 0.0
      %3496 = vmatprep.subr.mxu0 0.0
      %3497 = vmatpush1.msra.mxu0 0.0
      %3498 = vmatprep.subr.mxu0 0.0
      %3499 = vmatpush1.msra.mxu0 0.0
      %3500 = vmatprep.subr.mxu0 0.0
      %3501 = vmatpush1.msra.mxu0 0.0
      %3502 = vmatprep.subr.mxu0 0.0
      %3503 = vmatpush1.msra.mxu0 0.0
      %3504 = vmatprep.subr.mxu0 0.0
      %3505 = vmatpush1.msra.mxu0 0.0
      %3506 = vmatprep.subr.mxu0 0.0
      %3507 = vmatpush1.msra.mxu0 0.0
      %3508 = vmatprep.subr.mxu0 0.0
      %3509 = vmatpush1.msra.mxu0 0.0
      %3510 = vmatprep.subr.mxu0 0.0
      %3511 = vmatpush1.msra.mxu0 0.0
      %3512 = vmatprep.subr.mxu0 0.0
      %3513 = vmatpush1.msra.mxu0 0.0
      %3514 = vmatprep.subr.mxu0 0.0
      %3515 = vmatpush1.msra.mxu0 0.0
      %3516 = vmatprep.subr.mxu0 0.0
      %3517 = vmatpush1.msra.mxu0 0.0
      %3518 = vmatprep.subr.mxu0 0.0
      %3519 = vmatpush1.msra.mxu0 0.0
      %3520 = vmatprep.subr.mxu0 0.0
      %3521 = vmatpush1.msra.mxu0 0.0
      %3522 = vmatprep.mubr.f32.mxu0 0.0
      %3523 = vmatmul.mubr.f32.gmra.mrb[0].mxu0 %v3411
      %v3524 = vpop.f32.mrb[0].mxu0
      %v3525 = vadd.f32 0.0, %v3524
      %v3526 = vpop.f32.mrb[0].mxu0
      %3527 = vmatprep.mubr.f32.mxu0 0.0
      %3528 = vmatmul.mubr.f32.gmra.mrb[0].mxu0 %v3414
      %v3529 = vpop.f32.mrb[0].mxu0
      %v3530 = vadd.f32 0.0, %v3529
      %v3531 = vpop.f32.mrb[0].mxu0
      %3532 = vmatprep.mubr.f32.mxu0 0.0
      %3533 = vmatmul.mubr.f32.gmra.mrb[0].mxu0 %v3417
      %v3534 = vpop.f32.mrb[0].mxu0
      %v3535 = vadd.f32 0.0, %v3534
      %v3536 = vpop.f32.mrb[0].mxu0
      %3537 = vmatprep.mubr.f32.mxu0 0.0
      %3538 = vmatmul.mubr.f32.gmra.mrb[0].mxu0 %v3420
      %v3539 = vpop.f32.mrb[0].mxu0
      %v3540 = vadd.f32 0.0, %v3539
      %v3541 = vpop.f32.mrb[0].mxu0
      %3542 = vmatprep.mubr.f32.mxu0 0.0
      %3543 = vmatmul.mubr.f32.gmra.mrb[0].mxu0 %v3423
      %v3544 = vpop.f32.mrb[0].mxu0
      %v3545 = vadd.f32 0.0, %v3544
      %v3546 = vpop.f32.mrb[0].mxu0
      %3547 = vmatprep.mubr.f32.mxu0 0.0
      %3548 = vmatmul.mubr.f32.gmra.mrb[0].mxu0 %v3426
      %v3549 = vpop.f32.mrb[0].mxu0
      %v3550 = vadd.f32 0.0, %v3549
      %v3551 = vpop.f32.mrb[0].mxu0
      %3552 = vmatprep.mubr.f32.mxu0 0.0
      %3553 = vmatmul.mubr.f32.gmra.mrb[0].mxu0 %v3429
      %v3554 = vpop.f32.mrb[0].mxu0
      %v3555 = vadd.f32 0.0, %v3554
      %v3556 = vpop.f32.mrb[0].mxu0
      %3557 = vmatprep.mubr.f32.mxu0 0.0
      %3558 = vmatmul.mubr.f32.gmra.mrb[0].mxu0 %v3432
      %v3559 = vpop.f32.mrb[0].mxu0
      %v3560 = vadd.f32 0.0, %v3559
      %v3561 = vpop.f32.mrb[0].mxu0
      %3562 = vmatprep.mubr.f32.mxu0 0.0
      %3563 = vmatmul.mubr.f32.gmra.mrb[0].mxu0 %v3435
      %v3564 = vpop.f32.mrb[0].mxu0
      %v3565 = vadd.f32 0.0, %v3564
      %v3566 = vpop.f32.mrb[0].mxu0
      %3567 = vmatprep.mubr.f32.mxu0 0.0
      %3568 = vmatmul.mubr.f32.gmra.mrb[0].mxu0 %v3438
      %v3569 = vpop.f32.mrb[0].mxu0
      %v3570 = vadd.f32 0.0, %v3569
      %v3571 = vpop.f32.mrb[0].mxu0
      %3572 = vmatprep.mubr.f32.mxu0 0.0
      %3573 = vmatmul.mubr.f32.gmra.mrb[0].mxu0 %v3441
      %v3574 = vpop.f32.mrb[0].mxu0
      %v3575 = vadd.f32 0.0, %v3574
      %v3576 = vpop.f32.mrb[0].mxu0
      %3577 = vmatprep.mubr.f32.mxu0 0.0
      %3578 = vmatmul.mubr.f32.gmra.mrb[0].mxu0 %v3444
      %v3579 = vpop.f32.mrb[0].mxu0
      %v3580 = vadd.f32 0.0, %v3579
      %v3581 = vpop.f32.mrb[0].mxu0
      %3582 = vmatprep.mubr.f32.mxu0 0.0
      %3583 = vmatmul.mubr.f32.gmra.mrb[0].mxu0 %v3447
      %v3584 = vpop.f32.mrb[0].mxu0
      %v3585 = vadd.f32 0.0, %v3584
      %v3586 = vpop.f32.mrb[0].mxu0
      %3587 = vmatprep.mubr.f32.mxu0 0.0
      %3588 = vmatmul.mubr.f32.gmra.mrb[0].mxu0 %v3450
      %v3589 = vpop.f32.mrb[0].mxu0
      %v3590 = vadd.f32 0.0, %v3589
      %v3591 = vpop.f32.mrb[0].mxu0
      %3592 = vmatprep.mubr.f32.mxu0 0.0
      %3593 = vmatmul.mubr.f32.gmra.mrb[0].mxu0 %v3453
      %v3594 = vpop.f32.mrb[0].mxu0
      %v3595 = vadd.f32 0.0, %v3594
      %v3596 = vpop.f32.mrb[0].mxu0
      %3597 = vmatprep.mubr.f32.mxu0 0.0
      %3598 = vmatmul.mubr.f32.gmra.mrb[0].mxu0 %v3456
      %v3599 = vpop.f32.mrb[0].mxu0
      %v3600 = vadd.f32 0.0, %v3599
      %v3601 = vpop.f32.mrb[0].mxu0
      %3602 = vdwg.mxu0
      %v3603 = vmul.f32 %v737, %v3525
      %v3604 = vmul.f32 %v738, %v3530
      %v3605 = vmul.f32 %v739, %v3535
      %v3606 = vmul.f32 %v740, %v3540
      %v3607 = vmul.f32 %v741, %v3545
      %v3608 = vmul.f32 %v742, %v3550
      %v3609 = vmul.f32 %v743, %v3555
      %v3610 = vmul.f32 %v744, %v3560
      %v3611 = vmul.f32 %v745, %v3565
      %v3612 = vmul.f32 %v746, %v3570
      %v3613 = vmul.f32 %v747, %v3575
      %v3614 = vmul.f32 %v748, %v3580
      %v3615 = vmul.f32 %v749, %v3585
      %v3616 = vmul.f32 %v750, %v3590
      %v3617 = vmul.f32 %v751, %v3595
      %v3618 = vmul.f32 %v752, %v3600
      %3619 = vmatprep.subr.mxu0 0.0
      %3620 = vmatpush1.msra.mxu0 %v3525
      %3621 = vmatprep.subr.mxu0 0.0
      %3622 = vmatpush1.msra.mxu0 %v3530
      %3623 = vmatprep.subr.mxu0 0.0
      %3624 = vmatpush1.msra.mxu0 0.0
      %3625 = vmatprep.subr.mxu0 0.0
      %3626 = vmatpush1.msra.mxu0 0.0
      %3627 = vmatprep.subr.mxu0 0.0
      %3628 = vmatpush1.msra.mxu0 0.0
      %3629 = vmatprep.subr.mxu0 0.0
      %3630 = vmatpush1.msra.mxu0 0.0
      %3631 = vmatprep.subr.mxu0 0.0
      %3632 = vmatpush1.msra.mxu0 0.0
      %3633 = vmatprep.subr.mxu0 0.0
      %3634 = vmatpush1.msra.mxu0 0.0
      %3635 = vmatprep.subr.mxu0 0.0
      %3636 = vmatpush1.msra.mxu0 0.0
      %3637 = vmatprep.subr.mxu0 0.0
      %3638 = vmatpush1.msra.mxu0 0.0
      %3639 = vmatprep.subr.mxu0 0.0
      %3640 = vmatpush1.msra.mxu0 0.0
      %3641 = vmatprep.subr.mxu0 0.0
      %3642 = vmatpush1.msra.mxu0 0.0
      %3643 = vmatprep.subr.mxu0 0.0
      %3644 = vmatpush1.msra.mxu0 0.0
      %3645 = vmatprep.subr.mxu0 0.0
      %3646 = vmatpush1.msra.mxu0 0.0
      %3647 = vmatprep.subr.mxu0 0.0
      %3648 = vmatpush1.msra.mxu0 0.0
      %3649 = vmatprep.subr.mxu0 0.0
      %3650 = vmatpush1.msra.mxu0 0.0
      %3651 = vmatprep.subr.mxu0 0.0
      %3652 = vmatpush1.msra.mxu0 0.0
      %3653 = vmatprep.subr.mxu0 0.0
      %3654 = vmatpush1.msra.mxu0 0.0
      %3655 = vmatprep.subr.mxu0 0.0
      %3656 = vmatpush1.msra.mxu0 0.0
      %3657 = vmatprep.subr.mxu0 0.0
      %3658 = vmatpush1.msra.mxu0 0.0
      %3659 = vmatprep.subr.mxu0 0.0
      %3660 = vmatpush1.msra.mxu0 0.0
      %3661 = vmatprep.subr.mxu0 0.0
      %3662 = vmatpush1.msra.mxu0 0.0
      %3663 = vmatprep.subr.mxu0 0.0
      %3664 = vmatpush1.msra.mxu0 0.0
      %3665 = vmatprep.subr.mxu0 0.0
      %3666 = vmatpush1.msra.mxu0 0.0
      %3667 = vmatprep.subr.mxu0 0.0
      %3668 = vmatpush1.msra.mxu0 0.0
      %3669 = vmatprep.subr.mxu0 0.0
      %3670 = vmatpush1.msra.mxu0 0.0
      %3671 = vmatprep.subr.mxu0 0.0
      %3672 = vmatpush1.msra.mxu0 0.0
      %3673 = vmatprep.subr.mxu0 0.0
      %3674 = vmatpush1.msra.mxu0 0.0
      %3675 = vmatprep.subr.mxu0 0.0
      %3676 = vmatpush1.msra.mxu0 0.0
      %3677 = vmatprep.subr.mxu0 0.0
      %3678 = vmatpush1.msra.mxu0 0.0
      %3679 = vmatprep.subr.mxu0 0.0
      %3680 = vmatpush1.msra.mxu0 0.0
      %3681 = vmatprep.subr.mxu0 0.0
      %3682 = vmatpush1.msra.mxu0 0.0
      %3683 = vmatprep.mubr.f32.mxu0 0.0
      %3684 = vmatmul.mubr.f32.gmra.mrb[0].mxu0 %v990
      %v3685 = vpop.f32.mrb[0].mxu0
      %v3686 = vadd.f32 %v3603, %v3685
      %v3687 = vpop.f32.mrb[0].mxu0
      %3688 = vmatprep.mubr.f32.mxu0 0.0
      %3689 = vmatmul.mubr.f32.gmra.mrb[0].mxu0 %v993
      %v3690 = vpop.f32.mrb[0].mxu0
      %v3691 = vadd.f32 %v3604, %v3690
      %v3692 = vpop.f32.mrb[0].mxu0
      %3693 = vdwg.mxu0
      %3694 = vmatprep.subr.mxu0 0.0
      %3695 = vmatpush1.msra.mxu0 %v3535
      %3696 = vmatprep.subr.mxu0 0.0
      %3697 = vmatpush1.msra.mxu0 %v3540
      %3698 = vmatprep.subr.mxu0 0.0
      %3699 = vmatpush1.msra.mxu0 0.0
      %3700 = vmatprep.subr.mxu0 0.0
      %3701 = vmatpush1.msra.mxu0 0.0
      %3702 = vmatprep.subr.mxu0 0.0
      %3703 = vmatpush1.msra.mxu0 0.0
      %3704 = vmatprep.subr.mxu0 0.0
      %3705 = vmatpush1.msra.mxu0 0.0
      %3706 = vmatprep.subr.mxu0 0.0
      %3707 = vmatpush1.msra.mxu0 0.0
      %3708 = vmatprep.subr.mxu0 0.0
      %3709 = vmatpush1.msra.mxu0 0.0
      %3710 = vmatprep.subr.mxu0 0.0
      %3711 = vmatpush1.msra.mxu0 0.0
      %3712 = vmatprep.subr.mxu0 0.0
      %3713 = vmatpush1.msra.mxu0 0.0
      %3714 = vmatprep.subr.mxu0 0.0
      %3715 = vmatpush1.msra.mxu0 0.0
      %3716 = vmatprep.subr.mxu0 0.0
      %3717 = vmatpush1.msra.mxu0 0.0
      %3718 = vmatprep.subr.mxu0 0.0
      %3719 = vmatpush1.msra.mxu0 0.0
      %3720 = vmatprep.subr.mxu0 0.0
      %3721 = vmatpush1.msra.mxu0 0.0
      %3722 = vmatprep.subr.mxu0 0.0
      %3723 = vmatpush1.msra.mxu0 0.0
      %3724 = vmatprep.subr.mxu0 0.0
      %3725 = vmatpush1.msra.mxu0 0.0
      %3726 = vmatprep.subr.mxu0 0.0
      %3727 = vmatpush1.msra.mxu0 0.0
      %3728 = vmatprep.subr.mxu0 0.0
      %3729 = vmatpush1.msra.mxu0 0.0
      %3730 = vmatprep.subr.mxu0 0.0
      %3731 = vmatpush1.msra.mxu0 0.0
      %3732 = vmatprep.subr.mxu0 0.0
      %3733 = vmatpush1.msra.mxu0 0.0
      %3734 = vmatprep.subr.mxu0 0.0
      %3735 = vmatpush1.msra.mxu0 0.0
      %3736 = vmatprep.subr.mxu0 0.0
      %3737 = vmatpush1.msra.mxu0 0.0
      %3738 = vmatprep.subr.mxu0 0.0
      %3739 = vmatpush1.msra.mxu0 0.0
      %3740 = vmatprep.subr.mxu0 0.0
      %3741 = vmatpush1.msra.mxu0 0.0
      %3742 = vmatprep.subr.mxu0 0.0
      %3743 = vmatpush1.msra.mxu0 0.0
      %3744 = vmatprep.subr.mxu0 0.0
      %3745 = vmatpush1.msra.mxu0 0.0
      %3746 = vmatprep.subr.mxu0 0.0
      %3747 = vmatpush1.msra.mxu0 0.0
      %3748 = vmatprep.subr.mxu0 0.0
      %3749 = vmatpush1.msra.mxu0 0.0
      %3750 = vmatprep.subr.mxu0 0.0
      %3751 = vmatpush1.msra.mxu0 0.0
      %3752 = vmatprep.subr.mxu0 0.0
      %3753 = vmatpush1.msra.mxu0 0.0
      %3754 = vmatprep.subr.mxu0 0.0
      %3755 = vmatpush1.msra.mxu0 0.0
      %3756 = vmatprep.subr.mxu0 0.0
      %3757 = vmatpush1.msra.mxu0 0.0
      %3758 = vmatprep.mubr.f32.mxu0 0.0
      %3759 = vmatmul.mubr.f32.gmra.mrb[0].mxu0 %v1071
      %v3760 = vpop.f32.mrb[0].mxu0
      %v3761 = vadd.f32 %v3605, %v3760
      %v3762 = vpop.f32.mrb[0].mxu0
      %3763 = vmatprep.mubr.f32.mxu0 0.0
      %3764 = vmatmul.mubr.f32.gmra.mrb[0].mxu0 %v1074
      %v3765 = vpop.f32.mrb[0].mxu0
      %v3766 = vadd.f32 %v3606, %v3765
      %v3767 = vpop.f32.mrb[0].mxu0
      %3768 = vdwg.mxu0
      %3769 = vmatprep.subr.mxu0 0.0
      %3770 = vmatpush1.msra.mxu0 %v3545
      %3771 = vmatprep.subr.mxu0 0.0
      %3772 = vmatpush1.msra.mxu0 %v3550
      %3773 = vmatprep.subr.mxu0 0.0
      %3774 = vmatpush1.msra.mxu0 0.0
      %3775 = vmatprep.subr.mxu0 0.0
      %3776 = vmatpush1.msra.mxu0 0.0
      %3777 = vmatprep.subr.mxu0 0.0
      %3778 = vmatpush1.msra.mxu0 0.0
      %3779 = vmatprep.subr.mxu0 0.0
      %3780 = vmatpush1.msra.mxu0 0.0
      %3781 = vmatprep.subr.mxu0 0.0
      %3782 = vmatpush1.msra.mxu0 0.0
      %3783 = vmatprep.subr.mxu0 0.0
      %3784 = vmatpush1.msra.mxu0 0.0
      %3785 = vmatprep.subr.mxu0 0.0
      %3786 = vmatpush1.msra.mxu0 0.0
      %3787 = vmatprep.subr.mxu0 0.0
      %3788 = vmatpush1.msra.mxu0 0.0
      %3789 = vmatprep.subr.mxu0 0.0
      %3790 = vmatpush1.msra.mxu0 0.0
      %3791 = vmatprep.subr.mxu0 0.0
      %3792 = vmatpush1.msra.mxu0 0.0
      %3793 = vmatprep.subr.mxu0 0.0
      %3794 = vmatpush1.msra.mxu0 0.0
      %3795 = vmatprep.subr.mxu0 0.0
      %3796 = vmatpush1.msra.mxu0 0.0
      %3797 = vmatprep.subr.mxu0 0.0
      %3798 = vmatpush1.msra.mxu0 0.0
      %3799 = vmatprep.subr.mxu0 0.0
      %3800 = vmatpush1.msra.mxu0 0.0
      %3801 = vmatprep.subr.mxu0 0.0
      %3802 = vmatpush1.msra.mxu0 0.0
      %3803 = vmatprep.subr.mxu0 0.0
      %3804 = vmatpush1.msra.mxu0 0.0
      %3805 = vmatprep.subr.mxu0 0.0
      %3806 = vmatpush1.msra.mxu0 0.0
      %3807 = vmatprep.subr.mxu0 0.0
      %3808 = vmatpush1.msra.mxu0 0.0
      %3809 = vmatprep.subr.mxu0 0.0
      %3810 = vmatpush1.msra.mxu0 0.0
      %3811 = vmatprep.subr.mxu0 0.0
      %3812 = vmatpush1.msra.mxu0 0.0
      %3813 = vmatprep.subr.mxu0 0.0
      %3814 = vmatpush1.msra.mxu0 0.0
      %3815 = vmatprep.subr.mxu0 0.0
      %3816 = vmatpush1.msra.mxu0 0.0
      %3817 = vmatprep.subr.mxu0 0.0
      %3818 = vmatpush1.msra.mxu0 0.0
      %3819 = vmatprep.subr.mxu0 0.0
      %3820 = vmatpush1.msra.mxu0 0.0
      %3821 = vmatprep.subr.mxu0 0.0
      %3822 = vmatpush1.msra.mxu0 0.0
      %3823 = vmatprep.subr.mxu0 0.0
      %3824 = vmatpush1.msra.mxu0 0.0
      %3825 = vmatprep.subr.mxu0 0.0
      %3826 = vmatpush1.msra.mxu0 0.0
      %3827 = vmatprep.subr.mxu0 0.0
      %3828 = vmatpush1.msra.mxu0 0.0
      %3829 = vmatprep.subr.mxu0 0.0
      %3830 = vmatpush1.msra.mxu0 0.0
      %3831 = vmatprep.subr.mxu0 0.0
      %3832 = vmatpush1.msra.mxu0 0.0
      %3833 = vmatprep.mubr.f32.mxu0 0.0
      %3834 = vmatmul.mubr.f32.gmra.mrb[0].mxu0 %v1152
      %v3835 = vpop.f32.mrb[0].mxu0
      %v3836 = vadd.f32 %v3607, %v3835
      %v3837 = vpop.f32.mrb[0].mxu0
      %3838 = vmatprep.mubr.f32.mxu0 0.0
      %3839 = vmatmul.mubr.f32.gmra.mrb[0].mxu0 %v1155
      %v3840 = vpop.f32.mrb[0].mxu0
      %v3841 = vadd.f32 %v3608, %v3840
      %v3842 = vpop.f32.mrb[0].mxu0
      %3843 = vdwg.mxu0
      %3844 = vmatprep.subr.mxu0 0.0
      %3845 = vmatpush1.msra.mxu0 %v3555
      %3846 = vmatprep.subr.mxu0 0.0
      %3847 = vmatpush1.msra.mxu0 %v3560
      %3848 = vmatprep.subr.mxu0 0.0
      %3849 = vmatpush1.msra.mxu0 0.0
      %3850 = vmatprep.subr.mxu0 0.0
      %3851 = vmatpush1.msra.mxu0 0.0
      %3852 = vmatprep.subr.mxu0 0.0
      %3853 = vmatpush1.msra.mxu0 0.0
      %3854 = vmatprep.subr.mxu0 0.0
      %3855 = vmatpush1.msra.mxu0 0.0
      %3856 = vmatprep.subr.mxu0 0.0
      %3857 = vmatpush1.msra.mxu0 0.0
      %3858 = vmatprep.subr.mxu0 0.0
      %3859 = vmatpush1.msra.mxu0 0.0
      %3860 = vmatprep.subr.mxu0 0.0
      %3861 = vmatpush1.msra.mxu0 0.0
      %3862 = vmatprep.subr.mxu0 0.0
      %3863 = vmatpush1.msra.mxu0 0.0
      %3864 = vmatprep.subr.mxu0 0.0
      %3865 = vmatpush1.msra.mxu0 0.0
      %3866 = vmatprep.subr.mxu0 0.0
      %3867 = vmatpush1.msra.mxu0 0.0
      %3868 = vmatprep.subr.mxu0 0.0
      %3869 = vmatpush1.msra.mxu0 0.0
      %3870 = vmatprep.subr.mxu0 0.0
      %3871 = vmatpush1.msra.mxu0 0.0
      %3872 = vmatprep.subr.mxu0 0.0
      %3873 = vmatpush1.msra.mxu0 0.0
      %3874 = vmatprep.subr.mxu0 0.0
      %3875 = vmatpush1.msra.mxu0 0.0
      %3876 = vmatprep.subr.mxu0 0.0
      %3877 = vmatpush1.msra.mxu0 0.0
      %3878 = vmatprep.subr.mxu0 0.0
      %3879 = vmatpush1.msra.mxu0 0.0
      %3880 = vmatprep.subr.mxu0 0.0
      %3881 = vmatpush1.msra.mxu0 0.0
      %3882 = vmatprep.subr.mxu0 0.0
      %3883 = vmatpush1.msra.mxu0 0.0
      %3884 = vmatprep.subr.mxu0 0.0
      %3885 = vmatpush1.msra.mxu0 0.0
      %3886 = vmatprep.subr.mxu0 0.0
      %3887 = vmatpush1.msra.mxu0 0.0
      %3888 = vmatprep.subr.mxu0 0.0
      %3889 = vmatpush1.msra.mxu0 0.0
      %3890 = vmatprep.subr.mxu0 0.0
      %3891 = vmatpush1.msra.mxu0 0.0
      %3892 = vmatprep.subr.mxu0 0.0
      %3893 = vmatpush1.msra.mxu0 0.0
      %3894 = vmatprep.subr.mxu0 0.0
      %3895 = vmatpush1.msra.mxu0 0.0
      %3896 = vmatprep.subr.mxu0 0.0
      %3897 = vmatpush1.msra.mxu0 0.0
      %3898 = vmatprep.subr.mxu0 0.0
      %3899 = vmatpush1.msra.mxu0 0.0
      %3900 = vmatprep.subr.mxu0 0.0
      %3901 = vmatpush1.msra.mxu0 0.0
      %3902 = vmatprep.subr.mxu0 0.0
      %3903 = vmatpush1.msra.mxu0 0.0
      %3904 = vmatprep.subr.mxu0 0.0
      %3905 = vmatpush1.msra.mxu0 0.0
      %3906 = vmatprep.subr.mxu0 0.0
      %3907 = vmatpush1.msra.mxu0 0.0
      %3908 = vmatprep.mubr.f32.mxu0 0.0
      %3909 = vmatmul.mubr.f32.gmra.mrb[0].mxu0 %v1233
      %v3910 = vpop.f32.mrb[0].mxu0
      %v3911 = vadd.f32 %v3609, %v3910
      %v3912 = vpop.f32.mrb[0].mxu0
      %3913 = vmatprep.mubr.f32.mxu0 0.0
      %3914 = vmatmul.mubr.f32.gmra.mrb[0].mxu0 %v1236
      %v3915 = vpop.f32.mrb[0].mxu0
      %v3916 = vadd.f32 %v3610, %v3915
      %v3917 = vpop.f32.mrb[0].mxu0
      %3918 = vdwg.mxu0
      %3919 = vmatprep.subr.mxu0 0.0
      %3920 = vmatpush1.msra.mxu0 %v3565
      %3921 = vmatprep.subr.mxu0 0.0
      %3922 = vmatpush1.msra.mxu0 %v3570
      %3923 = vmatprep.subr.mxu0 0.0
      %3924 = vmatpush1.msra.mxu0 0.0
      %3925 = vmatprep.subr.mxu0 0.0
      %3926 = vmatpush1.msra.mxu0 0.0
      %3927 = vmatprep.subr.mxu0 0.0
      %3928 = vmatpush1.msra.mxu0 0.0
      %3929 = vmatprep.subr.mxu0 0.0
      %3930 = vmatpush1.msra.mxu0 0.0
      %3931 = vmatprep.subr.mxu0 0.0
      %3932 = vmatpush1.msra.mxu0 0.0
      %3933 = vmatprep.subr.mxu0 0.0
      %3934 = vmatpush1.msra.mxu0 0.0
      %3935 = vmatprep.subr.mxu0 0.0
      %3936 = vmatpush1.msra.mxu0 0.0
      %3937 = vmatprep.subr.mxu0 0.0
      %3938 = vmatpush1.msra.mxu0 0.0
      %3939 = vmatprep.subr.mxu0 0.0
      %3940 = vmatpush1.msra.mxu0 0.0
      %3941 = vmatprep.subr.mxu0 0.0
      %3942 = vmatpush1.msra.mxu0 0.0
      %3943 = vmatprep.subr.mxu0 0.0
      %3944 = vmatpush1.msra.mxu0 0.0
      %3945 = vmatprep.subr.mxu0 0.0
      %3946 = vmatpush1.msra.mxu0 0.0
      %3947 = vmatprep.subr.mxu0 0.0
      %3948 = vmatpush1.msra.mxu0 0.0
      %3949 = vmatprep.subr.mxu0 0.0
      %3950 = vmatpush1.msra.mxu0 0.0
      %3951 = vmatprep.subr.mxu0 0.0
      %3952 = vmatpush1.msra.mxu0 0.0
      %3953 = vmatprep.subr.mxu0 0.0
      %3954 = vmatpush1.msra.mxu0 0.0
      %3955 = vmatprep.subr.mxu0 0.0
      %3956 = vmatpush1.msra.mxu0 0.0
      %3957 = vmatprep.subr.mxu0 0.0
      %3958 = vmatpush1.msra.mxu0 0.0
      %3959 = vmatprep.subr.mxu0 0.0
      %3960 = vmatpush1.msra.mxu0 0.0
      %3961 = vmatprep.subr.mxu0 0.0
      %3962 = vmatpush1.msra.mxu0 0.0
      %3963 = vmatprep.subr.mxu0 0.0
      %3964 = vmatpush1.msra.mxu0 0.0
      %3965 = vmatprep.subr.mxu0 0.0
      %3966 = vmatpush1.msra.mxu0 0.0
      %3967 = vmatprep.subr.mxu0 0.0
      %3968 = vmatpush1.msra.mxu0 0.0
      %3969 = vmatprep.subr.mxu0 0.0
      %3970 = vmatpush1.msra.mxu0 0.0
      %3971 = vmatprep.subr.mxu0 0.0
      %3972 = vmatpush1.msra.mxu0 0.0
      %3973 = vmatprep.subr.mxu0 0.0
      %3974 = vmatpush1.msra.mxu0 0.0
      %3975 = vmatprep.subr.mxu0 0.0
      %3976 = vmatpush1.msra.mxu0 0.0
      %3977 = vmatprep.subr.mxu0 0.0
      %3978 = vmatpush1.msra.mxu0 0.0
      %3979 = vmatprep.subr.mxu0 0.0
      %3980 = vmatpush1.msra.mxu0 0.0
      %3981 = vmatprep.subr.mxu0 0.0
      %3982 = vmatpush1.msra.mxu0 0.0
      %3983 = vmatprep.mubr.f32.mxu0 0.0
      %3984 = vmatmul.mubr.f32.gmra.mrb[0].mxu0 %v1314
      %v3985 = vpop.f32.mrb[0].mxu0
      %v3986 = vadd.f32 %v3611, %v3985
      %v3987 = vpop.f32.mrb[0].mxu0
      %3988 = vmatprep.mubr.f32.mxu0 0.0
      %3989 = vmatmul.mubr.f32.gmra.mrb[0].mxu0 %v1317
      %v3990 = vpop.f32.mrb[0].mxu0
      %v3991 = vadd.f32 %v3612, %v3990
      %v3992 = vpop.f32.mrb[0].mxu0
      %3993 = vdwg.mxu0
      %3994 = vmatprep.subr.mxu0 0.0
      %3995 = vmatpush1.msra.mxu0 %v3575
      %3996 = vmatprep.subr.mxu0 0.0
      %3997 = vmatpush1.msra.mxu0 %v3580
      %3998 = vmatprep.subr.mxu0 0.0
      %3999 = vmatpush1.msra.mxu0 0.0
      %4000 = vmatprep.subr.mxu0 0.0
      %4001 = vmatpush1.msra.mxu0 0.0
      %4002 = vmatprep.subr.mxu0 0.0
      %4003 = vmatpush1.msra.mxu0 0.0
      %4004 = vmatprep.subr.mxu0 0.0
      %4005 = vmatpush1.msra.mxu0 0.0
      %4006 = vmatprep.subr.mxu0 0.0
      %4007 = vmatpush1.msra.mxu0 0.0
      %4008 = vmatprep.subr.mxu0 0.0
      %4009 = vmatpush1.msra.mxu0 0.0
      %4010 = vmatprep.subr.mxu0 0.0
      %4011 = vmatpush1.msra.mxu0 0.0
      %4012 = vmatprep.subr.mxu0 0.0
      %4013 = vmatpush1.msra.mxu0 0.0
      %4014 = vmatprep.subr.mxu0 0.0
      %4015 = vmatpush1.msra.mxu0 0.0
      %4016 = vmatprep.subr.mxu0 0.0
      %4017 = vmatpush1.msra.mxu0 0.0
      %4018 = vmatprep.subr.mxu0 0.0
      %4019 = vmatpush1.msra.mxu0 0.0
      %4020 = vmatprep.subr.mxu0 0.0
      %4021 = vmatpush1.msra.mxu0 0.0
      %4022 = vmatprep.subr.mxu0 0.0
      %4023 = vmatpush1.msra.mxu0 0.0
      %4024 = vmatprep.subr.mxu0 0.0
      %4025 = vmatpush1.msra.mxu0 0.0
      %4026 = vmatprep.subr.mxu0 0.0
      %4027 = vmatpush1.msra.mxu0 0.0
      %4028 = vmatprep.subr.mxu0 0.0
      %4029 = vmatpush1.msra.mxu0 0.0
      %4030 = vmatprep.subr.mxu0 0.0
      %4031 = vmatpush1.msra.mxu0 0.0
      %4032 = vmatprep.subr.mxu0 0.0
      %4033 = vmatpush1.msra.mxu0 0.0
      %4034 = vmatprep.subr.mxu0 0.0
      %4035 = vmatpush1.msra.mxu0 0.0
      %4036 = vmatprep.subr.mxu0 0.0
      %4037 = vmatpush1.msra.mxu0 0.0
      %4038 = vmatprep.subr.mxu0 0.0
      %4039 = vmatpush1.msra.mxu0 0.0
      %4040 = vmatprep.subr.mxu0 0.0
      %4041 = vmatpush1.msra.mxu0 0.0
      %4042 = vmatprep.subr.mxu0 0.0
      %4043 = vmatpush1.msra.mxu0 0.0
      %4044 = vmatprep.subr.mxu0 0.0
      %4045 = vmatpush1.msra.mxu0 0.0
      %4046 = vmatprep.subr.mxu0 0.0
      %4047 = vmatpush1.msra.mxu0 0.0
      %4048 = vmatprep.subr.mxu0 0.0
      %4049 = vmatpush1.msra.mxu0 0.0
      %4050 = vmatprep.subr.mxu0 0.0
      %4051 = vmatpush1.msra.mxu0 0.0
      %4052 = vmatprep.subr.mxu0 0.0
      %4053 = vmatpush1.msra.mxu0 0.0
      %4054 = vmatprep.subr.mxu0 0.0
      %4055 = vmatpush1.msra.mxu0 0.0
      %4056 = vmatprep.subr.mxu0 0.0
      %4057 = vmatpush1.msra.mxu0 0.0
      %4058 = vmatprep.mubr.f32.mxu0 0.0
      %4059 = vmatmul.mubr.f32.gmra.mrb[0].mxu0 %v1395
      %v4060 = vpop.f32.mrb[0].mxu0
      %v4061 = vadd.f32 %v3613, %v4060
      %v4062 = vpop.f32.mrb[0].mxu0
      %4063 = vmatprep.mubr.f32.mxu0 0.0
      %4064 = vmatmul.mubr.f32.gmra.mrb[0].mxu0 %v1398
      %v4065 = vpop.f32.mrb[0].mxu0
      %v4066 = vadd.f32 %v3614, %v4065
      %v4067 = vpop.f32.mrb[0].mxu0
      %4068 = vdwg.mxu0
      %4069 = vmatprep.subr.mxu0 0.0
      %4070 = vmatpush1.msra.mxu0 %v3585
      %4071 = vmatprep.subr.mxu0 0.0
      %4072 = vmatpush1.msra.mxu0 %v3590
      %4073 = vmatprep.subr.mxu0 0.0
      %4074 = vmatpush1.msra.mxu0 0.0
      %4075 = vmatprep.subr.mxu0 0.0
      %4076 = vmatpush1.msra.mxu0 0.0
      %4077 = vmatprep.subr.mxu0 0.0
      %4078 = vmatpush1.msra.mxu0 0.0
      %4079 = vmatprep.subr.mxu0 0.0
      %4080 = vmatpush1.msra.mxu0 0.0
      %4081 = vmatprep.subr.mxu0 0.0
      %4082 = vmatpush1.msra.mxu0 0.0
      %4083 = vmatprep.subr.mxu0 0.0
      %4084 = vmatpush1.msra.mxu0 0.0
      %4085 = vmatprep.subr.mxu0 0.0
      %4086 = vmatpush1.msra.mxu0 0.0
      %4087 = vmatprep.subr.mxu0 0.0
      %4088 = vmatpush1.msra.mxu0 0.0
      %4089 = vmatprep.subr.mxu0 0.0
      %4090 = vmatpush1.msra.mxu0 0.0
      %4091 = vmatprep.subr.mxu0 0.0
      %4092 = vmatpush1.msra.mxu0 0.0
      %4093 = vmatprep.subr.mxu0 0.0
      %4094 = vmatpush1.msra.mxu0 0.0
      %4095 = vmatprep.subr.mxu0 0.0
      %4096 = vmatpush1.msra.mxu0 0.0
      %4097 = vmatprep.subr.mxu0 0.0
      %4098 = vmatpush1.msra.mxu0 0.0
      %4099 = vmatprep.subr.mxu0 0.0
      %4100 = vmatpush1.msra.mxu0 0.0
      %4101 = vmatprep.subr.mxu0 0.0
      %4102 = vmatpush1.msra.mxu0 0.0
      %4103 = vmatprep.subr.mxu0 0.0
      %4104 = vmatpush1.msra.mxu0 0.0
      %4105 = vmatprep.subr.mxu0 0.0
      %4106 = vmatpush1.msra.mxu0 0.0
      %4107 = vmatprep.subr.mxu0 0.0
      %4108 = vmatpush1.msra.mxu0 0.0
      %4109 = vmatprep.subr.mxu0 0.0
      %4110 = vmatpush1.msra.mxu0 0.0
      %4111 = vmatprep.subr.mxu0 0.0
      %4112 = vmatpush1.msra.mxu0 0.0
      %4113 = vmatprep.subr.mxu0 0.0
      %4114 = vmatpush1.msra.mxu0 0.0
      %4115 = vmatprep.subr.mxu0 0.0
      %4116 = vmatpush1.msra.mxu0 0.0
      %4117 = vmatprep.subr.mxu0 0.0
      %4118 = vmatpush1.msra.mxu0 0.0
      %4119 = vmatprep.subr.mxu0 0.0
      %4120 = vmatpush1.msra.mxu0 0.0
      %4121 = vmatprep.subr.mxu0 0.0
      %4122 = vmatpush1.msra.mxu0 0.0
      %4123 = vmatprep.subr.mxu0 0.0
      %4124 = vmatpush1.msra.mxu0 0.0
      %4125 = vmatprep.subr.mxu0 0.0
      %4126 = vmatpush1.msra.mxu0 0.0
      %4127 = vmatprep.subr.mxu0 0.0
      %4128 = vmatpush1.msra.mxu0 0.0
      %4129 = vmatprep.subr.mxu0 0.0
      %4130 = vmatpush1.msra.mxu0 0.0
      %4131 = vmatprep.subr.mxu0 0.0
      %4132 = vmatpush1.msra.mxu0 0.0
      %4133 = vmatprep.mubr.f32.mxu0 0.0
      %4134 = vmatmul.mubr.f32.gmra.mrb[0].mxu0 %v1476
      %v4135 = vpop.f32.mrb[0].mxu0
      %v4136 = vadd.f32 %v3615, %v4135
      %v4137 = vpop.f32.mrb[0].mxu0
      %4138 = vmatprep.mubr.f32.mxu0 0.0
      %4139 = vmatmul.mubr.f32.gmra.mrb[0].mxu0 %v1479
      %v4140 = vpop.f32.mrb[0].mxu0
      %v4141 = vadd.f32 %v3616, %v4140
      %v4142 = vpop.f32.mrb[0].mxu0
      %4143 = vdwg.mxu0
      %4144 = vmatprep.subr.mxu0 0.0
      %4145 = vmatpush1.msra.mxu0 %v3595
      %4146 = vmatprep.subr.mxu0 0.0
      %4147 = vmatpush1.msra.mxu0 %v3600
      %4148 = vmatprep.subr.mxu0 0.0
      %4149 = vmatpush1.msra.mxu0 0.0
      %4150 = vmatprep.subr.mxu0 0.0
      %4151 = vmatpush1.msra.mxu0 0.0
      %4152 = vmatprep.subr.mxu0 0.0
      %4153 = vmatpush1.msra.mxu0 0.0
      %4154 = vmatprep.subr.mxu0 0.0
      %4155 = vmatpush1.msra.mxu0 0.0
      %4156 = vmatprep.subr.mxu0 0.0
      %4157 = vmatpush1.msra.mxu0 0.0
      %4158 = vmatprep.subr.mxu0 0.0
      %4159 = vmatpush1.msra.mxu0 0.0
      %4160 = vmatprep.subr.mxu0 0.0
      %4161 = vmatpush1.msra.mxu0 0.0
      %4162 = vmatprep.subr.mxu0 0.0
      %4163 = vmatpush1.msra.mxu0 0.0
      %4164 = vmatprep.subr.mxu0 0.0
      %4165 = vmatpush1.msra.mxu0 0.0
      %4166 = vmatprep.subr.mxu0 0.0
      %4167 = vmatpush1.msra.mxu0 0.0
      %4168 = vmatprep.subr.mxu0 0.0
      %4169 = vmatpush1.msra.mxu0 0.0
      %4170 = vmatprep.subr.mxu0 0.0
      %4171 = vmatpush1.msra.mxu0 0.0
      %4172 = vmatprep.subr.mxu0 0.0
      %4173 = vmatpush1.msra.mxu0 0.0
      %4174 = vmatprep.subr.mxu0 0.0
      %4175 = vmatpush1.msra.mxu0 0.0
      %4176 = vmatprep.subr.mxu0 0.0
      %4177 = vmatpush1.msra.mxu0 0.0
      %4178 = vmatprep.subr.mxu0 0.0
      %4179 = vmatpush1.msra.mxu0 0.0
      %4180 = vmatprep.subr.mxu0 0.0
      %4181 = vmatpush1.msra.mxu0 0.0
      %4182 = vmatprep.subr.mxu0 0.0
      %4183 = vmatpush1.msra.mxu0 0.0
      %4184 = vmatprep.subr.mxu0 0.0
      %4185 = vmatpush1.msra.mxu0 0.0
      %4186 = vmatprep.subr.mxu0 0.0
      %4187 = vmatpush1.msra.mxu0 0.0
      %4188 = vmatprep.subr.mxu0 0.0
      %4189 = vmatpush1.msra.mxu0 0.0
      %4190 = vmatprep.subr.mxu0 0.0
      %4191 = vmatpush1.msra.mxu0 0.0
      %4192 = vmatprep.subr.mxu0 0.0
      %4193 = vmatpush1.msra.mxu0 0.0
      %4194 = vmatprep.subr.mxu0 0.0
      %4195 = vmatpush1.msra.mxu0 0.0
      %4196 = vmatprep.subr.mxu0 0.0
      %4197 = vmatpush1.msra.mxu0 0.0
      %4198 = vmatprep.subr.mxu0 0.0
      %4199 = vmatpush1.msra.mxu0 0.0
      %4200 = vmatprep.subr.mxu0 0.0
      %4201 = vmatpush1.msra.mxu0 0.0
      %4202 = vmatprep.subr.mxu0 0.0
      %4203 = vmatpush1.msra.mxu0 0.0
      %4204 = vmatprep.subr.mxu0 0.0
      %4205 = vmatpush1.msra.mxu0 0.0
      %4206 = vmatprep.subr.mxu0 0.0
      %4207 = vmatpush1.msra.mxu0 0.0
      %4208 = vmatprep.mubr.f32.mxu0 0.0
      %4209 = vmatmul.mubr.f32.gmra.mrb[0].mxu0 %v1557
      %v4210 = vpop.f32.mrb[0].mxu0
      %v4211 = vadd.f32 %v3617, %v4210
      %v4212 = vpop.f32.mrb[0].mxu0
      %4213 = vmatprep.mubr.f32.mxu0 0.0
      %4214 = vmatmul.mubr.f32.gmra.mrb[0].mxu0 %v1560
      %v4215 = vpop.f32.mrb[0].mxu0
      %v4216 = vadd.f32 %v3618, %v4215
      %v4217 = vpop.f32.mrb[0].mxu0
      %4218 = vdwg.mxu0
      %v4219 = vlaneseq
      %v4220 = vshrl.u32 %v4219, 7
      %v4221 = vsub.s32 0, %v4220
      %v4222 = vrot.slane %v3409, %v4221
      %v4223 = vadd.f32 %v3686, %v4222
      %v4224 = vadd.f32 %v3691, %v4222
      %v4225 = vadd.f32 %v3761, %v4222
      %v4226 = vadd.f32 %v3766, %v4222
      %v4227 = vadd.f32 %v3836, %v4222
      %v4228 = vadd.f32 %v3841, %v4222
      %v4229 = vadd.f32 %v3911, %v4222
      %v4230 = vadd.f32 %v3916, %v4222
      %v4231 = vadd.f32 %v3986, %v4222
      %v4232 = vadd.f32 %v3991, %v4222
      %v4233 = vadd.f32 %v4061, %v4222
      %v4234 = vadd.f32 %v4066, %v4222
      %v4235 = vadd.f32 %v4136, %v4222
      %v4236 = vadd.f32 %v4141, %v4222
      %v4237 = vadd.f32 %v4211, %v4222
      %v4238 = vadd.f32 %v4216, %v4222
      %v4239 = vmax.f32 %v4223, 0.0
      %v4240 = vmax.f32 %v4224, 0.0
      %v4241 = vmax.f32 %v4225, 0.0
      %v4242 = vmax.f32 %v4226, 0.0
      %v4243 = vmax.f32 %v4227, 0.0
      %v4244 = vmax.f32 %v4228, 0.0
      %v4245 = vmax.f32 %v4229, 0.0
      %v4246 = vmax.f32 %v4230, 0.0
      %v4247 = vmax.f32 %v4231, 0.0
      %v4248 = vmax.f32 %v4232, 0.0
      %v4249 = vmax.f32 %v4233, 0.0
      %v4250 = vmax.f32 %v4234, 0.0
      %v4251 = vmax.f32 %v4235, 0.0
      %v4252 = vmax.f32 %v4236, 0.0
      %v4253 = vmax.f32 %v4237, 0.0
      %v4254 = vmax.f32 %v4238, 0.0
      %v4255 = vadd.f32 %v4239, %v4240
      %v4256 = vrot.slane %v4255, 4
      %v4257 = vadd.f32 %v4255, %v4256
      %v4258 = vrot.slane %v4257, 2
      %v4259 = vadd.f32 %v4257, %v4258
      %v4260 = vrot.slane %v4259, 1
      %v4261 = vadd.f32 %v4259, %v4260
      %v4262 = vadd.f32 %v4241, %v4242
      %v4263 = vrot.slane %v4262, 4
      %v4264 = vadd.f32 %v4262, %v4263
      %v4265 = vrot.slane %v4264, 2
      %v4266 = vadd.f32 %v4264, %v4265
      %v4267 = vrot.slane %v4266, 1
      %v4268 = vadd.f32 %v4266, %v4267
      %v4269 = vadd.f32 %v4243, %v4244
      %v4270 = vrot.slane %v4269, 4
      %v4271 = vadd.f32 %v4269, %v4270
      %v4272 = vrot.slane %v4271, 2
      %v4273 = vadd.f32 %v4271, %v4272
      %v4274 = vrot.slane %v4273, 1
      %v4275 = vadd.f32 %v4273, %v4274
      %v4276 = vadd.f32 %v4245, %v4246
      %v4277 = vrot.slane %v4276, 4
      %v4278 = vadd.f32 %v4276, %v4277
      %v4279 = vrot.slane %v4278, 2
      %v4280 = vadd.f32 %v4278, %v4279
      %v4281 = vrot.slane %v4280, 1
      %v4282 = vadd.f32 %v4280, %v4281
      %v4283 = vadd.f32 %v4247, %v4248
      %v4284 = vrot.slane %v4283, 4
      %v4285 = vadd.f32 %v4283, %v4284
      %v4286 = vrot.slane %v4285, 2
      %v4287 = vadd.f32 %v4285, %v4286
      %v4288 = vrot.slane %v4287, 1
      %v4289 = vadd.f32 %v4287, %v4288
      %v4290 = vadd.f32 %v4249, %v4250
      %v4291 = vrot.slane %v4290, 4
      %v4292 = vadd.f32 %v4290, %v4291
      %v4293 = vrot.slane %v4292, 2
      %v4294 = vadd.f32 %v4292, %v4293
      %v4295 = vrot.slane %v4294, 1
      %v4296 = vadd.f32 %v4294, %v4295
      %v4297 = vadd.f32 %v4251, %v4252
      %v4298 = vrot.slane %v4297, 4
      %v4299 = vadd.f32 %v4297, %v4298
      %v4300 = vrot.slane %v4299, 2
      %v4301 = vadd.f32 %v4299, %v4300
      %v4302 = vrot.slane %v4301, 1
      %v4303 = vadd.f32 %v4301, %v4302
      %v4304 = vadd.f32 %v4253, %v4254
      %v4305 = vrot.slane %v4304, 4
      %v4306 = vadd.f32 %v4304, %v4305
      %v4307 = vrot.slane %v4306, 2
      %v4308 = vadd.f32 %v4306, %v4307
      %v4309 = vrot.slane %v4308, 1
      %v4310 = vadd.f32 %v4308, %v4309
      %v4311 = vrcp.pop 16.0
      %v4312 = vmul.f32 %v4261, %v4311
      %v4313 = vmul.f32 %v4268, %v4311
      %v4314 = vmul.f32 %v4275, %v4311
      %v4315 = vmul.f32 %v4282, %v4311
      %v4316 = vmul.f32 %v4289, %v4311
      %v4317 = vmul.f32 %v4296, %v4311
      %v4318 = vmul.f32 %v4303, %v4311
      %v4319 = vmul.f32 %v4310, %v4311
      %v4320 = vld [vmem:[%s10] sm:$0xf]
      %v4321 = vld [vmem:[%s10 + $0x4] sm:$0xf]
      %v4322 = vld [vmem:[%s10 + $0x8] sm:$0xf]
      %v4323 = vld [vmem:[%s10 + $0xc] sm:$0xf]
      %v4324 = vunpack.c.l.bf16 %v4320
      %v4325 = vunpack.c.l.bf16 %v4321
      %v4326 = vunpack.c.l.bf16 %v4322
      %v4327 = vunpack.c.l.bf16 %v4323
      %vm4336 = vcmask 1041409
      %v4337 = vsel %vm4336, %v4313, %v4312
      %vm4338 = vcmask 1042434
      %v4339 = vsel %vm4338, %v4314, %v4337
      %vm4340 = vcmask 1043459
      %v4341 = vsel %vm4340, %v4315, %v4339
      %vm4342 = vcmask 1044484
      %v4343 = vsel %vm4342, %v4316, %v4341
      %vm4344 = vcmask 1045509
      %v4345 = vsel %vm4344, %v4317, %v4343
      %vm4346 = vcmask 1046534
      %v4347 = vsel %vm4346, %v4318, %v4345
      %vm4348 = vcmask 1047559
      %v4349 = vsel %vm4348, %v4319, %v4347
      %v4350 = vsel %vm779, %v4349, 0
      %4352 = vmatprep.subr.mxu0 0.0
      %4353 = vmatpush1.msra.mxu0 %v4324
      %4354 = vmatprep.subr.mxu0 0.0
      %4355 = vmatpush1.msra.mxu0 %v4325
      %4356 = vmatprep.subr.mxu0 0.0
      %4357 = vmatpush1.msra.mxu0 %v4326
      %4358 = vmatprep.subr.mxu0 0.0
      %4359 = vmatpush1.msra.mxu0 %v4327
      %4360 = vmatprep.subr.mxu0 0.0
      %4361 = vmatpush1.msra.mxu0 0.0
      %4362 = vmatprep.subr.mxu0 0.0
      %4363 = vmatpush1.msra.mxu0 0.0
      %4364 = vmatprep.subr.mxu0 0.0
      %4365 = vmatpush1.msra.mxu0 0.0
      %4366 = vmatprep.subr.mxu0 0.0
      %4367 = vmatpush1.msra.mxu0 0.0
      %4368 = vmatprep.subr.mxu0 0.0
      %4369 = vmatpush1.msra.mxu0 0.0
      %4370 = vmatprep.subr.mxu0 0.0
      %4371 = vmatpush1.msra.mxu0 0.0
      %4372 = vmatprep.subr.mxu0 0.0
      %4373 = vmatpush1.msra.mxu0 0.0
      %4374 = vmatprep.subr.mxu0 0.0
      %4375 = vmatpush1.msra.mxu0 0.0
      %4376 = vmatprep.subr.mxu0 0.0
      %4377 = vmatpush1.msra.mxu0 0.0
      %4378 = vmatprep.subr.mxu0 0.0
      %4379 = vmatpush1.msra.mxu0 0.0
      %4380 = vmatprep.subr.mxu0 0.0
      %4381 = vmatpush1.msra.mxu0 0.0
      %4382 = vmatprep.subr.mxu0 0.0
      %4383 = vmatpush1.msra.mxu0 0.0
      %4384 = vmatprep.subr.mxu0 0.0
      %4385 = vmatpush1.msra.mxu0 0.0
      %4386 = vmatprep.subr.mxu0 0.0
      %4387 = vmatpush1.msra.mxu0 0.0
      %4388 = vmatprep.subr.mxu0 0.0
      %4389 = vmatpush1.msra.mxu0 0.0
      %4390 = vmatprep.subr.mxu0 0.0
      %4391 = vmatpush1.msra.mxu0 0.0
      %4392 = vmatprep.subr.mxu0 0.0
      %4393 = vmatpush1.msra.mxu0 0.0
      %4394 = vmatprep.subr.mxu0 0.0
      %4395 = vmatpush1.msra.mxu0 0.0
      %4396 = vmatprep.subr.mxu0 0.0
      %4397 = vmatpush1.msra.mxu0 0.0
      %4398 = vmatprep.subr.mxu0 0.0
      %4399 = vmatpush1.msra.mxu0 0.0
      %4400 = vmatprep.subr.mxu0 0.0
      %4401 = vmatpush1.msra.mxu0 0.0
      %4402 = vmatprep.subr.mxu0 0.0
      %4403 = vmatpush1.msra.mxu0 0.0
      %4404 = vmatprep.subr.mxu0 0.0
      %4405 = vmatpush1.msra.mxu0 0.0
      %4406 = vmatprep.subr.mxu0 0.0
      %4407 = vmatpush1.msra.mxu0 0.0
      %4408 = vmatprep.subr.mxu0 0.0
      %4409 = vmatpush1.msra.mxu0 0.0
      %4410 = vmatprep.subr.mxu0 0.0
      %4411 = vmatpush1.msra.mxu0 0.0
      %4412 = vmatprep.subr.mxu0 0.0
      %4413 = vmatpush1.msra.mxu0 0.0
      %4414 = vmatprep.subr.mxu0 0.0
      %4415 = vmatpush1.msra.mxu0 0.0
      %4416 = vmatprep.mubr.f32.mxu0 0.0
      %4417 = vmatmul.mubr.f32.gmra.mrb[0].mxu0 %v4350
      %v4418 = vpop.f32.mrb[0].mxu0
      %v4419 = vadd.f32 0.0, %v4418
      %v4420 = vpop.f32.mrb[0].mxu0
      %4421 = vdwg.mxu0
      %v4422 = vtanh.pop %v4419
      %v4424 = vcombine.high %v4422, %v4422
      %v4426 = vunpack.c.l.s4 1966171168
      %v4427 = vunpack.c.0.s8 %v4426
      %v4428 = vlaneseq
      %v4429 = vshrl.u32 %v4428, 7
      %v4430 = vsub.s32 %v4427, %v4429
      %v4431 = vrot.slane %v4422, %v4430
      %v4433 = vunpack.c.l.s4 1966171168
      %v4434 = vunpack.c.0.s8 %v4433
      %v4435 = vlaneseq
      %v4436 = vshrl.u32 %v4435, 7
      %v4437 = vsub.s32 %v4434, %v4436
      %v4438 = vrot.slane %v4424, %v4437
      %v4439 = vcombine.high %v4431, %v4431
      %v4440 = vcombine.high %v4438, %v4438
      %v4442 = vunpack.c.l.s4 1966171168
      %v4443 = vunpack.c.0.s8 %v4442
      %v4444 = vlaneseq
      %v4445 = vshrl.u32 %v4444, 7
      %v4446 = vsub.s32 %v4443, %v4445
      %v4447 = vrot.slane %v4431, %v4446
      %v4449 = vunpack.c.l.s4 1966171168
      %v4450 = vunpack.c.0.s8 %v4449
      %v4451 = vlaneseq
      %v4452 = vshrl.u32 %v4451, 7
      %v4453 = vsub.s32 %v4450, %v4452
      %v4454 = vrot.slane %v4438, %v4453
      %v4456 = vunpack.c.l.s4 1966171168
      %v4457 = vunpack.c.0.s8 %v4456
      %v4458 = vlaneseq
      %v4459 = vshrl.u32 %v4458, 7
      %v4460 = vsub.s32 %v4457, %v4459
      %v4461 = vrot.slane %v4439, %v4460
      %v4463 = vunpack.c.l.s4 1966171168
      %v4464 = vunpack.c.0.s8 %v4463
      %v4465 = vlaneseq
      %v4466 = vshrl.u32 %v4465, 7
      %v4467 = vsub.s32 %v4464, %v4466
      %v4468 = vrot.slane %v4440, %v4467
      %v4469 = vcombine.high %v4447, %v4447
      %v4470 = vcombine.high %v4454, %v4454
      %v4471 = vcombine.high %v4461, %v4461
      %v4472 = vcombine.high %v4468, %v4468
      %v4473 = vlaneseq
      %v4474 = vshrl.u32 %v4473, 7
      %v4475 = vsub.s32 0, %v4474
      %v4476 = vrot.slane %v4447, %v4475
      %v4477 = vlaneseq
      %v4478 = vshrl.u32 %v4477, 7
      %v4479 = vsub.s32 0, %v4478
      %v4480 = vrot.slane %v4461, %v4479
      %v4481 = vlaneseq
      %v4482 = vshrl.u32 %v4481, 7
      %v4483 = vsub.s32 0, %v4482
      %v4484 = vrot.slane %v4469, %v4483
      %v4485 = vlaneseq
      %v4486 = vshrl.u32 %v4485, 7
      %v4487 = vsub.s32 0, %v4486
      %v4488 = vrot.slane %v4471, %v4487
      %v4489 = vlaneseq
      %v4490 = vshrl.u32 %v4489, 7
      %v4491 = vsub.s32 0, %v4490
      %v4492 = vrot.slane %v4454, %v4491
      %v4493 = vlaneseq
      %v4494 = vshrl.u32 %v4493, 7
      %v4495 = vsub.s32 0, %v4494
      %v4496 = vrot.slane %v4468, %v4495
      %v4497 = vlaneseq
      %v4498 = vshrl.u32 %v4497, 7
      %v4499 = vsub.s32 0, %v4498
      %v4500 = vrot.slane %v4470, %v4499
      %v4501 = vlaneseq
      %v4502 = vshrl.u32 %v4501, 7
      %v4503 = vsub.s32 0, %v4502
      %v4504 = vrot.slane %v4472, %v4503
      %v4513 = vmul.f32 %v4239, %v4476
      %v4514 = vmul.f32 %v4240, %v4476
      %v4515 = vmul.f32 %v4241, %v4480
      %v4516 = vmul.f32 %v4242, %v4480
      %v4517 = vmul.f32 %v4243, %v4484
      %v4518 = vmul.f32 %v4244, %v4484
      %v4519 = vmul.f32 %v4245, %v4488
      %v4520 = vmul.f32 %v4246, %v4488
      %v4521 = vmul.f32 %v4247, %v4492
      %v4522 = vmul.f32 %v4248, %v4492
      %v4523 = vmul.f32 %v4249, %v4496
      %v4524 = vmul.f32 %v4250, %v4496
      %v4525 = vmul.f32 %v4251, %v4500
      %v4526 = vmul.f32 %v4252, %v4500
      %v4527 = vmul.f32 %v4253, %v4504
      %v4528 = vmul.f32 %v4254, %v4504
      %4529 = vadd.xlane.f32.xlu0 %v4513
      %v4530 = vpop.xlane.xlu0 %4529
      %4531 = vadd.xlane.f32.xlu0 %v4514
      %v4532 = vpop.xlane.xlu0 %4531
      %4533 = vadd.xlane.f32.xlu0 %v4515
      %v4534 = vpop.xlane.xlu0 %4533
      %4535 = vadd.xlane.f32.xlu0 %v4516
      %v4536 = vpop.xlane.xlu0 %4535
      %4537 = vadd.xlane.f32.xlu0 %v4517
      %v4538 = vpop.xlane.xlu0 %4537
      %4539 = vadd.xlane.f32.xlu0 %v4518
      %v4540 = vpop.xlane.xlu0 %4539
      %4541 = vadd.xlane.f32.xlu0 %v4519
      %v4542 = vpop.xlane.xlu0 %4541
      %4543 = vadd.xlane.f32.xlu0 %v4520
      %v4544 = vpop.xlane.xlu0 %4543
      %4545 = vadd.xlane.f32.xlu0 %v4521
      %v4546 = vpop.xlane.xlu0 %4545
      %4547 = vadd.xlane.f32.xlu0 %v4522
      %v4548 = vpop.xlane.xlu0 %4547
      %4549 = vadd.xlane.f32.xlu0 %v4523
      %v4550 = vpop.xlane.xlu0 %4549
      %4551 = vadd.xlane.f32.xlu0 %v4524
      %v4552 = vpop.xlane.xlu0 %4551
      %4553 = vadd.xlane.f32.xlu0 %v4525
      %v4554 = vpop.xlane.xlu0 %4553
      %4555 = vadd.xlane.f32.xlu0 %v4526
      %v4556 = vpop.xlane.xlu0 %4555
      %4557 = vadd.xlane.f32.xlu0 %v4527
      %v4558 = vpop.xlane.xlu0 %4557
      %4559 = vadd.xlane.f32.xlu0 %v4528
      %v4560 = vpop.xlane.xlu0 %4559
      %v4561 = vsub.f32 0.0, %v4530
      %v4562 = vsub.f32 0.0, %v4532
      %v4563 = vsub.f32 0.0, %v4534
      %v4564 = vsub.f32 0.0, %v4536
      %v4565 = vsub.f32 0.0, %v4538
      %v4566 = vsub.f32 0.0, %v4540
      %v4567 = vsub.f32 0.0, %v4542
      %v4568 = vsub.f32 0.0, %v4544
      %v4569 = vsub.f32 0.0, %v4546
      %v4570 = vsub.f32 0.0, %v4548
      %v4571 = vsub.f32 0.0, %v4550
      %v4572 = vsub.f32 0.0, %v4552
      %v4573 = vsub.f32 0.0, %v4554
      %v4574 = vsub.f32 0.0, %v4556
      %v4575 = vsub.f32 0.0, %v4558
      %v4576 = vsub.f32 0.0, %v4560
      %v4577 = vmul.f32 %v4561, 1.442695
      %v4578 = vpow.pop %v4577
      %v4579 = vmul.f32 %v4562, 1.442695
      %v4580 = vpow.pop %v4579
      %v4581 = vmul.f32 %v4563, 1.442695
      %v4582 = vpow.pop %v4581
      %v4583 = vmul.f32 %v4564, 1.442695
      %v4584 = vpow.pop %v4583
      %v4585 = vmul.f32 %v4565, 1.442695
      %v4586 = vpow.pop %v4585
      %v4587 = vmul.f32 %v4566, 1.442695
      %v4588 = vpow.pop %v4587
      %v4589 = vmul.f32 %v4567, 1.442695
      %v4590 = vpow.pop %v4589
      %v4591 = vmul.f32 %v4568, 1.442695
      %v4592 = vpow.pop %v4591
      %v4593 = vmul.f32 %v4569, 1.442695
      %v4594 = vpow.pop %v4593
      %v4595 = vmul.f32 %v4570, 1.442695
      %v4596 = vpow.pop %v4595
      %v4597 = vmul.f32 %v4571, 1.442695
      %v4598 = vpow.pop %v4597
      %v4599 = vmul.f32 %v4572, 1.442695
      %v4600 = vpow.pop %v4599
      %v4601 = vmul.f32 %v4573, 1.442695
      %v4602 = vpow.pop %v4601
      %v4603 = vmul.f32 %v4574, 1.442695
      %v4604 = vpow.pop %v4603
      %v4605 = vmul.f32 %v4575, 1.442695
      %v4606 = vpow.pop %v4605
      %v4607 = vmul.f32 %v4576, 1.442695
      %v4608 = vpow.pop %v4607
      %v4609 = vadd.f32 %v4578, 1.0
      %v4610 = vadd.f32 %v4580, 1.0
      %v4611 = vadd.f32 %v4582, 1.0
      %v4612 = vadd.f32 %v4584, 1.0
      %v4613 = vadd.f32 %v4586, 1.0
      %v4614 = vadd.f32 %v4588, 1.0
      %v4615 = vadd.f32 %v4590, 1.0
      %v4616 = vadd.f32 %v4592, 1.0
      %v4617 = vadd.f32 %v4594, 1.0
      %v4618 = vadd.f32 %v4596, 1.0
      %v4619 = vadd.f32 %v4598, 1.0
      %v4620 = vadd.f32 %v4600, 1.0
      %v4621 = vadd.f32 %v4602, 1.0
      %v4622 = vadd.f32 %v4604, 1.0
      %v4623 = vadd.f32 %v4606, 1.0
      %v4624 = vadd.f32 %v4608, 1.0
      %v4625 = vrcp.pop %v4609
      %v4626 = vrcp.pop %v4610
      %v4627 = vrcp.pop %v4611
      %v4628 = vrcp.pop %v4612
      %v4629 = vrcp.pop %v4613
      %v4630 = vrcp.pop %v4614
      %v4631 = vrcp.pop %v4615
      %v4632 = vrcp.pop %v4616
      %v4633 = vrcp.pop %v4617
      %v4634 = vrcp.pop %v4618
      %v4635 = vrcp.pop %v4619
      %v4636 = vrcp.pop %v4620
      %v4637 = vrcp.pop %v4621
      %v4638 = vrcp.pop %v4622
      %v4639 = vrcp.pop %v4623
      %v4640 = vrcp.pop %v4624
      %v4641 = vmul.f32 %v4625, %v4239
      %v4642 = vmul.f32 %v4626, %v4240
      %v4643 = vmul.f32 %v4627, %v4241
      %v4644 = vmul.f32 %v4628, %v4242
      %v4645 = vmul.f32 %v4629, %v4243
      %v4646 = vmul.f32 %v4630, %v4244
      %v4647 = vmul.f32 %v4631, %v4245
      %v4648 = vmul.f32 %v4632, %v4246
      %v4649 = vmul.f32 %v4633, %v4247
      %v4650 = vmul.f32 %v4634, %v4248
      %v4651 = vmul.f32 %v4635, %v4249
      %v4652 = vmul.f32 %v4636, %v4250
      %v4653 = vmul.f32 %v4637, %v4251
      %v4654 = vmul.f32 %v4638, %v4252
      %v4655 = vmul.f32 %v4639, %v4253
      %v4656 = vmul.f32 %v4640, %v4254
      %v4657 = vadd.f32 %v4641, %v4642
      %v4658 = vrot.slane %v4657, 4
      %v4659 = vadd.f32 %v4657, %v4658
      %v4660 = vrot.slane %v4659, 2
      %v4661 = vadd.f32 %v4659, %v4660
      %v4662 = vrot.slane %v4661, 1
      %v4663 = vadd.f32 %v4661, %v4662
      %v4664 = vadd.f32 %v4643, %v4644
      %v4665 = vrot.slane %v4664, 4
      %v4666 = vadd.f32 %v4664, %v4665
      %v4667 = vrot.slane %v4666, 2
      %v4668 = vadd.f32 %v4666, %v4667
      %v4669 = vrot.slane %v4668, 1
      %v4670 = vadd.f32 %v4668, %v4669
      %v4671 = vadd.f32 %v4645, %v4646
      %v4672 = vrot.slane %v4671, 4
      %v4673 = vadd.f32 %v4671, %v4672
      %v4674 = vrot.slane %v4673, 2
      %v4675 = vadd.f32 %v4673, %v4674
      %v4676 = vrot.slane %v4675, 1
      %v4677 = vadd.f32 %v4675, %v4676
      %v4678 = vadd.f32 %v4647, %v4648
      %v4679 = vrot.slane %v4678, 4
      %v4680 = vadd.f32 %v4678, %v4679
      %v4681 = vrot.slane %v4680, 2
      %v4682 = vadd.f32 %v4680, %v4681
      %v4683 = vrot.slane %v4682, 1
      %v4684 = vadd.f32 %v4682, %v4683
      %v4685 = vadd.f32 %v4649, %v4650
      %v4686 = vrot.slane %v4685, 4
      %v4687 = vadd.f32 %v4685, %v4686
      %v4688 = vrot.slane %v4687, 2
      %v4689 = vadd.f32 %v4687, %v4688
      %v4690 = vrot.slane %v4689, 1
      %v4691 = vadd.f32 %v4689, %v4690
      %v4692 = vadd.f32 %v4651, %v4652
      %v4693 = vrot.slane %v4692, 4
      %v4694 = vadd.f32 %v4692, %v4693
      %v4695 = vrot.slane %v4694, 2
      %v4696 = vadd.f32 %v4694, %v4695
      %v4697 = vrot.slane %v4696, 1
      %v4698 = vadd.f32 %v4696, %v4697
      %v4699 = vadd.f32 %v4653, %v4654
      %v4700 = vrot.slane %v4699, 4
      %v4701 = vadd.f32 %v4699, %v4700
      %v4702 = vrot.slane %v4701, 2
      %v4703 = vadd.f32 %v4701, %v4702
      %v4704 = vrot.slane %v4703, 1
      %v4705 = vadd.f32 %v4703, %v4704
      %v4706 = vadd.f32 %v4655, %v4656
      %v4707 = vrot.slane %v4706, 4
      %v4708 = vadd.f32 %v4706, %v4707
      %v4709 = vrot.slane %v4708, 2
      %v4710 = vadd.f32 %v4708, %v4709
      %v4711 = vrot.slane %v4710, 1
      %v4712 = vadd.f32 %v4710, %v4711
      %v4713 = vld [vmem:[%s11] sm:$0xf]
      %v4714 = vld [vmem:[%s11 + $0x4] sm:$0xf]
      %v4715 = vld [vmem:[%s11 + $0x8] sm:$0xf]
      %v4716 = vld [vmem:[%s11 + $0xc] sm:$0xf]
      %v4717 = vunpack.c.l.bf16 %v4713
      %v4718 = vunpack.c.l.bf16 %v4714
      %v4719 = vunpack.c.l.bf16 %v4715
      %v4720 = vunpack.c.l.bf16 %v4716
      %v4721 = vld [vmem:[%s12] sm:$0x1]
      %v4722 = vunpack.c.l.bf16 %v4721
      %v4723 = vlaneseq
      %v4724 = vshrl.u32 %v4723, 7
      %v4725 = vsub.s32 0, %v4724
      %v4726 = vrot.slane %v4722, %v4725
      %v4735 = vsel %vm4336, %v4670, %v4663
      %v4736 = vsel %vm4338, %v4677, %v4735
      %v4737 = vsel %vm4340, %v4684, %v4736
      %v4738 = vsel %vm4342, %v4691, %v4737
      %v4739 = vsel %vm4344, %v4698, %v4738
      %v4740 = vsel %vm4346, %v4705, %v4739
      %v4741 = vsel %vm4348, %v4712, %v4740
      %v4742 = vsel %vm779, %v4741, 0
      %4744 = vmatprep.subr.mxu0 0.0
      %4745 = vmatpush1.msra.mxu0 %v4717
      %4746 = vmatprep.subr.mxu0 0.0
      %4747 = vmatpush1.msra.mxu0 %v4718
      %4748 = vmatprep.subr.mxu0 0.0
      %4749 = vmatpush1.msra.mxu0 %v4719
      %4750 = vmatprep.subr.mxu0 0.0
      %4751 = vmatpush1.msra.mxu0 %v4720
      %4752 = vmatprep.subr.mxu0 0.0
      %4753 = vmatpush1.msra.mxu0 0.0
      %4754 = vmatprep.subr.mxu0 0.0
      %4755 = vmatpush1.msra.mxu0 0.0
      %4756 = vmatprep.subr.mxu0 0.0
      %4757 = vmatpush1.msra.mxu0 0.0
      %4758 = vmatprep.subr.mxu0 0.0
      %4759 = vmatpush1.msra.mxu0 0.0
      %4760 = vmatprep.subr.mxu0 0.0
      %4761 = vmatpush1.msra.mxu0 0.0
      %4762 = vmatprep.subr.mxu0 0.0
      %4763 = vmatpush1.msra.mxu0 0.0
      %4764 = vmatprep.subr.mxu0 0.0
      %4765 = vmatpush1.msra.mxu0 0.0
      %4766 = vmatprep.subr.mxu0 0.0
      %4767 = vmatpush1.msra.mxu0 0.0
      %4768 = vmatprep.subr.mxu0 0.0
      %4769 = vmatpush1.msra.mxu0 0.0
      %4770 = vmatprep.subr.mxu0 0.0
      %4771 = vmatpush1.msra.mxu0 0.0
      %4772 = vmatprep.subr.mxu0 0.0
      %4773 = vmatpush1.msra.mxu0 0.0
      %4774 = vmatprep.subr.mxu0 0.0
      %4775 = vmatpush1.msra.mxu0 0.0
      %4776 = vmatprep.subr.mxu0 0.0
      %4777 = vmatpush1.msra.mxu0 0.0
      %4778 = vmatprep.subr.mxu0 0.0
      %4779 = vmatpush1.msra.mxu0 0.0
      %4780 = vmatprep.subr.mxu0 0.0
      %4781 = vmatpush1.msra.mxu0 0.0
      %4782 = vmatprep.subr.mxu0 0.0
      %4783 = vmatpush1.msra.mxu0 0.0
      %4784 = vmatprep.subr.mxu0 0.0
      %4785 = vmatpush1.msra.mxu0 0.0
      %4786 = vmatprep.subr.mxu0 0.0
      %4787 = vmatpush1.msra.mxu0 0.0
      %4788 = vmatprep.subr.mxu0 0.0
      %4789 = vmatpush1.msra.mxu0 0.0
      %4790 = vmatprep.subr.mxu0 0.0
      %4791 = vmatpush1.msra.mxu0 0.0
      %4792 = vmatprep.subr.mxu0 0.0
      %4793 = vmatpush1.msra.mxu0 0.0
      %4794 = vmatprep.subr.mxu0 0.0
      %4795 = vmatpush1.msra.mxu0 0.0
      %4796 = vmatprep.subr.mxu0 0.0
      %4797 = vmatpush1.msra.mxu0 0.0
      %4798 = vmatprep.subr.mxu0 0.0
      %4799 = vmatpush1.msra.mxu0 0.0
      %4800 = vmatprep.subr.mxu0 0.0
      %4801 = vmatpush1.msra.mxu0 0.0
      %4802 = vmatprep.subr.mxu0 0.0
      %4803 = vmatpush1.msra.mxu0 0.0
      %4804 = vmatprep.subr.mxu0 0.0
      %4805 = vmatpush1.msra.mxu0 0.0
      %4806 = vmatprep.subr.mxu0 0.0
      %4807 = vmatpush1.msra.mxu0 0.0
      %4808 = vmatprep.mubr.f32.mxu0 0.0
      %4809 = vmatmul.mubr.f32.gmra.mrb[0].mxu0 %v4742
      %v4810 = vpop.f32.mrb[0].mxu0
      %v4811 = vadd.f32 %v4726, %v4810
      %v4812 = vpop.f32.mrb[0].mxu0
      %4813 = vdwg.mxu0
      %v4814 = vmax.f32 %v4811, 0.0
      %v4815 = vld [vmem:[%s13] sm:$0xf]
      %v4816 = vld [vmem:[%s13 + $0x4] sm:$0xf]
      %v4817 = vunpack.c.l.bf16 %v4815
      %v4818 = vunpack.c.l.bf16 %v4816
      %v4819 = vld [vmem:[%s14] sm:$0x1]
      %v4820 = vunpack.c.l.bf16 %v4819
      %v4821 = vlaneseq
      %v4822 = vshrl.u32 %v4821, 7
      %v4823 = vsub.s32 0, %v4822
      %v4824 = vrot.slane %v4820, %v4823
      %v4826 = vsel %vm552, %v4814, 0
      %4828 = vmatprep.subr.mxu0 0.0
      %4829 = vmatpush1.msra.mxu0 %v4817
      %4830 = vmatprep.subr.mxu0 0.0
      %4831 = vmatpush1.msra.mxu0 %v4818
      %4832 = vmatprep.subr.mxu0 0.0
      %4833 = vmatpush1.msra.mxu0 0.0
      %4834 = vmatprep.subr.mxu0 0.0
      %4835 = vmatpush1.msra.mxu0 0.0
      %4836 = vmatprep.subr.mxu0 0.0
      %4837 = vmatpush1.msra.mxu0 0.0
      %4838 = vmatprep.subr.mxu0 0.0
      %4839 = vmatpush1.msra.mxu0 0.0
      %4840 = vmatprep.subr.mxu0 0.0
      %4841 = vmatpush1.msra.mxu0 0.0
      %4842 = vmatprep.subr.mxu0 0.0
      %4843 = vmatpush1.msra.mxu0 0.0
      %4844 = vmatprep.subr.mxu0 0.0
      %4845 = vmatpush1.msra.mxu0 0.0
      %4846 = vmatprep.subr.mxu0 0.0
      %4847 = vmatpush1.msra.mxu0 0.0
      %4848 = vmatprep.subr.mxu0 0.0
      %4849 = vmatpush1.msra.mxu0 0.0
      %4850 = vmatprep.subr.mxu0 0.0
      %4851 = vmatpush1.msra.mxu0 0.0
      %4852 = vmatprep.subr.mxu0 0.0
      %4853 = vmatpush1.msra.mxu0 0.0
      %4854 = vmatprep.subr.mxu0 0.0
      %4855 = vmatpush1.msra.mxu0 0.0
      %4856 = vmatprep.subr.mxu0 0.0
      %4857 = vmatpush1.msra.mxu0 0.0
      %4858 = vmatprep.subr.mxu0 0.0
      %4859 = vmatpush1.msra.mxu0 0.0
      %4860 = vmatprep.subr.mxu0 0.0
      %4861 = vmatpush1.msra.mxu0 0.0
      %4862 = vmatprep.subr.mxu0 0.0
      %4863 = vmatpush1.msra.mxu0 0.0
      %4864 = vmatprep.subr.mxu0 0.0
      %4865 = vmatpush1.msra.mxu0 0.0
      %4866 = vmatprep.subr.mxu0 0.0
      %4867 = vmatpush1.msra.mxu0 0.0
      %4868 = vmatprep.subr.mxu0 0.0
      %4869 = vmatpush1.msra.mxu0 0.0
      %4870 = vmatprep.subr.mxu0 0.0
      %4871 = vmatpush1.msra.mxu0 0.0
      %4872 = vmatprep.subr.mxu0 0.0
      %4873 = vmatpush1.msra.mxu0 0.0
      %4874 = vmatprep.subr.mxu0 0.0
      %4875 = vmatpush1.msra.mxu0 0.0
      %4876 = vmatprep.subr.mxu0 0.0
      %4877 = vmatpush1.msra.mxu0 0.0
      %4878 = vmatprep.subr.mxu0 0.0
      %4879 = vmatpush1.msra.mxu0 0.0
      %4880 = vmatprep.subr.mxu0 0.0
      %4881 = vmatpush1.msra.mxu0 0.0
      %4882 = vmatprep.subr.mxu0 0.0
      %4883 = vmatpush1.msra.mxu0 0.0
      %4884 = vmatprep.subr.mxu0 0.0
      %4885 = vmatpush1.msra.mxu0 0.0
      %4886 = vmatprep.subr.mxu0 0.0
      %4887 = vmatpush1.msra.mxu0 0.0
      %4888 = vmatprep.subr.mxu0 0.0
      %4889 = vmatpush1.msra.mxu0 0.0
      %4890 = vmatprep.subr.mxu0 0.0
      %4891 = vmatpush1.msra.mxu0 0.0
      %4892 = vmatprep.mubr.f32.mxu0 0.0
      %4893 = vmatmul.mubr.f32.gmra.mrb[0].mxu0 %v4826
      %v4894 = vpop.f32.mrb[0].mxu0
      %v4895 = vadd.f32 %v4824, %v4894
      %v4896 = vpop.f32.mrb[0].mxu0
      %4897 = vdwg.mxu0
      %v4898 = vlaneseq
      %v4899 = vand.u32 %v4898, 127
      %vm4900 = vcmp.lt.s32.totalorder %v4899, 4
      %v4901 = vsel %vm4900, %v4895, -1e+30
      %4902 = vmax.xlane.f32.xlu0 %v4901
      %v4903 = vpop.xlane.xlu0 %4902
      %v4904 = vsub.f32 %v4901, %v4903
      %v4905 = vmul.f32 %v4904, 1.442695
      %v4906 = vpow.pop %v4905
      %4907 = vadd.xlane.f32.xlu0 %v4906
      %v4908 = vpop.xlane.xlu0 %4907
      %v4909 = vlog2.pop %v4908
      %v4910 = vmul.f32 %v4909, 0.6931472
      %v4911 = vsub.f32 %v4904, %v4910
      %4912 = vst [vmem:[%s519] sm:$0xff] %v4911
      %p4913 = scmp.lt.s32.totalorder %s26, 3
      %s4914 = scalar_select %p4913, %s26, 3
      %s4915 = smul.addr %s4914, 8
      %s4916 = scalar_lea.vmem %s15, %s4915
      // Predicated region
      $region81: #{gcn_cn_v2_forward.1} parent=79 // pred_check
        %p4917 = pneg %p369
      $region82: #{gcn_cn_v2_forward.1} parent=79 // pred_check_branch
        %4919 = sbr.rel (%p4917) target = $region84
      $region83: #{gcn_cn_v2_forward.1} parent=79 // pred_region
        _
      $region84: #{gcn_cn_v2_forward.1} parent=79 // pred_fallthru
        _
    $region80: #{gcn_cn_v2_forward.1} parent=5 // pred_fallthru
      _
    %p4920 = scmp.le.s32.totalorder 2, %s21
    // Predicated region
    $region85: #{gcn_cn_v2_forward.1} parent=5 // pred_check
      %p4921 = pneg %p4920
    $region86: #{gcn_cn_v2_forward.1} parent=5 // pred_check_branch
      %4923 = sbr.rel (%p4921) target = $region88
    $region87: #{gcn_cn_v2_forward.1} parent=5 // pred_region
      %s4924 = ssub.s32 %s21, 2
      // Predicated region
      $region89: #{gcn_cn_v2_forward.1} parent=87 // pred_check
        %p4925 = pneg %p375
      $region90: #{gcn_cn_v2_forward.1} parent=87 // pred_check_branch
        %4927 = sbr.rel (%p4925) target = $region92
      $region91: #{gcn_cn_v2_forward.1} parent=87 // pred_region
        %p4928 = scmp.lt.s32.totalorder %s27, 3
        %s4929 = scalar_select %p4928, %s27, 3
        %s4930 = smul.addr %s4929, 8
        %s4931 = scalar_lea.vmem %s15, %s4930
      $region92: #{gcn_cn_v2_forward.1} parent=87 // pred_fallthru
        _
    $region88: #{gcn_cn_v2_forward.1} parent=5 // pred_fallthru
      _
  $region6: #{gcn_cn_v2_forward.1} parent=0 // loop_footer
    %s25 = sadd.s32 1, %s21
  $region7: #{gcn_cn_v2_forward.1} parent=0 // loop_footer_branch
    %20 = sbr.rel target = $region3
  $region8: #{gcn_cn_v2_forward.1} parent=0 // loop_exit
    _

</llo_original>
